<compile_context>
chip_gen: v6e
topology: v6e:2x2x1
jax: 0.10.0
libtpu: 0.0.40
codegen_flags: <defaults>
</compile_context>

<pallas_src>
import jax
import jax.numpy as jnp
from jax.experimental import pallas as pl
from jax.experimental.pallas import tpu as pltpu


def _dwsep_kernel(x_ref, cw_ref, b_ref, out_ref, xpad_ref):
    # x_ref   : (1, Cin, H, W)        unpadded input for this batch element (VMEM).
    # cw_ref  : (9*Cin*Cout,) f32     SMEM - combined depthwise*pointwise weights,
    #                                 flat index ((kh*3 + kw)*Cin + ci)*Cout + co.
    # b_ref   : (Cout,)       f32     SMEM - folded bias  pw_b + dw_b @ pw_w.
    # out_ref : (1, Cout, H, W)       output for this batch element (NCHW).
    # xpad_ref: (Cin, H+2, W+2) f32   VMEM scratch - zero-padded staging slab.
    cin = x_ref.shape[1]
    _, cout, H, W = out_ref.shape

    # ---- fold 'same' zero padding into the kernel: stage a padded copy in VMEM ----
    # (Re-zeroed every step: scratch is per-core and a core may never see step 0.)
    xpad_ref[...] = jnp.zeros_like(xpad_ref)
    for ci in range(cin):
        xpad_ref[ci, 1:H + 1, 1:W + 1] = x_ref[0, ci].astype(jnp.float32)

    # ---- fused depthwise*pointwise: 9 taps, Cout accumulators held in vregs ----
    # Live vregs: ~Cout accumulator slabs + Cin tap slabs + temps -> well under 64,
    # so no spill risk; each output channel is stored exactly once at the end.
    acc = [None] * cout
    for kh in range(3):                 # static unroll: 9 taps
        for kw in range(3):
            # Tap window: rows [kh, kh+H), cols [kw, kw+W) of the padded slab.
            # (kh=1,2 windows start at unaligned sublane offsets; XLU realignment is
            #  not the binding slot at these sizes per the bundle-level review.)
            xs = [xpad_ref[ci, kh:kh + H, kw:kw + W] for ci in range(cin)]
            base = (kh * 3 + kw) * cin * cout
            for co in range(cout):      # VPU broadcast-FMAs (channels too small for MXU)
                contrib = xs[0] * cw_ref[base + co]
                for ci in range(1, cin):
                    contrib = contrib + xs[ci] * cw_ref[base + ci * cout + co]
                acc[co] = contrib if acc[co] is None else acc[co] + contrib

    for co in range(cout):
        out_ref[0, co] = (acc[co] + b_ref[co]).astype(out_ref.dtype)


def depthwise_separable_conv2d(x_nchw, dw_w, dw_b, pw_w, pw_b):
    """x_nchw: (B, Cin, H, W); dw_w: (3,3,Cin); dw_b: (Cin,);
    pw_w: (Cin, Cout); pw_b: (Cout,). Returns (B, Cout, H, W)."""
    B, Cin, H, W = x_nchw.shape
    Cout = pw_w.shape[1]

    # ---- weight-only preprocessing (no passes over the activation tensor) ----
    # combined weight: cw[kh,kw,ci,co] = dw_w[kh,kw,ci] * pw_w[ci,co]
    cw_flat = (dw_w[:, :, :, None] * pw_w[None, None, :, :]).astype(jnp.float32).reshape(-1)
    # fold the depthwise bias through the (linear) pointwise conv
    bias = (pw_b + dw_b @ pw_w).astype(jnp.float32)

    # VMEM budget from (8,128)-padded tile shapes; cap well below v7x's 64 MiB/TC.
    def _padded_bytes(c, h, w, itemsize):
        return c * (-(-h // 8) * 8) * (-(-w // 128) * 128) * itemsize

    itemsize = jnp.dtype(x_nchw.dtype).itemsize
    in_blk = _padded_bytes(Cin, H, W, itemsize)
    out_blk = _padded_bytes(Cout, H, W, itemsize)
    slab = _padded_bytes(Cin, H + 2, W + 2, 4)
    vmem_limit = int(min(48 * 2**20,
                         max(16 * 2**20,
                             2 * (in_blk + out_blk) + slab + 2 * 2**20)))

    out = pl.pallas_call(
        _dwsep_kernel,
        out_shape=jax.ShapeDtypeStruct((B, Cout, H, W), x_nchw.dtype),
        grid_spec=pltpu.PrefetchScalarGridSpec(
            num_scalar_prefetch=0,
            grid=(B,),                       # one self-contained step per batch element
            in_specs=[
                pl.BlockSpec((1, Cin, H, W), lambda b: (b, 0, 0, 0)),
                pl.BlockSpec(memory_space=pltpu.MemorySpace.SMEM),   # combined weights
                pl.BlockSpec(memory_space=pltpu.MemorySpace.SMEM),   # folded bias
            ],
            out_specs=pl.BlockSpec((1, Cout, H, W), lambda b: (b, 0, 0, 0)),
            scratch_shapes=[pltpu.VMEM((Cin, H + 2, W + 2), jnp.float32)],
        ),
        compiler_params=pltpu.CompilerParams(
            dimension_semantics=("parallel",),
            vmem_limit_bytes=vmem_limit),
    )(x_nchw, cw_flat, bias)
    return out


def _reference(x_nchw, dw_w, dw_b, pw_w, pw_b):
    """Pure-JAX reference using lax convs (matches PyTorch semantics)."""
    B, Cin, H, W = x_nchw.shape
    Cout = pw_w.shape[1]
    dw_w_oihw = jnp.transpose(dw_w, (2, 0, 1))[:, None, :, :]   # (Cin,1,3,3)
    y = jax.lax.conv_general_dilated(
        x_nchw, dw_w_oihw, (1, 1), "SAME",
        dimension_numbers=("NCHW", "OIHW", "NCHW"),
        feature_group_count=Cin)
    y = y + dw_b.reshape(1, Cin, 1, 1)
    pw_w_oihw = jnp.transpose(pw_w, (1, 0))[:, :, None, None]   # (Cout,Cin,1,1)
    z = jax.lax.conv_general_dilated(
        y, pw_w_oihw, (1, 1), "SAME",
        dimension_numbers=("NCHW", "OIHW", "NCHW"))
    return z + pw_b.reshape(1, Cout, 1, 1)


if __name__ == "__main__":
    key = jax.random.PRNGKey(0)
    B, Cin, Cout, H, W, K = 2, 4, 8, 16, 16, 3

    k_x, k_dw, k_pw, k_db, k_pb = jax.random.split(key, 5)
    x = jax.random.normal(k_x, (B, Cin, H, W), dtype=jnp.float32)

    # Xavier-normal-like weight init (as in the PyTorch module).
    dw_std = (2.0 / (1 * K * K + 1 * K * K)) ** 0.5   # depthwise weight (Cin,1,3,3)
    pw_std = (2.0 / (Cin + Cout)) ** 0.5              # pointwise weight (Cout,Cin,1,1)
    dw_w = dw_std * jax.random.normal(k_dw, (K, K, Cin), dtype=jnp.float32)
    pw_w = pw_std * jax.random.normal(k_pw, (Cin, Cout), dtype=jnp.float32)
    # PyTorch zero-inits the biases; use small nonzero values so the bias-folding
    # path is actually exercised by the numerical check.
    dw_b = 0.1 * jax.random.normal(k_db, (Cin,), dtype=jnp.float32)
    pw_b = 0.1 * jax.random.normal(k_pb, (Cout,), dtype=jnp.float32)

    out = depthwise_separable_conv2d(x, dw_w, dw_b, pw_w, pw_b)
    out = jax.block_until_ready(out)

    ref = _reference(x, dw_w, dw_b, pw_w, pw_b)
    assert out.shape == (B, Cout, H, W)
    assert jnp.allclose(out, ref, atol=2e-4, rtol=2e-4), "mismatch vs reference"

    print("KERNEL_OK")
</pallas_src>

<mosaic_0001>
module attributes {stable_mosaic.version = 11 : i64} {
  func.func @_dwsep_kernel(%arg0: i32, %arg1: memref<1x4x16x16xf32, #tpu.memory_space<vmem>>, %arg2: memref<288xf32, #tpu.memory_space<smem>>, %arg3: memref<8xf32, #tpu.memory_space<smem>>, %arg4: memref<1x8x16x16xf32, #tpu.memory_space<vmem>>, %arg5: memref<4x18x18xf32, #tpu.memory_space<vmem>>) attributes {dimension_semantics = [#tpu.dimension_semantics<parallel>], iteration_bounds = array<i64: 2>, scalar_prefetch = 0 : i64, scratch_operands = 1 : i64, tpu.core_type = #tpu.core_type<tc>, window_params = [{transform_indices = @transform_0, window_bounds = array<i64: 1, 4, 16, 16>}, {transform_indices = @transform_1, window_bounds = array<i64: 288>}, {transform_indices = @transform_2, window_bounds = array<i64: 8>}, {transform_indices = @transform_3, window_bounds = array<i64: 1, 8, 16, 16>}]} {
    %cst = arith.constant 0.000000e+00 : f32
    %0 = vector.broadcast %cst : f32 to vector<4x18x18xf32>
    %c0 = arith.constant 0 : index
    %c0_0 = arith.constant 0 : index
    %c0_1 = arith.constant 0 : index
    %1 = vector.load %arg5[%c0, %c0_0, %c0_1] : memref<4x18x18xf32, #tpu.memory_space<vmem>>, vector<4x18x18xf32>
    tpu.vector_store %arg5[%c0, %c0_0, %c0_1], %0 {strides = array<i32>} : memref<4x18x18xf32, #tpu.memory_space<vmem>>, vector<4x18x18xf32>,
    %c0_2 = arith.constant 0 : index
    %c0_3 = arith.constant 0 : index
    %c0_4 = arith.constant 0 : index
    %c0_5 = arith.constant 0 : index
    %2 = vector.load %arg1[%c0_2, %c0_3, %c0_4, %c0_5] : memref<1x4x16x16xf32, #tpu.memory_space<vmem>>, vector<1x1x16x16xf32>
    %3 = vector.shape_cast %2 : vector<1x1x16x16xf32> to vector<16x16xf32>
    %c0_6 = arith.constant 0 : index
    %c1 = arith.constant 1 : index
    %c1_7 = arith.constant 1 : index
    %4 = vector.load %arg5[%c0_6, %c1, %c1_7] : memref<4x18x18xf32, #tpu.memory_space<vmem>>, vector<1x16x16xf32>
    %5 = vector.shape_cast %4 : vector<1x16x16xf32> to vector<16x16xf32>
    %6 = vector.shape_cast %3 : vector<16x16xf32> to vector<1x16x16xf32>
    tpu.vector_store %arg5[%c0_6, %c1, %c1_7], %6 {strides = array<i32>} : memref<4x18x18xf32, #tpu.memory_space<vmem>>, vector<1x16x16xf32>,
    %c0_8 = arith.constant 0 : index
    %c1_9 = arith.constant 1 : index
    %c0_10 = arith.constant 0 : index
    %c0_11 = arith.constant 0 : index
    %7 = vector.load %arg1[%c0_8, %c1_9, %c0_10, %c0_11] : memref<1x4x16x16xf32, #tpu.memory_space<vmem>>, vector<1x1x16x16xf32>
    %8 = vector.shape_cast %7 : vector<1x1x16x16xf32> to vector<16x16xf32>
    %c1_12 = arith.constant 1 : index
    %c1_13 = arith.constant 1 : index
    %c1_14 = arith.constant 1 : index
    %9 = vector.load %arg5[%c1_12, %c1_13, %c1_14] : memref<4x18x18xf32, #tpu.memory_space<vmem>>, vector<1x16x16xf32>
    %10 = vector.shape_cast %9 : vector<1x16x16xf32> to vector<16x16xf32>
    %11 = vector.shape_cast %8 : vector<16x16xf32> to vector<1x16x16xf32>
    tpu.vector_store %arg5[%c1_12, %c1_13, %c1_14], %11 {strides = array<i32>} : memref<4x18x18xf32, #tpu.memory_space<vmem>>, vector<1x16x16xf32>,
    %c0_15 = arith.constant 0 : index
    %c2 = arith.constant 2 : index
    %c0_16 = arith.constant 0 : index
    %c0_17 = arith.constant 0 : index
    %12 = vector.load %arg1[%c0_15, %c2, %c0_16, %c0_17] : memref<1x4x16x16xf32, #tpu.memory_space<vmem>>, vector<1x1x16x16xf32>
    %13 = vector.shape_cast %12 : vector<1x1x16x16xf32> to vector<16x16xf32>
    %c2_18 = arith.constant 2 : index
    %c1_19 = arith.constant 1 : index
    %c1_20 = arith.constant 1 : index
    %14 = vector.load %arg5[%c2_18, %c1_19, %c1_20] : memref<4x18x18xf32, #tpu.memory_space<vmem>>, vector<1x16x16xf32>
    %15 = vector.shape_cast %14 : vector<1x16x16xf32> to vector<16x16xf32>
    %16 = vector.shape_cast %13 : vector<16x16xf32> to vector<1x16x16xf32>
    tpu.vector_store %arg5[%c2_18, %c1_19, %c1_20], %16 {strides = array<i32>} : memref<4x18x18xf32, #tpu.memory_space<vmem>>, vector<1x16x16xf32>,
    %c0_21 = arith.constant 0 : index
    %c3 = arith.constant 3 : index
    %c0_22 = arith.constant 0 : index
    %c0_23 = arith.constant 0 : index
    %17 = vector.load %arg1[%c0_21, %c3, %c0_22, %c0_23] : memref<1x4x16x16xf32, #tpu.memory_space<vmem>>, vector<1x1x16x16xf32>
    %18 = vector.shape_cast %17 : vector<1x1x16x16xf32> to vector<16x16xf32>
    %c3_24 = arith.constant 3 : index
    %c1_25 = arith.constant 1 : index
    %c1_26 = arith.constant 1 : index
    %19 = vector.load %arg5[%c3_24, %c1_25, %c1_26] : memref<4x18x18xf32, #tpu.memory_space<vmem>>, vector<1x16x16xf32>
    %20 = vector.shape_cast %19 : vector<1x16x16xf32> to vector<16x16xf32>
    %21 = vector.shape_cast %18 : vector<16x16xf32> to vector<1x16x16xf32>
    tpu.vector_store %arg5[%c3_24, %c1_25, %c1_26], %21 {strides = array<i32>} : memref<4x18x18xf32, #tpu.memory_space<vmem>>, vector<1x16x16xf32>,
    %c0_27 = arith.constant 0 : index
    %c0_28 = arith.constant 0 : index
    %c0_29 = arith.constant 0 : index
    %22 = vector.load %arg5[%c0_27, %c0_28, %c0_29] : memref<4x18x18xf32, #tpu.memory_space<vmem>>, vector<1x16x16xf32>
    %23 = vector.shape_cast %22 : vector<1x16x16xf32> to vector<16x16xf32>
    %c1_30 = arith.constant 1 : index
    %c0_31 = arith.constant 0 : index
    %c0_32 = arith.constant 0 : index
    %24 = vector.load %arg5[%c1_30, %c0_31, %c0_32] : memref<4x18x18xf32, #tpu.memory_space<vmem>>, vector<1x16x16xf32>
    %25 = vector.shape_cast %24 : vector<1x16x16xf32> to vector<16x16xf32>
    %c2_33 = arith.constant 2 : index
    %c0_34 = arith.constant 0 : index
    %c0_35 = arith.constant 0 : index
    %26 = vector.load %arg5[%c2_33, %c0_34, %c0_35] : memref<4x18x18xf32, #tpu.memory_space<vmem>>, vector<1x16x16xf32>
    %27 = vector.shape_cast %26 : vector<1x16x16xf32> to vector<16x16xf32>
    %c3_36 = arith.constant 3 : index
    %c0_37 = arith.constant 0 : index
    %c0_38 = arith.constant 0 : index
    %28 = vector.load %arg5[%c3_36, %c0_37, %c0_38] : memref<4x18x18xf32, #tpu.memory_space<vmem>>, vector<1x16x16xf32>
    %29 = vector.shape_cast %28 : vector<1x16x16xf32> to vector<16x16xf32>
    %c0_39 = arith.constant 0 : index
    %30 = memref.load %arg2[%c0_39] : memref<288xf32, #tpu.memory_space<smem>>
    %31 = vector.broadcast %30 : f32 to vector<16x16xf32>
    %32 = arith.mulf %23, %31 : vector<16x16xf32>
    %c8 = arith.constant 8 : index
    %33 = memref.load %arg2[%c8] : memref<288xf32, #tpu.memory_space<smem>>
    %34 = vector.broadcast %33 : f32 to vector<16x16xf32>
    %35 = arith.mulf %25, %34 : vector<16x16xf32>
    %36 = arith.addf %32, %35 : vector<16x16xf32>
    %c16 = arith.constant 16 : index
    %37 = memref.load %arg2[%c16] : memref<288xf32, #tpu.memory_space<smem>>
    %38 = vector.broadcast %37 : f32 to vector<16x16xf32>
    %39 = arith.mulf %27, %38 : vector<16x16xf32>
    %40 = arith.addf %36, %39 : vector<16x16xf32>
    %c24 = arith.constant 24 : index
    %41 = memref.load %arg2[%c24] : memref<288xf32, #tpu.memory_space<smem>>
    %42 = vector.broadcast %41 : f32 to vector<16x16xf32>
    %43 = arith.mulf %29, %42 : vector<16x16xf32>
    %44 = arith.addf %40, %43 : vector<16x16xf32>
    %c1_40 = arith.constant 1 : index
    %45 = memref.load %arg2[%c1_40] : memref<288xf32, #tpu.memory_space<smem>>
    %46 = vector.broadcast %45 : f32 to vector<16x16xf32>
    %47 = arith.mulf %23, %46 : vector<16x16xf32>
    %c9 = arith.constant 9 : index
    %48 = memref.load %arg2[%c9] : memref<288xf32, #tpu.memory_space<smem>>
    %49 = vector.broadcast %48 : f32 to vector<16x16xf32>
    %50 = arith.mulf %25, %49 : vector<16x16xf32>
    %51 = arith.addf %47, %50 : vector<16x16xf32>
    %c17 = arith.constant 17 : index
    %52 = memref.load %arg2[%c17] : memref<288xf32, #tpu.memory_space<smem>>
    %53 = vector.broadcast %52 : f32 to vector<16x16xf32>
    %54 = arith.mulf %27, %53 : vector<16x16xf32>
    %55 = arith.addf %51, %54 : vector<16x16xf32>
    %c25 = arith.constant 25 : index
    %56 = memref.load %arg2[%c25] : memref<288xf32, #tpu.memory_space<smem>>
    %57 = vector.broadcast %56 : f32 to vector<16x16xf32>
    %58 = arith.mulf %29, %57 : vector<16x16xf32>
    %59 = arith.addf %55, %58 : vector<16x16xf32>
    %c2_41 = arith.constant 2 : index
    %60 = memref.load %arg2[%c2_41] : memref<288xf32, #tpu.memory_space<smem>>
    %61 = vector.broadcast %60 : f32 to vector<16x16xf32>
    %62 = arith.mulf %23, %61 : vector<16x16xf32>
    %c10 = arith.constant 10 : index
    %63 = memref.load %arg2[%c10] : memref<288xf32, #tpu.memory_space<smem>>
    %64 = vector.broadcast %63 : f32 to vector<16x16xf32>
    %65 = arith.mulf %25, %64 : vector<16x16xf32>
    %66 = arith.addf %62, %65 : vector<16x16xf32>
    %c18 = arith.constant 18 : index
    %67 = memref.load %arg2[%c18] : memref<288xf32, #tpu.memory_space<smem>>
    %68 = vector.broadcast %67 : f32 to vector<16x16xf32>
    %69 = arith.mulf %27, %68 : vector<16x16xf32>
    %70 = arith.addf %66, %69 : vector<16x16xf32>
    %c26 = arith.constant 26 : index
    %71 = memref.load %arg2[%c26] : memref<288xf32, #tpu.memory_space<smem>>
    %72 = vector.broadcast %71 : f32 to vector<16x16xf32>
    %73 = arith.mulf %29, %72 : vector<16x16xf32>
    %74 = arith.addf %70, %73 : vector<16x16xf32>
    %c3_42 = arith.constant 3 : index
    %75 = memref.load %arg2[%c3_42] : memref<288xf32, #tpu.memory_space<smem>>
    %76 = vector.broadcast %75 : f32 to vector<16x16xf32>
    %77 = arith.mulf %23, %76 : vector<16x16xf32>
    %c11 = arith.constant 11 : index
    %78 = memref.load %arg2[%c11] : memref<288xf32, #tpu.memory_space<smem>>
    %79 = vector.broadcast %78 : f32 to vector<16x16xf32>
    %80 = arith.mulf %25, %79 : vector<16x16xf32>
    %81 = arith.addf %77, %80 : vector<16x16xf32>
    %c19 = arith.constant 19 : index
    %82 = memref.load %arg2[%c19] : memref<288xf32, #tpu.memory_space<smem>>
    %83 = vector.broadcast %82 : f32 to vector<16x16xf32>
    %84 = arith.mulf %27, %83 : vector<16x16xf32>
    %85 = arith.addf %81, %84 : vector<16x16xf32>
    %c27 = arith.constant 27 : index
    %86 = memref.load %arg2[%c27] : memref<288xf32, #tpu.memory_space<smem>>
    %87 = vector.broadcast %86 : f32 to vector<16x16xf32>
    %88 = arith.mulf %29, %87 : vector<16x16xf32>
    %89 = arith.addf %85, %88 : vector<16x16xf32>
    %c4 = arith.constant 4 : index
    %90 = memref.load %arg2[%c4] : memref<288xf32, #tpu.memory_space<smem>>
    %91 = vector.broadcast %90 : f32 to vector<16x16xf32>
    %92 = arith.mulf %23, %91 : vector<16x16xf32>
    %c12 = arith.constant 12 : index
    %93 = memref.load %arg2[%c12] : memref<288xf32, #tpu.memory_space<smem>>
    %94 = vector.broadcast %93 : f32 to vector<16x16xf32>
    %95 = arith.mulf %25, %94 : vector<16x16xf32>
    %96 = arith.addf %92, %95 : vector<16x16xf32>
    %c20 = arith.constant 20 : index
    %97 = memref.load %arg2[%c20] : memref<288xf32, #tpu.memory_space<smem>>
    %98 = vector.broadcast %97 : f32 to vector<16x16xf32>
    %99 = arith.mulf %27, %98 : vector<16x16xf32>
    %100 = arith.addf %96, %99 : vector<16x16xf32>
    %c28 = arith.constant 28 : index
    %101 = memref.load %arg2[%c28] : memref<288xf32, #tpu.memory_space<smem>>
    %102 = vector.broadcast %101 : f32 to vector<16x16xf32>
    %103 = arith.mulf %29, %102 : vector<16x16xf32>
    %104 = arith.addf %100, %103 : vector<16x16xf32>
    %c5 = arith.constant 5 : index
    %105 = memref.load %arg2[%c5] : memref<288xf32, #tpu.memory_space<smem>>
    %106 = vector.broadcast %105 : f32 to vector<16x16xf32>
    %107 = arith.mulf %23, %106 : vector<16x16xf32>
    %c13 = arith.constant 13 : index
    %108 = memref.load %arg2[%c13] : memref<288xf32, #tpu.memory_space<smem>>
    %109 = vector.broadcast %108 : f32 to vector<16x16xf32>
    %110 = arith.mulf %25, %109 : vector<16x16xf32>
    %111 = arith.addf %107, %110 : vector<16x16xf32>
    %c21 = arith.constant 21 : index
    %112 = memref.load %arg2[%c21] : memref<288xf32, #tpu.memory_space<smem>>
    %113 = vector.broadcast %112 : f32 to vector<16x16xf32>
    %114 = arith.mulf %27, %113 : vector<16x16xf32>
    %115 = arith.addf %111, %114 : vector<16x16xf32>
    %c29 = arith.constant 29 : index
    %116 = memref.load %arg2[%c29] : memref<288xf32, #tpu.memory_space<smem>>
    %117 = vector.broadcast %116 : f32 to vector<16x16xf32>
    %118 = arith.mulf %29, %117 : vector<16x16xf32>
    %119 = arith.addf %115, %118 : vector<16x16xf32>
    %c6 = arith.constant 6 : index
    %120 = memref.load %arg2[%c6] : memref<288xf32, #tpu.memory_space<smem>>
    %121 = vector.broadcast %120 : f32 to vector<16x16xf32>
    %122 = arith.mulf %23, %121 : vector<16x16xf32>
    %c14 = arith.constant 14 : index
    %123 = memref.load %arg2[%c14] : memref<288xf32, #tpu.memory_space<smem>>
    %124 = vector.broadcast %123 : f32 to vector<16x16xf32>
    %125 = arith.mulf %25, %124 : vector<16x16xf32>
    %126 = arith.addf %122, %125 : vector<16x16xf32>
    %c22 = arith.constant 22 : index
    %127 = memref.load %arg2[%c22] : memref<288xf32, #tpu.memory_space<smem>>
    %128 = vector.broadcast %127 : f32 to vector<16x16xf32>
    %129 = arith.mulf %27, %128 : vector<16x16xf32>
    %130 = arith.addf %126, %129 : vector<16x16xf32>
    %c30 = arith.constant 30 : index
    %131 = memref.load %arg2[%c30] : memref<288xf32, #tpu.memory_space<smem>>
    %132 = vector.broadcast %131 : f32 to vector<16x16xf32>
    %133 = arith.mulf %29, %132 : vector<16x16xf32>
    %134 = arith.addf %130, %133 : vector<16x16xf32>
    %c7 = arith.constant 7 : index
    %135 = memref.load %arg2[%c7] : memref<288xf32, #tpu.memory_space<smem>>
    %136 = vector.broadcast %135 : f32 to vector<16x16xf32>
    %137 = arith.mulf %23, %136 : vector<16x16xf32>
    %c15 = arith.constant 15 : index
    %138 = memref.load %arg2[%c15] : memref<288xf32, #tpu.memory_space<smem>>
    %139 = vector.broadcast %138 : f32 to vector<16x16xf32>
    %140 = arith.mulf %25, %139 : vector<16x16xf32>
    %141 = arith.addf %137, %140 : vector<16x16xf32>
    %c23 = arith.constant 23 : index
    %142 = memref.load %arg2[%c23] : memref<288xf32, #tpu.memory_space<smem>>
    %143 = vector.broadcast %142 : f32 to vector<16x16xf32>
    %144 = arith.mulf %27, %143 : vector<16x16xf32>
    %145 = arith.addf %141, %144 : vector<16x16xf32>
    %c31 = arith.constant 31 : index
    %146 = memref.load %arg2[%c31] : memref<288xf32, #tpu.memory_space<smem>>
    %147 = vector.broadcast %146 : f32 to vector<16x16xf32>
    %148 = arith.mulf %29, %147 : vector<16x16xf32>
    %149 = arith.addf %145, %148 : vector<16x16xf32>
    %c0_43 = arith.constant 0 : index
    %c0_44 = arith.constant 0 : index
    %c1_45 = arith.constant 1 : index
    %150 = vector.load %arg5[%c0_43, %c0_44, %c1_45] : memref<4x18x18xf32, #tpu.memory_space<vmem>>, vector<1x16x16xf32>
    %151 = vector.shape_cast %150 : vector<1x16x16xf32> to vector<16x16xf32>
    %c1_46 = arith.constant 1 : index
    %c0_47 = arith.constant 0 : index
    %c1_48 = arith.constant 1 : index
    %152 = vector.load %arg5[%c1_46, %c0_47, %c1_48] : memref<4x18x18xf32, #tpu.memory_space<vmem>>, vector<1x16x16xf32>
    %153 = vector.shape_cast %152 : vector<1x16x16xf32> to vector<16x16xf32>
    %c2_49 = arith.constant 2 : index
    %c0_50 = arith.constant 0 : index
    %c1_51 = arith.constant 1 : index
    %154 = vector.load %arg5[%c2_49, %c0_50, %c1_51] : memref<4x18x18xf32, #tpu.memory_space<vmem>>, vector<1x16x16xf32>
    %155 = vector.shape_cast %154 : vector<1x16x16xf32> to vector<16x16xf32>
    %c3_52 = arith.constant 3 : index
    %c0_53 = arith.constant 0 : index
    %c1_54 = arith.constant 1 : index
    %156 = vector.load %arg5[%c3_52, %c0_53, %c1_54] : memref<4x18x18xf32, #tpu.memory_space<vmem>>, vector<1x16x16xf32>
    %157 = vector.shape_cast %156 : vector<1x16x16xf32> to vector<16x16xf32>
    %c32 = arith.constant 32 : index
    %158 = memref.load %arg2[%c32] : memref<288xf32, #tpu.memory_space<smem>>
    %159 = vector.broadcast %158 : f32 to vector<16x16xf32>
    %160 = arith.mulf %151, %159 : vector<16x16xf32>
    %c40 = arith.constant 40 : index
    %161 = memref.load %arg2[%c40] : memref<288xf32, #tpu.memory_space<smem>>
    %162 = vector.broadcast %161 : f32 to vector<16x16xf32>
    %163 = arith.mulf %153, %162 : vector<16x16xf32>
    %164 = arith.addf %160, %163 : vector<16x16xf32>
    %c48 = arith.constant 48 : index
    %165 = memref.load %arg2[%c48] : memref<288xf32, #tpu.memory_space<smem>>
    %166 = vector.broadcast %165 : f32 to vector<16x16xf32>
    %167 = arith.mulf %155, %166 : vector<16x16xf32>
    %168 = arith.addf %164, %167 : vector<16x16xf32>
    %c56 = arith.constant 56 : index
    %169 = memref.load %arg2[%c56] : memref<288xf32, #tpu.memory_space<smem>>
    %170 = vector.broadcast %169 : f32 to vector<16x16xf32>
    %171 = arith.mulf %157, %170 : vector<16x16xf32>
    %172 = arith.addf %168, %171 : vector<16x16xf32>
    %173 = arith.addf %44, %172 : vector<16x16xf32>
    %c33 = arith.constant 33 : index
    %174 = memref.load %arg2[%c33] : memref<288xf32, #tpu.memory_space<smem>>
    %175 = vector.broadcast %174 : f32 to vector<16x16xf32>
    %176 = arith.mulf %151, %175 : vector<16x16xf32>
    %c41 = arith.constant 41 : index
    %177 = memref.load %arg2[%c41] : memref<288xf32, #tpu.memory_space<smem>>
    %178 = vector.broadcast %177 : f32 to vector<16x16xf32>
    %179 = arith.mulf %153, %178 : vector<16x16xf32>
    %180 = arith.addf %176, %179 : vector<16x16xf32>
    %c49 = arith.constant 49 : index
    %181 = memref.load %arg2[%c49] : memref<288xf32, #tpu.memory_space<smem>>
    %182 = vector.broadcast %181 : f32 to vector<16x16xf32>
    %183 = arith.mulf %155, %182 : vector<16x16xf32>
    %184 = arith.addf %180, %183 : vector<16x16xf32>
    %c57 = arith.constant 57 : index
    %185 = memref.load %arg2[%c57] : memref<288xf32, #tpu.memory_space<smem>>
    %186 = vector.broadcast %185 : f32 to vector<16x16xf32>
    %187 = arith.mulf %157, %186 : vector<16x16xf32>
    %188 = arith.addf %184, %187 : vector<16x16xf32>
    %189 = arith.addf %59, %188 : vector<16x16xf32>
    %c34 = arith.constant 34 : index
    %190 = memref.load %arg2[%c34] : memref<288xf32, #tpu.memory_space<smem>>
    %191 = vector.broadcast %190 : f32 to vector<16x16xf32>
    %192 = arith.mulf %151, %191 : vector<16x16xf32>
    %c42 = arith.constant 42 : index
    %193 = memref.load %arg2[%c42] : memref<288xf32, #tpu.memory_space<smem>>
    %194 = vector.broadcast %193 : f32 to vector<16x16xf32>
    %195 = arith.mulf %153, %194 : vector<16x16xf32>
    %196 = arith.addf %192, %195 : vector<16x16xf32>
    %c50 = arith.constant 50 : index
    %197 = memref.load %arg2[%c50] : memref<288xf32, #tpu.memory_space<smem>>
    %198 = vector.broadcast %197 : f32 to vector<16x16xf32>
    %199 = arith.mulf %155, %198 : vector<16x16xf32>
    %200 = arith.addf %196, %199 : vector<16x16xf32>
    %c58 = arith.constant 58 : index
    %201 = memref.load %arg2[%c58] : memref<288xf32, #tpu.memory_space<smem>>
    %202 = vector.broadcast %201 : f32 to vector<16x16xf32>
    %203 = arith.mulf %157, %202 : vector<16x16xf32>
    %204 = arith.addf %200, %203 : vector<16x16xf32>
    %205 = arith.addf %74, %204 : vector<16x16xf32>
    %c35 = arith.constant 35 : index
    %206 = memref.load %arg2[%c35] : memref<288xf32, #tpu.memory_space<smem>>
    %207 = vector.broadcast %206 : f32 to vector<16x16xf32>
    %208 = arith.mulf %151, %207 : vector<16x16xf32>
    %c43 = arith.constant 43 : index
    %209 = memref.load %arg2[%c43] : memref<288xf32, #tpu.memory_space<smem>>
    %210 = vector.broadcast %209 : f32 to vector<16x16xf32>
    %211 = arith.mulf %153, %210 : vector<16x16xf32>
    %212 = arith.addf %208, %211 : vector<16x16xf32>
    %c51 = arith.constant 51 : index
    %213 = memref.load %arg2[%c51] : memref<288xf32, #tpu.memory_space<smem>>
    %214 = vector.broadcast %213 : f32 to vector<16x16xf32>
    %215 = arith.mulf %155, %214 : vector<16x16xf32>
    %216 = arith.addf %212, %215 : vector<16x16xf32>
    %c59 = arith.constant 59 : index
    %217 = memref.load %arg2[%c59] : memref<288xf32, #tpu.memory_space<smem>>
    %218 = vector.broadcast %217 : f32 to vector<16x16xf32>
    %219 = arith.mulf %157, %218 : vector<16x16xf32>
    %220 = arith.addf %216, %219 : vector<16x16xf32>
    %221 = arith.addf %89, %220 : vector<16x16xf32>
    %c36 = arith.constant 36 : index
    %222 = memref.load %arg2[%c36] : memref<288xf32, #tpu.memory_space<smem>>
    %223 = vector.broadcast %222 : f32 to vector<16x16xf32>
    %224 = arith.mulf %151, %223 : vector<16x16xf32>
    %c44 = arith.constant 44 : index
    %225 = memref.load %arg2[%c44] : memref<288xf32, #tpu.memory_space<smem>>
    %226 = vector.broadcast %225 : f32 to vector<16x16xf32>
    %227 = arith.mulf %153, %226 : vector<16x16xf32>
    %228 = arith.addf %224, %227 : vector<16x16xf32>
    %c52 = arith.constant 52 : index
    %229 = memref.load %arg2[%c52] : memref<288xf32, #tpu.memory_space<smem>>
    %230 = vector.broadcast %229 : f32 to vector<16x16xf32>
    %231 = arith.mulf %155, %230 : vector<16x16xf32>
    %232 = arith.addf %228, %231 : vector<16x16xf32>
    %c60 = arith.constant 60 : index
    %233 = memref.load %arg2[%c60] : memref<288xf32, #tpu.memory_space<smem>>
    %234 = vector.broadcast %233 : f32 to vector<16x16xf32>
    %235 = arith.mulf %157, %234 : vector<16x16xf32>
    %236 = arith.addf %232, %235 : vector<16x16xf32>
    %237 = arith.addf %104, %236 : vector<16x16xf32>
    %c37 = arith.constant 37 : index
    %238 = memref.load %arg2[%c37] : memref<288xf32, #tpu.memory_space<smem>>
    %239 = vector.broadcast %238 : f32 to vector<16x16xf32>
    %240 = arith.mulf %151, %239 : vector<16x16xf32>
    %c45 = arith.constant 45 : index
    %241 = memref.load %arg2[%c45] : memref<288xf32, #tpu.memory_space<smem>>
    %242 = vector.broadcast %241 : f32 to vector<16x16xf32>
    %243 = arith.mulf %153, %242 : vector<16x16xf32>
    %244 = arith.addf %240, %243 : vector<16x16xf32>
    %c53 = arith.constant 53 : index
    %245 = memref.load %arg2[%c53] : memref<288xf32, #tpu.memory_space<smem>>
    %246 = vector.broadcast %245 : f32 to vector<16x16xf32>
    %247 = arith.mulf %155, %246 : vector<16x16xf32>
    %248 = arith.addf %244, %247 : vector<16x16xf32>
    %c61 = arith.constant 61 : index
    %249 = memref.load %arg2[%c61] : memref<288xf32, #tpu.memory_space<smem>>
    %250 = vector.broadcast %249 : f32 to vector<16x16xf32>
    %251 = arith.mulf %157, %250 : vector<16x16xf32>
    %252 = arith.addf %248, %251 : vector<16x16xf32>
    %253 = arith.addf %119, %252 : vector<16x16xf32>
    %c38 = arith.constant 38 : index
    %254 = memref.load %arg2[%c38] : memref<288xf32, #tpu.memory_space<smem>>
    %255 = vector.broadcast %254 : f32 to vector<16x16xf32>
    %256 = arith.mulf %151, %255 : vector<16x16xf32>
    %c46 = arith.constant 46 : index
    %257 = memref.load %arg2[%c46] : memref<288xf32, #tpu.memory_space<smem>>
    %258 = vector.broadcast %257 : f32 to vector<16x16xf32>
    %259 = arith.mulf %153, %258 : vector<16x16xf32>
    %260 = arith.addf %256, %259 : vector<16x16xf32>
    %c54 = arith.constant 54 : index
    %261 = memref.load %arg2[%c54] : memref<288xf32, #tpu.memory_space<smem>>
    %262 = vector.broadcast %261 : f32 to vector<16x16xf32>
    %263 = arith.mulf %155, %262 : vector<16x16xf32>
    %264 = arith.addf %260, %263 : vector<16x16xf32>
    %c62 = arith.constant 62 : index
    %265 = memref.load %arg2[%c62] : memref<288xf32, #tpu.memory_space<smem>>
    %266 = vector.broadcast %265 : f32 to vector<16x16xf32>
    %267 = arith.mulf %157, %266 : vector<16x16xf32>
    %268 = arith.addf %264, %267 : vector<16x16xf32>
    %269 = arith.addf %134, %268 : vector<16x16xf32>
    %c39 = arith.constant 39 : index
    %270 = memref.load %arg2[%c39] : memref<288xf32, #tpu.memory_space<smem>>
    %271 = vector.broadcast %270 : f32 to vector<16x16xf32>
    %272 = arith.mulf %151, %271 : vector<16x16xf32>
    %c47 = arith.constant 47 : index
    %273 = memref.load %arg2[%c47] : memref<288xf32, #tpu.memory_space<smem>>
    %274 = vector.broadcast %273 : f32 to vector<16x16xf32>
    %275 = arith.mulf %153, %274 : vector<16x16xf32>
    %276 = arith.addf %272, %275 : vector<16x16xf32>
    %c55 = arith.constant 55 : index
    %277 = memref.load %arg2[%c55] : memref<288xf32, #tpu.memory_space<smem>>
    %278 = vector.broadcast %277 : f32 to vector<16x16xf32>
    %279 = arith.mulf %155, %278 : vector<16x16xf32>
    %280 = arith.addf %276, %279 : vector<16x16xf32>
    %c63 = arith.constant 63 : index
    %281 = memref.load %arg2[%c63] : memref<288xf32, #tpu.memory_space<smem>>
    %282 = vector.broadcast %281 : f32 to vector<16x16xf32>
    %283 = arith.mulf %157, %282 : vector<16x16xf32>
    %284 = arith.addf %280, %283 : vector<16x16xf32>
    %285 = arith.addf %149, %284 : vector<16x16xf32>
    %c0_55 = arith.constant 0 : index
    %c0_56 = arith.constant 0 : index
    %c2_57 = arith.constant 2 : index
    %286 = vector.load %arg5[%c0_55, %c0_56, %c2_57] : memref<4x18x18xf32, #tpu.memory_space<vmem>>, vector<1x16x16xf32>
    %287 = vector.shape_cast %286 : vector<1x16x16xf32> to vector<16x16xf32>
    %c1_58 = arith.constant 1 : index
    %c0_59 = arith.constant 0 : index
    %c2_60 = arith.constant 2 : index
    %288 = vector.load %arg5[%c1_58, %c0_59, %c2_60] : memref<4x18x18xf32, #tpu.memory_space<vmem>>, vector<1x16x16xf32>
    %289 = vector.shape_cast %288 : vector<1x16x16xf32> to vector<16x16xf32>
    %c2_61 = arith.constant 2 : index
    %c0_62 = arith.constant 0 : index
    %c2_63 = arith.constant 2 : index
    %290 = vector.load %arg5[%c2_61, %c0_62, %c2_63] : memref<4x18x18xf32, #tpu.memory_space<vmem>>, vector<1x16x16xf32>
    %291 = vector.shape_cast %290 : vector<1x16x16xf32> to vector<16x16xf32>
    %c3_64 = arith.constant 3 : index
    %c0_65 = arith.constant 0 : index
    %c2_66 = arith.constant 2 : index
    %292 = vector.load %arg5[%c3_64, %c0_65, %c2_66] : memref<4x18x18xf32, #tpu.memory_space<vmem>>, vector<1x16x16xf32>
    %293 = vector.shape_cast %292 : vector<1x16x16xf32> to vector<16x16xf32>
    %c64 = arith.constant 64 : index
    %294 = memref.load %arg2[%c64] : memref<288xf32, #tpu.memory_space<smem>>
    %295 = vector.broadcast %294 : f32 to vector<16x16xf32>
    %296 = arith.mulf %287, %295 : vector<16x16xf32>
    %c72 = arith.constant 72 : index
    %297 = memref.load %arg2[%c72] : memref<288xf32, #tpu.memory_space<smem>>
    %298 = vector.broadcast %297 : f32 to vector<16x16xf32>
    %299 = arith.mulf %289, %298 : vector<16x16xf32>
    %300 = arith.addf %296, %299 : vector<16x16xf32>
    %c80 = arith.constant 80 : index
    %301 = memref.load %arg2[%c80] : memref<288xf32, #tpu.memory_space<smem>>
    %302 = vector.broadcast %301 : f32 to vector<16x16xf32>
    %303 = arith.mulf %291, %302 : vector<16x16xf32>
    %304 = arith.addf %300, %303 : vector<16x16xf32>
    %c88 = arith.constant 88 : index
    %305 = memref.load %arg2[%c88] : memref<288xf32, #tpu.memory_space<smem>>
    %306 = vector.broadcast %305 : f32 to vector<16x16xf32>
    %307 = arith.mulf %293, %306 : vector<16x16xf32>
    %308 = arith.addf %304, %307 : vector<16x16xf32>
    %309 = arith.addf %173, %308 : vector<16x16xf32>
    %c65 = arith.constant 65 : index
    %310 = memref.load %arg2[%c65] : memref<288xf32, #tpu.memory_space<smem>>
    %311 = vector.broadcast %310 : f32 to vector<16x16xf32>
    %312 = arith.mulf %287, %311 : vector<16x16xf32>
    %c73 = arith.constant 73 : index
    %313 = memref.load %arg2[%c73] : memref<288xf32, #tpu.memory_space<smem>>
    %314 = vector.broadcast %313 : f32 to vector<16x16xf32>
    %315 = arith.mulf %289, %314 : vector<16x16xf32>
    %316 = arith.addf %312, %315 : vector<16x16xf32>
    %c81 = arith.constant 81 : index
    %317 = memref.load %arg2[%c81] : memref<288xf32, #tpu.memory_space<smem>>
    %318 = vector.broadcast %317 : f32 to vector<16x16xf32>
    %319 = arith.mulf %291, %318 : vector<16x16xf32>
    %320 = arith.addf %316, %319 : vector<16x16xf32>
    %c89 = arith.constant 89 : index
    %321 = memref.load %arg2[%c89] : memref<288xf32, #tpu.memory_space<smem>>
    %322 = vector.broadcast %321 : f32 to vector<16x16xf32>
    %323 = arith.mulf %293, %322 : vector<16x16xf32>
    %324 = arith.addf %320, %323 : vector<16x16xf32>
    %325 = arith.addf %189, %324 : vector<16x16xf32>
    %c66 = arith.constant 66 : index
    %326 = memref.load %arg2[%c66] : memref<288xf32, #tpu.memory_space<smem>>
    %327 = vector.broadcast %326 : f32 to vector<16x16xf32>
    %328 = arith.mulf %287, %327 : vector<16x16xf32>
    %c74 = arith.constant 74 : index
    %329 = memref.load %arg2[%c74] : memref<288xf32, #tpu.memory_space<smem>>
    %330 = vector.broadcast %329 : f32 to vector<16x16xf32>
    %331 = arith.mulf %289, %330 : vector<16x16xf32>
    %332 = arith.addf %328, %331 : vector<16x16xf32>
    %c82 = arith.constant 82 : index
    %333 = memref.load %arg2[%c82] : memref<288xf32, #tpu.memory_space<smem>>
    %334 = vector.broadcast %333 : f32 to vector<16x16xf32>
    %335 = arith.mulf %291, %334 : vector<16x16xf32>
    %336 = arith.addf %332, %335 : vector<16x16xf32>
    %c90 = arith.constant 90 : index
    %337 = memref.load %arg2[%c90] : memref<288xf32, #tpu.memory_space<smem>>
    %338 = vector.broadcast %337 : f32 to vector<16x16xf32>
    %339 = arith.mulf %293, %338 : vector<16x16xf32>
    %340 = arith.addf %336, %339 : vector<16x16xf32>
    %341 = arith.addf %205, %340 : vector<16x16xf32>
    %c67 = arith.constant 67 : index
    %342 = memref.load %arg2[%c67] : memref<288xf32, #tpu.memory_space<smem>>
    %343 = vector.broadcast %342 : f32 to vector<16x16xf32>
    %344 = arith.mulf %287, %343 : vector<16x16xf32>
    %c75 = arith.constant 75 : index
    %345 = memref.load %arg2[%c75] : memref<288xf32, #tpu.memory_space<smem>>
    %346 = vector.broadcast %345 : f32 to vector<16x16xf32>
    %347 = arith.mulf %289, %346 : vector<16x16xf32>
    %348 = arith.addf %344, %347 : vector<16x16xf32>
    %c83 = arith.constant 83 : index
    %349 = memref.load %arg2[%c83] : memref<288xf32, #tpu.memory_space<smem>>
    %350 = vector.broadcast %349 : f32 to vector<16x16xf32>
    %351 = arith.mulf %291, %350 : vector<16x16xf32>
    %352 = arith.addf %348, %351 : vector<16x16xf32>
    %c91 = arith.constant 91 : index
    %353 = memref.load %arg2[%c91] : memref<288xf32, #tpu.memory_space<smem>>
    %354 = vector.broadcast %353 : f32 to vector<16x16xf32>
    %355 = arith.mulf %293, %354 : vector<16x16xf32>
    %356 = arith.addf %352, %355 : vector<16x16xf32>
    %357 = arith.addf %221, %356 : vector<16x16xf32>
    %c68 = arith.constant 68 : index
    %358 = memref.load %arg2[%c68] : memref<288xf32, #tpu.memory_space<smem>>
    %359 = vector.broadcast %358 : f32 to vector<16x16xf32>
    %360 = arith.mulf %287, %359 : vector<16x16xf32>
    %c76 = arith.constant 76 : index
    %361 = memref.load %arg2[%c76] : memref<288xf32, #tpu.memory_space<smem>>
    %362 = vector.broadcast %361 : f32 to vector<16x16xf32>
    %363 = arith.mulf %289, %362 : vector<16x16xf32>
    %364 = arith.addf %360, %363 : vector<16x16xf32>
    %c84 = arith.constant 84 : index
    %365 = memref.load %arg2[%c84] : memref<288xf32, #tpu.memory_space<smem>>
    %366 = vector.broadcast %365 : f32 to vector<16x16xf32>
    %367 = arith.mulf %291, %366 : vector<16x16xf32>
    %368 = arith.addf %364, %367 : vector<16x16xf32>
    %c92 = arith.constant 92 : index
    %369 = memref.load %arg2[%c92] : memref<288xf32, #tpu.memory_space<smem>>
    %370 = vector.broadcast %369 : f32 to vector<16x16xf32>
    %371 = arith.mulf %293, %370 : vector<16x16xf32>
    %372 = arith.addf %368, %371 : vector<16x16xf32>
    %373 = arith.addf %237, %372 : vector<16x16xf32>
    %c69 = arith.constant 69 : index
    %374 = memref.load %arg2[%c69] : memref<288xf32, #tpu.memory_space<smem>>
    %375 = vector.broadcast %374 : f32 to vector<16x16xf32>
    %376 = arith.mulf %287, %375 : vector<16x16xf32>
    %c77 = arith.constant 77 : index
    %377 = memref.load %arg2[%c77] : memref<288xf32, #tpu.memory_space<smem>>
    %378 = vector.broadcast %377 : f32 to vector<16x16xf32>
    %379 = arith.mulf %289, %378 : vector<16x16xf32>
    %380 = arith.addf %376, %379 : vector<16x16xf32>
    %c85 = arith.constant 85 : index
    %381 = memref.load %arg2[%c85] : memref<288xf32, #tpu.memory_space<smem>>
    %382 = vector.broadcast %381 : f32 to vector<16x16xf32>
    %383 = arith.mulf %291, %382 : vector<16x16xf32>
    %384 = arith.addf %380, %383 : vector<16x16xf32>
    %c93 = arith.constant 93 : index
    %385 = memref.load %arg2[%c93] : memref<288xf32, #tpu.memory_space<smem>>
    %386 = vector.broadcast %385 : f32 to vector<16x16xf32>
    %387 = arith.mulf %293, %386 : vector<16x16xf32>
    %388 = arith.addf %384, %387 : vector<16x16xf32>
    %389 = arith.addf %253, %388 : vector<16x16xf32>
    %c70 = arith.constant 70 : index
    %390 = memref.load %arg2[%c70] : memref<288xf32, #tpu.memory_space<smem>>
    %391 = vector.broadcast %390 : f32 to vector<16x16xf32>
    %392 = arith.mulf %287, %391 : vector<16x16xf32>
    %c78 = arith.constant 78 : index
    %393 = memref.load %arg2[%c78] : memref<288xf32, #tpu.memory_space<smem>>
    %394 = vector.broadcast %393 : f32 to vector<16x16xf32>
    %395 = arith.mulf %289, %394 : vector<16x16xf32>
    %396 = arith.addf %392, %395 : vector<16x16xf32>
    %c86 = arith.constant 86 : index
    %397 = memref.load %arg2[%c86] : memref<288xf32, #tpu.memory_space<smem>>
    %398 = vector.broadcast %397 : f32 to vector<16x16xf32>
    %399 = arith.mulf %291, %398 : vector<16x16xf32>
    %400 = arith.addf %396, %399 : vector<16x16xf32>
    %c94 = arith.constant 94 : index
    %401 = memref.load %arg2[%c94] : memref<288xf32, #tpu.memory_space<smem>>
    %402 = vector.broadcast %401 : f32 to vector<16x16xf32>
    %403 = arith.mulf %293, %402 : vector<16x16xf32>
    %404 = arith.addf %400, %403 : vector<16x16xf32>
    %405 = arith.addf %269, %404 : vector<16x16xf32>
    %c71 = arith.constant 71 : index
    %406 = memref.load %arg2[%c71] : memref<288xf32, #tpu.memory_space<smem>>
    %407 = vector.broadcast %406 : f32 to vector<16x16xf32>
    %408 = arith.mulf %287, %407 : vector<16x16xf32>
    %c79 = arith.constant 79 : index
    %409 = memref.load %arg2[%c79] : memref<288xf32, #tpu.memory_space<smem>>
    %410 = vector.broadcast %409 : f32 to vector<16x16xf32>
    %411 = arith.mulf %289, %410 : vector<16x16xf32>
    %412 = arith.addf %408, %411 : vector<16x16xf32>
    %c87 = arith.constant 87 : index
    %413 = memref.load %arg2[%c87] : memref<288xf32, #tpu.memory_space<smem>>
    %414 = vector.broadcast %413 : f32 to vector<16x16xf32>
    %415 = arith.mulf %291, %414 : vector<16x16xf32>
    %416 = arith.addf %412, %415 : vector<16x16xf32>
    %c95 = arith.constant 95 : index
    %417 = memref.load %arg2[%c95] : memref<288xf32, #tpu.memory_space<smem>>
    %418 = vector.broadcast %417 : f32 to vector<16x16xf32>
    %419 = arith.mulf %293, %418 : vector<16x16xf32>
    %420 = arith.addf %416, %419 : vector<16x16xf32>
    %421 = arith.addf %285, %420 : vector<16x16xf32>
    %c0_67 = arith.constant 0 : index
    %c1_68 = arith.constant 1 : index
    %c0_69 = arith.constant 0 : index
    %422 = vector.load %arg5[%c0_67, %c1_68, %c0_69] : memref<4x18x18xf32, #tpu.memory_space<vmem>>, vector<1x16x16xf32>
    %423 = vector.shape_cast %422 : vector<1x16x16xf32> to vector<16x16xf32>
    %c1_70 = arith.constant 1 : index
    %c1_71 = arith.constant 1 : index
    %c0_72 = arith.constant 0 : index
    %424 = vector.load %arg5[%c1_70, %c1_71, %c0_72] : memref<4x18x18xf32, #tpu.memory_space<vmem>>, vector<1x16x16xf32>
    %425 = vector.shape_cast %424 : vector<1x16x16xf32> to vector<16x16xf32>
    %c2_73 = arith.constant 2 : index
    %c1_74 = arith.constant 1 : index
    %c0_75 = arith.constant 0 : index
    %426 = vector.load %arg5[%c2_73, %c1_74, %c0_75] : memref<4x18x18xf32, #tpu.memory_space<vmem>>, vector<1x16x16xf32>
    %427 = vector.shape_cast %426 : vector<1x16x16xf32> to vector<16x16xf32>
    %c3_76 = arith.constant 3 : index
    %c1_77 = arith.constant 1 : index
    %c0_78 = arith.constant 0 : index
    %428 = vector.load %arg5[%c3_76, %c1_77, %c0_78] : memref<4x18x18xf32, #tpu.memory_space<vmem>>, vector<1x16x16xf32>
    %429 = vector.shape_cast %428 : vector<1x16x16xf32> to vector<16x16xf32>
    %c96 = arith.constant 96 : index
    %430 = memref.load %arg2[%c96] : memref<288xf32, #tpu.memory_space<smem>>
    %431 = vector.broadcast %430 : f32 to vector<16x16xf32>
    %432 = arith.mulf %423, %431 : vector<16x16xf32>
    %c104 = arith.constant 104 : index
    %433 = memref.load %arg2[%c104] : memref<288xf32, #tpu.memory_space<smem>>
    %434 = vector.broadcast %433 : f32 to vector<16x16xf32>
    %435 = arith.mulf %425, %434 : vector<16x16xf32>
    %436 = arith.addf %432, %435 : vector<16x16xf32>
    %c112 = arith.constant 112 : index
    %437 = memref.load %arg2[%c112] : memref<288xf32, #tpu.memory_space<smem>>
    %438 = vector.broadcast %437 : f32 to vector<16x16xf32>
    %439 = arith.mulf %427, %438 : vector<16x16xf32>
    %440 = arith.addf %436, %439 : vector<16x16xf32>
    %c120 = arith.constant 120 : index
    %441 = memref.load %arg2[%c120] : memref<288xf32, #tpu.memory_space<smem>>
    %442 = vector.broadcast %441 : f32 to vector<16x16xf32>
    %443 = arith.mulf %429, %442 : vector<16x16xf32>
    %444 = arith.addf %440, %443 : vector<16x16xf32>
    %445 = arith.addf %309, %444 : vector<16x16xf32>
    %c97 = arith.constant 97 : index
    %446 = memref.load %arg2[%c97] : memref<288xf32, #tpu.memory_space<smem>>
    %447 = vector.broadcast %446 : f32 to vector<16x16xf32>
    %448 = arith.mulf %423, %447 : vector<16x16xf32>
    %c105 = arith.constant 105 : index
    %449 = memref.load %arg2[%c105] : memref<288xf32, #tpu.memory_space<smem>>
    %450 = vector.broadcast %449 : f32 to vector<16x16xf32>
    %451 = arith.mulf %425, %450 : vector<16x16xf32>
    %452 = arith.addf %448, %451 : vector<16x16xf32>
    %c113 = arith.constant 113 : index
    %453 = memref.load %arg2[%c113] : memref<288xf32, #tpu.memory_space<smem>>
    %454 = vector.broadcast %453 : f32 to vector<16x16xf32>
    %455 = arith.mulf %427, %454 : vector<16x16xf32>
    %456 = arith.addf %452, %455 : vector<16x16xf32>
    %c121 = arith.constant 121 : index
    %457 = memref.load %arg2[%c121] : memref<288xf32, #tpu.memory_space<smem>>
    %458 = vector.broadcast %457 : f32 to vector<16x16xf32>
    %459 = arith.mulf %429, %458 : vector<16x16xf32>
    %460 = arith.addf %456, %459 : vector<16x16xf32>
    %461 = arith.addf %325, %460 : vector<16x16xf32>
    %c98 = arith.constant 98 : index
    %462 = memref.load %arg2[%c98] : memref<288xf32, #tpu.memory_space<smem>>
    %463 = vector.broadcast %462 : f32 to vector<16x16xf32>
    %464 = arith.mulf %423, %463 : vector<16x16xf32>
    %c106 = arith.constant 106 : index
    %465 = memref.load %arg2[%c106] : memref<288xf32, #tpu.memory_space<smem>>
    %466 = vector.broadcast %465 : f32 to vector<16x16xf32>
    %467 = arith.mulf %425, %466 : vector<16x16xf32>
    %468 = arith.addf %464, %467 : vector<16x16xf32>
    %c114 = arith.constant 114 : index
    %469 = memref.load %arg2[%c114] : memref<288xf32, #tpu.memory_space<smem>>
    %470 = vector.broadcast %469 : f32 to vector<16x16xf32>
    %471 = arith.mulf %427, %470 : vector<16x16xf32>
    %472 = arith.addf %468, %471 : vector<16x16xf32>
    %c122 = arith.constant 122 : index
    %473 = memref.load %arg2[%c122] : memref<288xf32, #tpu.memory_space<smem>>
    %474 = vector.broadcast %473 : f32 to vector<16x16xf32>
    %475 = arith.mulf %429, %474 : vector<16x16xf32>
    %476 = arith.addf %472, %475 : vector<16x16xf32>
    %477 = arith.addf %341, %476 : vector<16x16xf32>
    %c99 = arith.constant 99 : index
    %478 = memref.load %arg2[%c99] : memref<288xf32, #tpu.memory_space<smem>>
    %479 = vector.broadcast %478 : f32 to vector<16x16xf32>
    %480 = arith.mulf %423, %479 : vector<16x16xf32>
    %c107 = arith.constant 107 : index
    %481 = memref.load %arg2[%c107] : memref<288xf32, #tpu.memory_space<smem>>
    %482 = vector.broadcast %481 : f32 to vector<16x16xf32>
    %483 = arith.mulf %425, %482 : vector<16x16xf32>
    %484 = arith.addf %480, %483 : vector<16x16xf32>
    %c115 = arith.constant 115 : index
    %485 = memref.load %arg2[%c115] : memref<288xf32, #tpu.memory_space<smem>>
    %486 = vector.broadcast %485 : f32 to vector<16x16xf32>
    %487 = arith.mulf %427, %486 : vector<16x16xf32>
    %488 = arith.addf %484, %487 : vector<16x16xf32>
    %c123 = arith.constant 123 : index
    %489 = memref.load %arg2[%c123] : memref<288xf32, #tpu.memory_space<smem>>
    %490 = vector.broadcast %489 : f32 to vector<16x16xf32>
    %491 = arith.mulf %429, %490 : vector<16x16xf32>
    %492 = arith.addf %488, %491 : vector<16x16xf32>
    %493 = arith.addf %357, %492 : vector<16x16xf32>
    %c100 = arith.constant 100 : index
    %494 = memref.load %arg2[%c100] : memref<288xf32, #tpu.memory_space<smem>>
    %495 = vector.broadcast %494 : f32 to vector<16x16xf32>
    %496 = arith.mulf %423, %495 : vector<16x16xf32>
    %c108 = arith.constant 108 : index
    %497 = memref.load %arg2[%c108] : memref<288xf32, #tpu.memory_space<smem>>
    %498 = vector.broadcast %497 : f32 to vector<16x16xf32>
    %499 = arith.mulf %425, %498 : vector<16x16xf32>
    %500 = arith.addf %496, %499 : vector<16x16xf32>
    %c116 = arith.constant 116 : index
    %501 = memref.load %arg2[%c116] : memref<288xf32, #tpu.memory_space<smem>>
    %502 = vector.broadcast %501 : f32 to vector<16x16xf32>
    %503 = arith.mulf %427, %502 : vector<16x16xf32>
    %504 = arith.addf %500, %503 : vector<16x16xf32>
    %c124 = arith.constant 124 : index
    %505 = memref.load %arg2[%c124] : memref<288xf32, #tpu.memory_space<smem>>
    %506 = vector.broadcast %505 : f32 to vector<16x16xf32>
    %507 = arith.mulf %429, %506 : vector<16x16xf32>
    %508 = arith.addf %504, %507 : vector<16x16xf32>
    %509 = arith.addf %373, %508 : vector<16x16xf32>
    %c101 = arith.constant 101 : index
    %510 = memref.load %arg2[%c101] : memref<288xf32, #tpu.memory_space<smem>>
    %511 = vector.broadcast %510 : f32 to vector<16x16xf32>
    %512 = arith.mulf %423, %511 : vector<16x16xf32>
    %c109 = arith.constant 109 : index
    %513 = memref.load %arg2[%c109] : memref<288xf32, #tpu.memory_space<smem>>
    %514 = vector.broadcast %513 : f32 to vector<16x16xf32>
    %515 = arith.mulf %425, %514 : vector<16x16xf32>
    %516 = arith.addf %512, %515 : vector<16x16xf32>
    %c117 = arith.constant 117 : index
    %517 = memref.load %arg2[%c117] : memref<288xf32, #tpu.memory_space<smem>>
    %518 = vector.broadcast %517 : f32 to vector<16x16xf32>
    %519 = arith.mulf %427, %518 : vector<16x16xf32>
    %520 = arith.addf %516, %519 : vector<16x16xf32>
    %c125 = arith.constant 125 : index
    %521 = memref.load %arg2[%c125] : memref<288xf32, #tpu.memory_space<smem>>
    %522 = vector.broadcast %521 : f32 to vector<16x16xf32>
    %523 = arith.mulf %429, %522 : vector<16x16xf32>
    %524 = arith.addf %520, %523 : vector<16x16xf32>
    %525 = arith.addf %389, %524 : vector<16x16xf32>
    %c102 = arith.constant 102 : index
    %526 = memref.load %arg2[%c102] : memref<288xf32, #tpu.memory_space<smem>>
    %527 = vector.broadcast %526 : f32 to vector<16x16xf32>
    %528 = arith.mulf %423, %527 : vector<16x16xf32>
    %c110 = arith.constant 110 : index
    %529 = memref.load %arg2[%c110] : memref<288xf32, #tpu.memory_space<smem>>
    %530 = vector.broadcast %529 : f32 to vector<16x16xf32>
    %531 = arith.mulf %425, %530 : vector<16x16xf32>
    %532 = arith.addf %528, %531 : vector<16x16xf32>
    %c118 = arith.constant 118 : index
    %533 = memref.load %arg2[%c118] : memref<288xf32, #tpu.memory_space<smem>>
    %534 = vector.broadcast %533 : f32 to vector<16x16xf32>
    %535 = arith.mulf %427, %534 : vector<16x16xf32>
    %536 = arith.addf %532, %535 : vector<16x16xf32>
    %c126 = arith.constant 126 : index
    %537 = memref.load %arg2[%c126] : memref<288xf32, #tpu.memory_space<smem>>
    %538 = vector.broadcast %537 : f32 to vector<16x16xf32>
    %539 = arith.mulf %429, %538 : vector<16x16xf32>
    %540 = arith.addf %536, %539 : vector<16x16xf32>
    %541 = arith.addf %405, %540 : vector<16x16xf32>
    %c103 = arith.constant 103 : index
    %542 = memref.load %arg2[%c103] : memref<288xf32, #tpu.memory_space<smem>>
    %543 = vector.broadcast %542 : f32 to vector<16x16xf32>
    %544 = arith.mulf %423, %543 : vector<16x16xf32>
    %c111 = arith.constant 111 : index
    %545 = memref.load %arg2[%c111] : memref<288xf32, #tpu.memory_space<smem>>
    %546 = vector.broadcast %545 : f32 to vector<16x16xf32>
    %547 = arith.mulf %425, %546 : vector<16x16xf32>
    %548 = arith.addf %544, %547 : vector<16x16xf32>
    %c119 = arith.constant 119 : index
    %549 = memref.load %arg2[%c119] : memref<288xf32, #tpu.memory_space<smem>>
    %550 = vector.broadcast %549 : f32 to vector<16x16xf32>
    %551 = arith.mulf %427, %550 : vector<16x16xf32>
    %552 = arith.addf %548, %551 : vector<16x16xf32>
    %c127 = arith.constant 127 : index
    %553 = memref.load %arg2[%c127] : memref<288xf32, #tpu.memory_space<smem>>
    %554 = vector.broadcast %553 : f32 to vector<16x16xf32>
    %555 = arith.mulf %429, %554 : vector<16x16xf32>
    %556 = arith.addf %552, %555 : vector<16x16xf32>
    %557 = arith.addf %421, %556 : vector<16x16xf32>
    %c0_79 = arith.constant 0 : index
    %c1_80 = arith.constant 1 : index
    %c1_81 = arith.constant 1 : index
    %558 = vector.load %arg5[%c0_79, %c1_80, %c1_81] : memref<4x18x18xf32, #tpu.memory_space<vmem>>, vector<1x16x16xf32>
    %559 = vector.shape_cast %558 : vector<1x16x16xf32> to vector<16x16xf32>
    %c1_82 = arith.constant 1 : index
    %c1_83 = arith.constant 1 : index
    %c1_84 = arith.constant 1 : index
    %560 = vector.load %arg5[%c1_82, %c1_83, %c1_84] : memref<4x18x18xf32, #tpu.memory_space<vmem>>, vector<1x16x16xf32>
    %561 = vector.shape_cast %560 : vector<1x16x16xf32> to vector<16x16xf32>
    %c2_85 = arith.constant 2 : index
    %c1_86 = arith.constant 1 : index
    %c1_87 = arith.constant 1 : index
    %562 = vector.load %arg5[%c2_85, %c1_86, %c1_87] : memref<4x18x18xf32, #tpu.memory_space<vmem>>, vector<1x16x16xf32>
    %563 = vector.shape_cast %562 : vector<1x16x16xf32> to vector<16x16xf32>
    %c3_88 = arith.constant 3 : index
    %c1_89 = arith.constant 1 : index
    %c1_90 = arith.constant 1 : index
    %564 = vector.load %arg5[%c3_88, %c1_89, %c1_90] : memref<4x18x18xf32, #tpu.memory_space<vmem>>, vector<1x16x16xf32>
    %565 = vector.shape_cast %564 : vector<1x16x16xf32> to vector<16x16xf32>
    %c128 = arith.constant 128 : index
    %566 = memref.load %arg2[%c128] : memref<288xf32, #tpu.memory_space<smem>>
    %567 = vector.broadcast %566 : f32 to vector<16x16xf32>
    %568 = arith.mulf %559, %567 : vector<16x16xf32>
    %c136 = arith.constant 136 : index
    %569 = memref.load %arg2[%c136] : memref<288xf32, #tpu.memory_space<smem>>
    %570 = vector.broadcast %569 : f32 to vector<16x16xf32>
    %571 = arith.mulf %561, %570 : vector<16x16xf32>
    %572 = arith.addf %568, %571 : vector<16x16xf32>
    %c144 = arith.constant 144 : index
    %573 = memref.load %arg2[%c144] : memref<288xf32, #tpu.memory_space<smem>>
    %574 = vector.broadcast %573 : f32 to vector<16x16xf32>
    %575 = arith.mulf %563, %574 : vector<16x16xf32>
    %576 = arith.addf %572, %575 : vector<16x16xf32>
    %c152 = arith.constant 152 : index
    %577 = memref.load %arg2[%c152] : memref<288xf32, #tpu.memory_space<smem>>
    %578 = vector.broadcast %577 : f32 to vector<16x16xf32>
    %579 = arith.mulf %565, %578 : vector<16x16xf32>
    %580 = arith.addf %576, %579 : vector<16x16xf32>
    %581 = arith.addf %445, %580 : vector<16x16xf32>
    %c129 = arith.constant 129 : index
    %582 = memref.load %arg2[%c129] : memref<288xf32, #tpu.memory_space<smem>>
    %583 = vector.broadcast %582 : f32 to vector<16x16xf32>
    %584 = arith.mulf %559, %583 : vector<16x16xf32>
    %c137 = arith.constant 137 : index
    %585 = memref.load %arg2[%c137] : memref<288xf32, #tpu.memory_space<smem>>
    %586 = vector.broadcast %585 : f32 to vector<16x16xf32>
    %587 = arith.mulf %561, %586 : vector<16x16xf32>
    %588 = arith.addf %584, %587 : vector<16x16xf32>
    %c145 = arith.constant 145 : index
    %589 = memref.load %arg2[%c145] : memref<288xf32, #tpu.memory_space<smem>>
    %590 = vector.broadcast %589 : f32 to vector<16x16xf32>
    %591 = arith.mulf %563, %590 : vector<16x16xf32>
    %592 = arith.addf %588, %591 : vector<16x16xf32>
    %c153 = arith.constant 153 : index
    %593 = memref.load %arg2[%c153] : memref<288xf32, #tpu.memory_space<smem>>
    %594 = vector.broadcast %593 : f32 to vector<16x16xf32>
    %595 = arith.mulf %565, %594 : vector<16x16xf32>
    %596 = arith.addf %592, %595 : vector<16x16xf32>
    %597 = arith.addf %461, %596 : vector<16x16xf32>
    %c130 = arith.constant 130 : index
    %598 = memref.load %arg2[%c130] : memref<288xf32, #tpu.memory_space<smem>>
    %599 = vector.broadcast %598 : f32 to vector<16x16xf32>
    %600 = arith.mulf %559, %599 : vector<16x16xf32>
    %c138 = arith.constant 138 : index
    %601 = memref.load %arg2[%c138] : memref<288xf32, #tpu.memory_space<smem>>
    %602 = vector.broadcast %601 : f32 to vector<16x16xf32>
    %603 = arith.mulf %561, %602 : vector<16x16xf32>
    %604 = arith.addf %600, %603 : vector<16x16xf32>
    %c146 = arith.constant 146 : index
    %605 = memref.load %arg2[%c146] : memref<288xf32, #tpu.memory_space<smem>>
    %606 = vector.broadcast %605 : f32 to vector<16x16xf32>
    %607 = arith.mulf %563, %606 : vector<16x16xf32>
    %608 = arith.addf %604, %607 : vector<16x16xf32>
    %c154 = arith.constant 154 : index
    %609 = memref.load %arg2[%c154] : memref<288xf32, #tpu.memory_space<smem>>
    %610 = vector.broadcast %609 : f32 to vector<16x16xf32>
    %611 = arith.mulf %565, %610 : vector<16x16xf32>
    %612 = arith.addf %608, %611 : vector<16x16xf32>
    %613 = arith.addf %477, %612 : vector<16x16xf32>
    %c131 = arith.constant 131 : index
    %614 = memref.load %arg2[%c131] : memref<288xf32, #tpu.memory_space<smem>>
    %615 = vector.broadcast %614 : f32 to vector<16x16xf32>
    %616 = arith.mulf %559, %615 : vector<16x16xf32>
    %c139 = arith.constant 139 : index
    %617 = memref.load %arg2[%c139] : memref<288xf32, #tpu.memory_space<smem>>
    %618 = vector.broadcast %617 : f32 to vector<16x16xf32>
    %619 = arith.mulf %561, %618 : vector<16x16xf32>
    %620 = arith.addf %616, %619 : vector<16x16xf32>
    %c147 = arith.constant 147 : index
    %621 = memref.load %arg2[%c147] : memref<288xf32, #tpu.memory_space<smem>>
    %622 = vector.broadcast %621 : f32 to vector<16x16xf32>
    %623 = arith.mulf %563, %622 : vector<16x16xf32>
    %624 = arith.addf %620, %623 : vector<16x16xf32>
    %c155 = arith.constant 155 : index
    %625 = memref.load %arg2[%c155] : memref<288xf32, #tpu.memory_space<smem>>
    %626 = vector.broadcast %625 : f32 to vector<16x16xf32>
    %627 = arith.mulf %565, %626 : vector<16x16xf32>
    %628 = arith.addf %624, %627 : vector<16x16xf32>
    %629 = arith.addf %493, %628 : vector<16x16xf32>
    %c132 = arith.constant 132 : index
    %630 = memref.load %arg2[%c132] : memref<288xf32, #tpu.memory_space<smem>>
    %631 = vector.broadcast %630 : f32 to vector<16x16xf32>
    %632 = arith.mulf %559, %631 : vector<16x16xf32>
    %c140 = arith.constant 140 : index
    %633 = memref.load %arg2[%c140] : memref<288xf32, #tpu.memory_space<smem>>
    %634 = vector.broadcast %633 : f32 to vector<16x16xf32>
    %635 = arith.mulf %561, %634 : vector<16x16xf32>
    %636 = arith.addf %632, %635 : vector<16x16xf32>
    %c148 = arith.constant 148 : index
    %637 = memref.load %arg2[%c148] : memref<288xf32, #tpu.memory_space<smem>>
    %638 = vector.broadcast %637 : f32 to vector<16x16xf32>
    %639 = arith.mulf %563, %638 : vector<16x16xf32>
    %640 = arith.addf %636, %639 : vector<16x16xf32>
    %c156 = arith.constant 156 : index
    %641 = memref.load %arg2[%c156] : memref<288xf32, #tpu.memory_space<smem>>
    %642 = vector.broadcast %641 : f32 to vector<16x16xf32>
    %643 = arith.mulf %565, %642 : vector<16x16xf32>
    %644 = arith.addf %640, %643 : vector<16x16xf32>
    %645 = arith.addf %509, %644 : vector<16x16xf32>
    %c133 = arith.constant 133 : index
    %646 = memref.load %arg2[%c133] : memref<288xf32, #tpu.memory_space<smem>>
    %647 = vector.broadcast %646 : f32 to vector<16x16xf32>
    %648 = arith.mulf %559, %647 : vector<16x16xf32>
    %c141 = arith.constant 141 : index
    %649 = memref.load %arg2[%c141] : memref<288xf32, #tpu.memory_space<smem>>
    %650 = vector.broadcast %649 : f32 to vector<16x16xf32>
    %651 = arith.mulf %561, %650 : vector<16x16xf32>
    %652 = arith.addf %648, %651 : vector<16x16xf32>
    %c149 = arith.constant 149 : index
    %653 = memref.load %arg2[%c149] : memref<288xf32, #tpu.memory_space<smem>>
    %654 = vector.broadcast %653 : f32 to vector<16x16xf32>
    %655 = arith.mulf %563, %654 : vector<16x16xf32>
    %656 = arith.addf %652, %655 : vector<16x16xf32>
    %c157 = arith.constant 157 : index
    %657 = memref.load %arg2[%c157] : memref<288xf32, #tpu.memory_space<smem>>
    %658 = vector.broadcast %657 : f32 to vector<16x16xf32>
    %659 = arith.mulf %565, %658 : vector<16x16xf32>
    %660 = arith.addf %656, %659 : vector<16x16xf32>
    %661 = arith.addf %525, %660 : vector<16x16xf32>
    %c134 = arith.constant 134 : index
    %662 = memref.load %arg2[%c134] : memref<288xf32, #tpu.memory_space<smem>>
    %663 = vector.broadcast %662 : f32 to vector<16x16xf32>
    %664 = arith.mulf %559, %663 : vector<16x16xf32>
    %c142 = arith.constant 142 : index
    %665 = memref.load %arg2[%c142] : memref<288xf32, #tpu.memory_space<smem>>
    %666 = vector.broadcast %665 : f32 to vector<16x16xf32>
    %667 = arith.mulf %561, %666 : vector<16x16xf32>
    %668 = arith.addf %664, %667 : vector<16x16xf32>
    %c150 = arith.constant 150 : index
    %669 = memref.load %arg2[%c150] : memref<288xf32, #tpu.memory_space<smem>>
    %670 = vector.broadcast %669 : f32 to vector<16x16xf32>
    %671 = arith.mulf %563, %670 : vector<16x16xf32>
    %672 = arith.addf %668, %671 : vector<16x16xf32>
    %c158 = arith.constant 158 : index
    %673 = memref.load %arg2[%c158] : memref<288xf32, #tpu.memory_space<smem>>
    %674 = vector.broadcast %673 : f32 to vector<16x16xf32>
    %675 = arith.mulf %565, %674 : vector<16x16xf32>
    %676 = arith.addf %672, %675 : vector<16x16xf32>
    %677 = arith.addf %541, %676 : vector<16x16xf32>
    %c135 = arith.constant 135 : index
    %678 = memref.load %arg2[%c135] : memref<288xf32, #tpu.memory_space<smem>>
    %679 = vector.broadcast %678 : f32 to vector<16x16xf32>
    %680 = arith.mulf %559, %679 : vector<16x16xf32>
    %c143 = arith.constant 143 : index
    %681 = memref.load %arg2[%c143] : memref<288xf32, #tpu.memory_space<smem>>
    %682 = vector.broadcast %681 : f32 to vector<16x16xf32>
    %683 = arith.mulf %561, %682 : vector<16x16xf32>
    %684 = arith.addf %680, %683 : vector<16x16xf32>
    %c151 = arith.constant 151 : index
    %685 = memref.load %arg2[%c151] : memref<288xf32, #tpu.memory_space<smem>>
    %686 = vector.broadcast %685 : f32 to vector<16x16xf32>
    %687 = arith.mulf %563, %686 : vector<16x16xf32>
    %688 = arith.addf %684, %687 : vector<16x16xf32>
    %c159 = arith.constant 159 : index
    %689 = memref.load %arg2[%c159] : memref<288xf32, #tpu.memory_space<smem>>
    %690 = vector.broadcast %689 : f32 to vector<16x16xf32>
    %691 = arith.mulf %565, %690 : vector<16x16xf32>
    %692 = arith.addf %688, %691 : vector<16x16xf32>
    %693 = arith.addf %557, %692 : vector<16x16xf32>
    %c0_91 = arith.constant 0 : index
    %c1_92 = arith.constant 1 : index
    %c2_93 = arith.constant 2 : index
    %694 = vector.load %arg5[%c0_91, %c1_92, %c2_93] : memref<4x18x18xf32, #tpu.memory_space<vmem>>, vector<1x16x16xf32>
    %695 = vector.shape_cast %694 : vector<1x16x16xf32> to vector<16x16xf32>
    %c1_94 = arith.constant 1 : index
    %c1_95 = arith.constant 1 : index
    %c2_96 = arith.constant 2 : index
    %696 = vector.load %arg5[%c1_94, %c1_95, %c2_96] : memref<4x18x18xf32, #tpu.memory_space<vmem>>, vector<1x16x16xf32>
    %697 = vector.shape_cast %696 : vector<1x16x16xf32> to vector<16x16xf32>
    %c2_97 = arith.constant 2 : index
    %c1_98 = arith.constant 1 : index
    %c2_99 = arith.constant 2 : index
    %698 = vector.load %arg5[%c2_97, %c1_98, %c2_99] : memref<4x18x18xf32, #tpu.memory_space<vmem>>, vector<1x16x16xf32>
    %699 = vector.shape_cast %698 : vector<1x16x16xf32> to vector<16x16xf32>
    %c3_100 = arith.constant 3 : index
    %c1_101 = arith.constant 1 : index
    %c2_102 = arith.constant 2 : index
    %700 = vector.load %arg5[%c3_100, %c1_101, %c2_102] : memref<4x18x18xf32, #tpu.memory_space<vmem>>, vector<1x16x16xf32>
    %701 = vector.shape_cast %700 : vector<1x16x16xf32> to vector<16x16xf32>
    %c160 = arith.constant 160 : index
    %702 = memref.load %arg2[%c160] : memref<288xf32, #tpu.memory_space<smem>>
    %703 = vector.broadcast %702 : f32 to vector<16x16xf32>
    %704 = arith.mulf %695, %703 : vector<16x16xf32>
    %c168 = arith.constant 168 : index
    %705 = memref.load %arg2[%c168] : memref<288xf32, #tpu.memory_space<smem>>
    %706 = vector.broadcast %705 : f32 to vector<16x16xf32>
    %707 = arith.mulf %697, %706 : vector<16x16xf32>
    %708 = arith.addf %704, %707 : vector<16x16xf32>
    %c176 = arith.constant 176 : index
    %709 = memref.load %arg2[%c176] : memref<288xf32, #tpu.memory_space<smem>>
    %710 = vector.broadcast %709 : f32 to vector<16x16xf32>
    %711 = arith.mulf %699, %710 : vector<16x16xf32>
    %712 = arith.addf %708, %711 : vector<16x16xf32>
    %c184 = arith.constant 184 : index
    %713 = memref.load %arg2[%c184] : memref<288xf32, #tpu.memory_space<smem>>
    %714 = vector.broadcast %713 : f32 to vector<16x16xf32>
    %715 = arith.mulf %701, %714 : vector<16x16xf32>
    %716 = arith.addf %712, %715 : vector<16x16xf32>
    %717 = arith.addf %581, %716 : vector<16x16xf32>
    %c161 = arith.constant 161 : index
    %718 = memref.load %arg2[%c161] : memref<288xf32, #tpu.memory_space<smem>>
    %719 = vector.broadcast %718 : f32 to vector<16x16xf32>
    %720 = arith.mulf %695, %719 : vector<16x16xf32>
    %c169 = arith.constant 169 : index
    %721 = memref.load %arg2[%c169] : memref<288xf32, #tpu.memory_space<smem>>
    %722 = vector.broadcast %721 : f32 to vector<16x16xf32>
    %723 = arith.mulf %697, %722 : vector<16x16xf32>
    %724 = arith.addf %720, %723 : vector<16x16xf32>
    %c177 = arith.constant 177 : index
    %725 = memref.load %arg2[%c177] : memref<288xf32, #tpu.memory_space<smem>>
    %726 = vector.broadcast %725 : f32 to vector<16x16xf32>
    %727 = arith.mulf %699, %726 : vector<16x16xf32>
    %728 = arith.addf %724, %727 : vector<16x16xf32>
    %c185 = arith.constant 185 : index
    %729 = memref.load %arg2[%c185] : memref<288xf32, #tpu.memory_space<smem>>
    %730 = vector.broadcast %729 : f32 to vector<16x16xf32>
    %731 = arith.mulf %701, %730 : vector<16x16xf32>
    %732 = arith.addf %728, %731 : vector<16x16xf32>
    %733 = arith.addf %597, %732 : vector<16x16xf32>
    %c162 = arith.constant 162 : index
    %734 = memref.load %arg2[%c162] : memref<288xf32, #tpu.memory_space<smem>>
    %735 = vector.broadcast %734 : f32 to vector<16x16xf32>
    %736 = arith.mulf %695, %735 : vector<16x16xf32>
    %c170 = arith.constant 170 : index
    %737 = memref.load %arg2[%c170] : memref<288xf32, #tpu.memory_space<smem>>
    %738 = vector.broadcast %737 : f32 to vector<16x16xf32>
    %739 = arith.mulf %697, %738 : vector<16x16xf32>
    %740 = arith.addf %736, %739 : vector<16x16xf32>
    %c178 = arith.constant 178 : index
    %741 = memref.load %arg2[%c178] : memref<288xf32, #tpu.memory_space<smem>>
    %742 = vector.broadcast %741 : f32 to vector<16x16xf32>
    %743 = arith.mulf %699, %742 : vector<16x16xf32>
    %744 = arith.addf %740, %743 : vector<16x16xf32>
    %c186 = arith.constant 186 : index
    %745 = memref.load %arg2[%c186] : memref<288xf32, #tpu.memory_space<smem>>
    %746 = vector.broadcast %745 : f32 to vector<16x16xf32>
    %747 = arith.mulf %701, %746 : vector<16x16xf32>
    %748 = arith.addf %744, %747 : vector<16x16xf32>
    %749 = arith.addf %613, %748 : vector<16x16xf32>
    %c163 = arith.constant 163 : index
    %750 = memref.load %arg2[%c163] : memref<288xf32, #tpu.memory_space<smem>>
    %751 = vector.broadcast %750 : f32 to vector<16x16xf32>
    %752 = arith.mulf %695, %751 : vector<16x16xf32>
    %c171 = arith.constant 171 : index
    %753 = memref.load %arg2[%c171] : memref<288xf32, #tpu.memory_space<smem>>
    %754 = vector.broadcast %753 : f32 to vector<16x16xf32>
    %755 = arith.mulf %697, %754 : vector<16x16xf32>
    %756 = arith.addf %752, %755 : vector<16x16xf32>
    %c179 = arith.constant 179 : index
    %757 = memref.load %arg2[%c179] : memref<288xf32, #tpu.memory_space<smem>>
    %758 = vector.broadcast %757 : f32 to vector<16x16xf32>
    %759 = arith.mulf %699, %758 : vector<16x16xf32>
    %760 = arith.addf %756, %759 : vector<16x16xf32>
    %c187 = arith.constant 187 : index
    %761 = memref.load %arg2[%c187] : memref<288xf32, #tpu.memory_space<smem>>
    %762 = vector.broadcast %761 : f32 to vector<16x16xf32>
    %763 = arith.mulf %701, %762 : vector<16x16xf32>
    %764 = arith.addf %760, %763 : vector<16x16xf32>
    %765 = arith.addf %629, %764 : vector<16x16xf32>
    %c164 = arith.constant 164 : index
    %766 = memref.load %arg2[%c164] : memref<288xf32, #tpu.memory_space<smem>>
    %767 = vector.broadcast %766 : f32 to vector<16x16xf32>
    %768 = arith.mulf %695, %767 : vector<16x16xf32>
    %c172 = arith.constant 172 : index
    %769 = memref.load %arg2[%c172] : memref<288xf32, #tpu.memory_space<smem>>
    %770 = vector.broadcast %769 : f32 to vector<16x16xf32>
    %771 = arith.mulf %697, %770 : vector<16x16xf32>
    %772 = arith.addf %768, %771 : vector<16x16xf32>
    %c180 = arith.constant 180 : index
    %773 = memref.load %arg2[%c180] : memref<288xf32, #tpu.memory_space<smem>>
    %774 = vector.broadcast %773 : f32 to vector<16x16xf32>
    %775 = arith.mulf %699, %774 : vector<16x16xf32>
    %776 = arith.addf %772, %775 : vector<16x16xf32>
    %c188 = arith.constant 188 : index
    %777 = memref.load %arg2[%c188] : memref<288xf32, #tpu.memory_space<smem>>
    %778 = vector.broadcast %777 : f32 to vector<16x16xf32>
    %779 = arith.mulf %701, %778 : vector<16x16xf32>
    %780 = arith.addf %776, %779 : vector<16x16xf32>
    %781 = arith.addf %645, %780 : vector<16x16xf32>
    %c165 = arith.constant 165 : index
    %782 = memref.load %arg2[%c165] : memref<288xf32, #tpu.memory_space<smem>>
    %783 = vector.broadcast %782 : f32 to vector<16x16xf32>
    %784 = arith.mulf %695, %783 : vector<16x16xf32>
    %c173 = arith.constant 173 : index
    %785 = memref.load %arg2[%c173] : memref<288xf32, #tpu.memory_space<smem>>
    %786 = vector.broadcast %785 : f32 to vector<16x16xf32>
    %787 = arith.mulf %697, %786 : vector<16x16xf32>
    %788 = arith.addf %784, %787 : vector<16x16xf32>
    %c181 = arith.constant 181 : index
    %789 = memref.load %arg2[%c181] : memref<288xf32, #tpu.memory_space<smem>>
    %790 = vector.broadcast %789 : f32 to vector<16x16xf32>
    %791 = arith.mulf %699, %790 : vector<16x16xf32>
    %792 = arith.addf %788, %791 : vector<16x16xf32>
    %c189 = arith.constant 189 : index
    %793 = memref.load %arg2[%c189] : memref<288xf32, #tpu.memory_space<smem>>
    %794 = vector.broadcast %793 : f32 to vector<16x16xf32>
    %795 = arith.mulf %701, %794 : vector<16x16xf32>
    %796 = arith.addf %792, %795 : vector<16x16xf32>
    %797 = arith.addf %661, %796 : vector<16x16xf32>
    %c166 = arith.constant 166 : index
    %798 = memref.load %arg2[%c166] : memref<288xf32, #tpu.memory_space<smem>>
    %799 = vector.broadcast %798 : f32 to vector<16x16xf32>
    %800 = arith.mulf %695, %799 : vector<16x16xf32>
    %c174 = arith.constant 174 : index
    %801 = memref.load %arg2[%c174] : memref<288xf32, #tpu.memory_space<smem>>
    %802 = vector.broadcast %801 : f32 to vector<16x16xf32>
    %803 = arith.mulf %697, %802 : vector<16x16xf32>
    %804 = arith.addf %800, %803 : vector<16x16xf32>
    %c182 = arith.constant 182 : index
    %805 = memref.load %arg2[%c182] : memref<288xf32, #tpu.memory_space<smem>>
    %806 = vector.broadcast %805 : f32 to vector<16x16xf32>
    %807 = arith.mulf %699, %806 : vector<16x16xf32>
    %808 = arith.addf %804, %807 : vector<16x16xf32>
    %c190 = arith.constant 190 : index
    %809 = memref.load %arg2[%c190] : memref<288xf32, #tpu.memory_space<smem>>
    %810 = vector.broadcast %809 : f32 to vector<16x16xf32>
    %811 = arith.mulf %701, %810 : vector<16x16xf32>
    %812 = arith.addf %808, %811 : vector<16x16xf32>
    %813 = arith.addf %677, %812 : vector<16x16xf32>
    %c167 = arith.constant 167 : index
    %814 = memref.load %arg2[%c167] : memref<288xf32, #tpu.memory_space<smem>>
    %815 = vector.broadcast %814 : f32 to vector<16x16xf32>
    %816 = arith.mulf %695, %815 : vector<16x16xf32>
    %c175 = arith.constant 175 : index
    %817 = memref.load %arg2[%c175] : memref<288xf32, #tpu.memory_space<smem>>
    %818 = vector.broadcast %817 : f32 to vector<16x16xf32>
    %819 = arith.mulf %697, %818 : vector<16x16xf32>
    %820 = arith.addf %816, %819 : vector<16x16xf32>
    %c183 = arith.constant 183 : index
    %821 = memref.load %arg2[%c183] : memref<288xf32, #tpu.memory_space<smem>>
    %822 = vector.broadcast %821 : f32 to vector<16x16xf32>
    %823 = arith.mulf %699, %822 : vector<16x16xf32>
    %824 = arith.addf %820, %823 : vector<16x16xf32>
    %c191 = arith.constant 191 : index
    %825 = memref.load %arg2[%c191] : memref<288xf32, #tpu.memory_space<smem>>
    %826 = vector.broadcast %825 : f32 to vector<16x16xf32>
    %827 = arith.mulf %701, %826 : vector<16x16xf32>
    %828 = arith.addf %824, %827 : vector<16x16xf32>
    %829 = arith.addf %693, %828 : vector<16x16xf32>
    %c0_103 = arith.constant 0 : index
    %c2_104 = arith.constant 2 : index
    %c0_105 = arith.constant 0 : index
    %830 = vector.load %arg5[%c0_103, %c2_104, %c0_105] : memref<4x18x18xf32, #tpu.memory_space<vmem>>, vector<1x16x16xf32>
    %831 = vector.shape_cast %830 : vector<1x16x16xf32> to vector<16x16xf32>
    %c1_106 = arith.constant 1 : index
    %c2_107 = arith.constant 2 : index
    %c0_108 = arith.constant 0 : index
    %832 = vector.load %arg5[%c1_106, %c2_107, %c0_108] : memref<4x18x18xf32, #tpu.memory_space<vmem>>, vector<1x16x16xf32>
    %833 = vector.shape_cast %832 : vector<1x16x16xf32> to vector<16x16xf32>
    %c2_109 = arith.constant 2 : index
    %c2_110 = arith.constant 2 : index
    %c0_111 = arith.constant 0 : index
    %834 = vector.load %arg5[%c2_109, %c2_110, %c0_111] : memref<4x18x18xf32, #tpu.memory_space<vmem>>, vector<1x16x16xf32>
    %835 = vector.shape_cast %834 : vector<1x16x16xf32> to vector<16x16xf32>
    %c3_112 = arith.constant 3 : index
    %c2_113 = arith.constant 2 : index
    %c0_114 = arith.constant 0 : index
    %836 = vector.load %arg5[%c3_112, %c2_113, %c0_114] : memref<4x18x18xf32, #tpu.memory_space<vmem>>, vector<1x16x16xf32>
    %837 = vector.shape_cast %836 : vector<1x16x16xf32> to vector<16x16xf32>
    %c192 = arith.constant 192 : index
    %838 = memref.load %arg2[%c192] : memref<288xf32, #tpu.memory_space<smem>>
    %839 = vector.broadcast %838 : f32 to vector<16x16xf32>
    %840 = arith.mulf %831, %839 : vector<16x16xf32>
    %c200 = arith.constant 200 : index
    %841 = memref.load %arg2[%c200] : memref<288xf32, #tpu.memory_space<smem>>
    %842 = vector.broadcast %841 : f32 to vector<16x16xf32>
    %843 = arith.mulf %833, %842 : vector<16x16xf32>
    %844 = arith.addf %840, %843 : vector<16x16xf32>
    %c208 = arith.constant 208 : index
    %845 = memref.load %arg2[%c208] : memref<288xf32, #tpu.memory_space<smem>>
    %846 = vector.broadcast %845 : f32 to vector<16x16xf32>
    %847 = arith.mulf %835, %846 : vector<16x16xf32>
    %848 = arith.addf %844, %847 : vector<16x16xf32>
    %c216 = arith.constant 216 : index
    %849 = memref.load %arg2[%c216] : memref<288xf32, #tpu.memory_space<smem>>
    %850 = vector.broadcast %849 : f32 to vector<16x16xf32>
    %851 = arith.mulf %837, %850 : vector<16x16xf32>
    %852 = arith.addf %848, %851 : vector<16x16xf32>
    %853 = arith.addf %717, %852 : vector<16x16xf32>
    %c193 = arith.constant 193 : index
    %854 = memref.load %arg2[%c193] : memref<288xf32, #tpu.memory_space<smem>>
    %855 = vector.broadcast %854 : f32 to vector<16x16xf32>
    %856 = arith.mulf %831, %855 : vector<16x16xf32>
    %c201 = arith.constant 201 : index
    %857 = memref.load %arg2[%c201] : memref<288xf32, #tpu.memory_space<smem>>
    %858 = vector.broadcast %857 : f32 to vector<16x16xf32>
    %859 = arith.mulf %833, %858 : vector<16x16xf32>
    %860 = arith.addf %856, %859 : vector<16x16xf32>
    %c209 = arith.constant 209 : index
    %861 = memref.load %arg2[%c209] : memref<288xf32, #tpu.memory_space<smem>>
    %862 = vector.broadcast %861 : f32 to vector<16x16xf32>
    %863 = arith.mulf %835, %862 : vector<16x16xf32>
    %864 = arith.addf %860, %863 : vector<16x16xf32>
    %c217 = arith.constant 217 : index
    %865 = memref.load %arg2[%c217] : memref<288xf32, #tpu.memory_space<smem>>
    %866 = vector.broadcast %865 : f32 to vector<16x16xf32>
    %867 = arith.mulf %837, %866 : vector<16x16xf32>
    %868 = arith.addf %864, %867 : vector<16x16xf32>
    %869 = arith.addf %733, %868 : vector<16x16xf32>
    %c194 = arith.constant 194 : index
    %870 = memref.load %arg2[%c194] : memref<288xf32, #tpu.memory_space<smem>>
    %871 = vector.broadcast %870 : f32 to vector<16x16xf32>
    %872 = arith.mulf %831, %871 : vector<16x16xf32>
    %c202 = arith.constant 202 : index
    %873 = memref.load %arg2[%c202] : memref<288xf32, #tpu.memory_space<smem>>
    %874 = vector.broadcast %873 : f32 to vector<16x16xf32>
    %875 = arith.mulf %833, %874 : vector<16x16xf32>
    %876 = arith.addf %872, %875 : vector<16x16xf32>
    %c210 = arith.constant 210 : index
    %877 = memref.load %arg2[%c210] : memref<288xf32, #tpu.memory_space<smem>>
    %878 = vector.broadcast %877 : f32 to vector<16x16xf32>
    %879 = arith.mulf %835, %878 : vector<16x16xf32>
    %880 = arith.addf %876, %879 : vector<16x16xf32>
    %c218 = arith.constant 218 : index
    %881 = memref.load %arg2[%c218] : memref<288xf32, #tpu.memory_space<smem>>
    %882 = vector.broadcast %881 : f32 to vector<16x16xf32>
    %883 = arith.mulf %837, %882 : vector<16x16xf32>
    %884 = arith.addf %880, %883 : vector<16x16xf32>
    %885 = arith.addf %749, %884 : vector<16x16xf32>
    %c195 = arith.constant 195 : index
    %886 = memref.load %arg2[%c195] : memref<288xf32, #tpu.memory_space<smem>>
    %887 = vector.broadcast %886 : f32 to vector<16x16xf32>
    %888 = arith.mulf %831, %887 : vector<16x16xf32>
    %c203 = arith.constant 203 : index
    %889 = memref.load %arg2[%c203] : memref<288xf32, #tpu.memory_space<smem>>
    %890 = vector.broadcast %889 : f32 to vector<16x16xf32>
    %891 = arith.mulf %833, %890 : vector<16x16xf32>
    %892 = arith.addf %888, %891 : vector<16x16xf32>
    %c211 = arith.constant 211 : index
    %893 = memref.load %arg2[%c211] : memref<288xf32, #tpu.memory_space<smem>>
    %894 = vector.broadcast %893 : f32 to vector<16x16xf32>
    %895 = arith.mulf %835, %894 : vector<16x16xf32>
    %896 = arith.addf %892, %895 : vector<16x16xf32>
    %c219 = arith.constant 219 : index
    %897 = memref.load %arg2[%c219] : memref<288xf32, #tpu.memory_space<smem>>
    %898 = vector.broadcast %897 : f32 to vector<16x16xf32>
    %899 = arith.mulf %837, %898 : vector<16x16xf32>
    %900 = arith.addf %896, %899 : vector<16x16xf32>
    %901 = arith.addf %765, %900 : vector<16x16xf32>
    %c196 = arith.constant 196 : index
    %902 = memref.load %arg2[%c196] : memref<288xf32, #tpu.memory_space<smem>>
    %903 = vector.broadcast %902 : f32 to vector<16x16xf32>
    %904 = arith.mulf %831, %903 : vector<16x16xf32>
    %c204 = arith.constant 204 : index
    %905 = memref.load %arg2[%c204] : memref<288xf32, #tpu.memory_space<smem>>
    %906 = vector.broadcast %905 : f32 to vector<16x16xf32>
    %907 = arith.mulf %833, %906 : vector<16x16xf32>
    %908 = arith.addf %904, %907 : vector<16x16xf32>
    %c212 = arith.constant 212 : index
    %909 = memref.load %arg2[%c212] : memref<288xf32, #tpu.memory_space<smem>>
    %910 = vector.broadcast %909 : f32 to vector<16x16xf32>
    %911 = arith.mulf %835, %910 : vector<16x16xf32>
    %912 = arith.addf %908, %911 : vector<16x16xf32>
    %c220 = arith.constant 220 : index
    %913 = memref.load %arg2[%c220] : memref<288xf32, #tpu.memory_space<smem>>
    %914 = vector.broadcast %913 : f32 to vector<16x16xf32>
    %915 = arith.mulf %837, %914 : vector<16x16xf32>
    %916 = arith.addf %912, %915 : vector<16x16xf32>
    %917 = arith.addf %781, %916 : vector<16x16xf32>
    %c197 = arith.constant 197 : index
    %918 = memref.load %arg2[%c197] : memref<288xf32, #tpu.memory_space<smem>>
    %919 = vector.broadcast %918 : f32 to vector<16x16xf32>
    %920 = arith.mulf %831, %919 : vector<16x16xf32>
    %c205 = arith.constant 205 : index
    %921 = memref.load %arg2[%c205] : memref<288xf32, #tpu.memory_space<smem>>
    %922 = vector.broadcast %921 : f32 to vector<16x16xf32>
    %923 = arith.mulf %833, %922 : vector<16x16xf32>
    %924 = arith.addf %920, %923 : vector<16x16xf32>
    %c213 = arith.constant 213 : index
    %925 = memref.load %arg2[%c213] : memref<288xf32, #tpu.memory_space<smem>>
    %926 = vector.broadcast %925 : f32 to vector<16x16xf32>
    %927 = arith.mulf %835, %926 : vector<16x16xf32>
    %928 = arith.addf %924, %927 : vector<16x16xf32>
    %c221 = arith.constant 221 : index
    %929 = memref.load %arg2[%c221] : memref<288xf32, #tpu.memory_space<smem>>
    %930 = vector.broadcast %929 : f32 to vector<16x16xf32>
    %931 = arith.mulf %837, %930 : vector<16x16xf32>
    %932 = arith.addf %928, %931 : vector<16x16xf32>
    %933 = arith.addf %797, %932 : vector<16x16xf32>
    %c198 = arith.constant 198 : index
    %934 = memref.load %arg2[%c198] : memref<288xf32, #tpu.memory_space<smem>>
    %935 = vector.broadcast %934 : f32 to vector<16x16xf32>
    %936 = arith.mulf %831, %935 : vector<16x16xf32>
    %c206 = arith.constant 206 : index
    %937 = memref.load %arg2[%c206] : memref<288xf32, #tpu.memory_space<smem>>
    %938 = vector.broadcast %937 : f32 to vector<16x16xf32>
    %939 = arith.mulf %833, %938 : vector<16x16xf32>
    %940 = arith.addf %936, %939 : vector<16x16xf32>
    %c214 = arith.constant 214 : index
    %941 = memref.load %arg2[%c214] : memref<288xf32, #tpu.memory_space<smem>>
    %942 = vector.broadcast %941 : f32 to vector<16x16xf32>
    %943 = arith.mulf %835, %942 : vector<16x16xf32>
    %944 = arith.addf %940, %943 : vector<16x16xf32>
    %c222 = arith.constant 222 : index
    %945 = memref.load %arg2[%c222] : memref<288xf32, #tpu.memory_space<smem>>
    %946 = vector.broadcast %945 : f32 to vector<16x16xf32>
    %947 = arith.mulf %837, %946 : vector<16x16xf32>
    %948 = arith.addf %944, %947 : vector<16x16xf32>
    %949 = arith.addf %813, %948 : vector<16x16xf32>
    %c199 = arith.constant 199 : index
    %950 = memref.load %arg2[%c199] : memref<288xf32, #tpu.memory_space<smem>>
    %951 = vector.broadcast %950 : f32 to vector<16x16xf32>
    %952 = arith.mulf %831, %951 : vector<16x16xf32>
    %c207 = arith.constant 207 : index
    %953 = memref.load %arg2[%c207] : memref<288xf32, #tpu.memory_space<smem>>
    %954 = vector.broadcast %953 : f32 to vector<16x16xf32>
    %955 = arith.mulf %833, %954 : vector<16x16xf32>
    %956 = arith.addf %952, %955 : vector<16x16xf32>
    %c215 = arith.constant 215 : index
    %957 = memref.load %arg2[%c215] : memref<288xf32, #tpu.memory_space<smem>>
    %958 = vector.broadcast %957 : f32 to vector<16x16xf32>
    %959 = arith.mulf %835, %958 : vector<16x16xf32>
    %960 = arith.addf %956, %959 : vector<16x16xf32>
    %c223 = arith.constant 223 : index
    %961 = memref.load %arg2[%c223] : memref<288xf32, #tpu.memory_space<smem>>
    %962 = vector.broadcast %961 : f32 to vector<16x16xf32>
    %963 = arith.mulf %837, %962 : vector<16x16xf32>
    %964 = arith.addf %960, %963 : vector<16x16xf32>
    %965 = arith.addf %829, %964 : vector<16x16xf32>
    %c0_115 = arith.constant 0 : index
    %c2_116 = arith.constant 2 : index
    %c1_117 = arith.constant 1 : index
    %966 = vector.load %arg5[%c0_115, %c2_116, %c1_117] : memref<4x18x18xf32, #tpu.memory_space<vmem>>, vector<1x16x16xf32>
    %967 = vector.shape_cast %966 : vector<1x16x16xf32> to vector<16x16xf32>
    %c1_118 = arith.constant 1 : index
    %c2_119 = arith.constant 2 : index
    %c1_120 = arith.constant 1 : index
    %968 = vector.load %arg5[%c1_118, %c2_119, %c1_120] : memref<4x18x18xf32, #tpu.memory_space<vmem>>, vector<1x16x16xf32>
    %969 = vector.shape_cast %968 : vector<1x16x16xf32> to vector<16x16xf32>
    %c2_121 = arith.constant 2 : index
    %c2_122 = arith.constant 2 : index
    %c1_123 = arith.constant 1 : index
    %970 = vector.load %arg5[%c2_121, %c2_122, %c1_123] : memref<4x18x18xf32, #tpu.memory_space<vmem>>, vector<1x16x16xf32>
    %971 = vector.shape_cast %970 : vector<1x16x16xf32> to vector<16x16xf32>
    %c3_124 = arith.constant 3 : index
    %c2_125 = arith.constant 2 : index
    %c1_126 = arith.constant 1 : index
    %972 = vector.load %arg5[%c3_124, %c2_125, %c1_126] : memref<4x18x18xf32, #tpu.memory_space<vmem>>, vector<1x16x16xf32>
    %973 = vector.shape_cast %972 : vector<1x16x16xf32> to vector<16x16xf32>
    %c224 = arith.constant 224 : index
    %974 = memref.load %arg2[%c224] : memref<288xf32, #tpu.memory_space<smem>>
    %975 = vector.broadcast %974 : f32 to vector<16x16xf32>
    %976 = arith.mulf %967, %975 : vector<16x16xf32>
    %c232 = arith.constant 232 : index
    %977 = memref.load %arg2[%c232] : memref<288xf32, #tpu.memory_space<smem>>
    %978 = vector.broadcast %977 : f32 to vector<16x16xf32>
    %979 = arith.mulf %969, %978 : vector<16x16xf32>
    %980 = arith.addf %976, %979 : vector<16x16xf32>
    %c240 = arith.constant 240 : index
    %981 = memref.load %arg2[%c240] : memref<288xf32, #tpu.memory_space<smem>>
    %982 = vector.broadcast %981 : f32 to vector<16x16xf32>
    %983 = arith.mulf %971, %982 : vector<16x16xf32>
    %984 = arith.addf %980, %983 : vector<16x16xf32>
    %c248 = arith.constant 248 : index
    %985 = memref.load %arg2[%c248] : memref<288xf32, #tpu.memory_space<smem>>
    %986 = vector.broadcast %985 : f32 to vector<16x16xf32>
    %987 = arith.mulf %973, %986 : vector<16x16xf32>
    %988 = arith.addf %984, %987 : vector<16x16xf32>
    %989 = arith.addf %853, %988 : vector<16x16xf32>
    %c225 = arith.constant 225 : index
    %990 = memref.load %arg2[%c225] : memref<288xf32, #tpu.memory_space<smem>>
    %991 = vector.broadcast %990 : f32 to vector<16x16xf32>
    %992 = arith.mulf %967, %991 : vector<16x16xf32>
    %c233 = arith.constant 233 : index
    %993 = memref.load %arg2[%c233] : memref<288xf32, #tpu.memory_space<smem>>
    %994 = vector.broadcast %993 : f32 to vector<16x16xf32>
    %995 = arith.mulf %969, %994 : vector<16x16xf32>
    %996 = arith.addf %992, %995 : vector<16x16xf32>
    %c241 = arith.constant 241 : index
    %997 = memref.load %arg2[%c241] : memref<288xf32, #tpu.memory_space<smem>>
    %998 = vector.broadcast %997 : f32 to vector<16x16xf32>
    %999 = arith.mulf %971, %998 : vector<16x16xf32>
    %1000 = arith.addf %996, %999 : vector<16x16xf32>
    %c249 = arith.constant 249 : index
    %1001 = memref.load %arg2[%c249] : memref<288xf32, #tpu.memory_space<smem>>
    %1002 = vector.broadcast %1001 : f32 to vector<16x16xf32>
    %1003 = arith.mulf %973, %1002 : vector<16x16xf32>
    %1004 = arith.addf %1000, %1003 : vector<16x16xf32>
    %1005 = arith.addf %869, %1004 : vector<16x16xf32>
    %c226 = arith.constant 226 : index
    %1006 = memref.load %arg2[%c226] : memref<288xf32, #tpu.memory_space<smem>>
    %1007 = vector.broadcast %1006 : f32 to vector<16x16xf32>
    %1008 = arith.mulf %967, %1007 : vector<16x16xf32>
    %c234 = arith.constant 234 : index
    %1009 = memref.load %arg2[%c234] : memref<288xf32, #tpu.memory_space<smem>>
    %1010 = vector.broadcast %1009 : f32 to vector<16x16xf32>
    %1011 = arith.mulf %969, %1010 : vector<16x16xf32>
    %1012 = arith.addf %1008, %1011 : vector<16x16xf32>
    %c242 = arith.constant 242 : index
    %1013 = memref.load %arg2[%c242] : memref<288xf32, #tpu.memory_space<smem>>
    %1014 = vector.broadcast %1013 : f32 to vector<16x16xf32>
    %1015 = arith.mulf %971, %1014 : vector<16x16xf32>
    %1016 = arith.addf %1012, %1015 : vector<16x16xf32>
    %c250 = arith.constant 250 : index
    %1017 = memref.load %arg2[%c250] : memref<288xf32, #tpu.memory_space<smem>>
    %1018 = vector.broadcast %1017 : f32 to vector<16x16xf32>
    %1019 = arith.mulf %973, %1018 : vector<16x16xf32>
    %1020 = arith.addf %1016, %1019 : vector<16x16xf32>
    %1021 = arith.addf %885, %1020 : vector<16x16xf32>
    %c227 = arith.constant 227 : index
    %1022 = memref.load %arg2[%c227] : memref<288xf32, #tpu.memory_space<smem>>
    %1023 = vector.broadcast %1022 : f32 to vector<16x16xf32>
    %1024 = arith.mulf %967, %1023 : vector<16x16xf32>
    %c235 = arith.constant 235 : index
    %1025 = memref.load %arg2[%c235] : memref<288xf32, #tpu.memory_space<smem>>
    %1026 = vector.broadcast %1025 : f32 to vector<16x16xf32>
    %1027 = arith.mulf %969, %1026 : vector<16x16xf32>
    %1028 = arith.addf %1024, %1027 : vector<16x16xf32>
    %c243 = arith.constant 243 : index
    %1029 = memref.load %arg2[%c243] : memref<288xf32, #tpu.memory_space<smem>>
    %1030 = vector.broadcast %1029 : f32 to vector<16x16xf32>
    %1031 = arith.mulf %971, %1030 : vector<16x16xf32>
    %1032 = arith.addf %1028, %1031 : vector<16x16xf32>
    %c251 = arith.constant 251 : index
    %1033 = memref.load %arg2[%c251] : memref<288xf32, #tpu.memory_space<smem>>
    %1034 = vector.broadcast %1033 : f32 to vector<16x16xf32>
    %1035 = arith.mulf %973, %1034 : vector<16x16xf32>
    %1036 = arith.addf %1032, %1035 : vector<16x16xf32>
    %1037 = arith.addf %901, %1036 : vector<16x16xf32>
    %c228 = arith.constant 228 : index
    %1038 = memref.load %arg2[%c228] : memref<288xf32, #tpu.memory_space<smem>>
    %1039 = vector.broadcast %1038 : f32 to vector<16x16xf32>
    %1040 = arith.mulf %967, %1039 : vector<16x16xf32>
    %c236 = arith.constant 236 : index
    %1041 = memref.load %arg2[%c236] : memref<288xf32, #tpu.memory_space<smem>>
    %1042 = vector.broadcast %1041 : f32 to vector<16x16xf32>
    %1043 = arith.mulf %969, %1042 : vector<16x16xf32>
    %1044 = arith.addf %1040, %1043 : vector<16x16xf32>
    %c244 = arith.constant 244 : index
    %1045 = memref.load %arg2[%c244] : memref<288xf32, #tpu.memory_space<smem>>
    %1046 = vector.broadcast %1045 : f32 to vector<16x16xf32>
    %1047 = arith.mulf %971, %1046 : vector<16x16xf32>
    %1048 = arith.addf %1044, %1047 : vector<16x16xf32>
    %c252 = arith.constant 252 : index
    %1049 = memref.load %arg2[%c252] : memref<288xf32, #tpu.memory_space<smem>>
    %1050 = vector.broadcast %1049 : f32 to vector<16x16xf32>
    %1051 = arith.mulf %973, %1050 : vector<16x16xf32>
    %1052 = arith.addf %1048, %1051 : vector<16x16xf32>
    %1053 = arith.addf %917, %1052 : vector<16x16xf32>
    %c229 = arith.constant 229 : index
    %1054 = memref.load %arg2[%c229] : memref<288xf32, #tpu.memory_space<smem>>
    %1055 = vector.broadcast %1054 : f32 to vector<16x16xf32>
    %1056 = arith.mulf %967, %1055 : vector<16x16xf32>
    %c237 = arith.constant 237 : index
    %1057 = memref.load %arg2[%c237] : memref<288xf32, #tpu.memory_space<smem>>
    %1058 = vector.broadcast %1057 : f32 to vector<16x16xf32>
    %1059 = arith.mulf %969, %1058 : vector<16x16xf32>
    %1060 = arith.addf %1056, %1059 : vector<16x16xf32>
    %c245 = arith.constant 245 : index
    %1061 = memref.load %arg2[%c245] : memref<288xf32, #tpu.memory_space<smem>>
    %1062 = vector.broadcast %1061 : f32 to vector<16x16xf32>
    %1063 = arith.mulf %971, %1062 : vector<16x16xf32>
    %1064 = arith.addf %1060, %1063 : vector<16x16xf32>
    %c253 = arith.constant 253 : index
    %1065 = memref.load %arg2[%c253] : memref<288xf32, #tpu.memory_space<smem>>
    %1066 = vector.broadcast %1065 : f32 to vector<16x16xf32>
    %1067 = arith.mulf %973, %1066 : vector<16x16xf32>
    %1068 = arith.addf %1064, %1067 : vector<16x16xf32>
    %1069 = arith.addf %933, %1068 : vector<16x16xf32>
    %c230 = arith.constant 230 : index
    %1070 = memref.load %arg2[%c230] : memref<288xf32, #tpu.memory_space<smem>>
    %1071 = vector.broadcast %1070 : f32 to vector<16x16xf32>
    %1072 = arith.mulf %967, %1071 : vector<16x16xf32>
    %c238 = arith.constant 238 : index
    %1073 = memref.load %arg2[%c238] : memref<288xf32, #tpu.memory_space<smem>>
    %1074 = vector.broadcast %1073 : f32 to vector<16x16xf32>
    %1075 = arith.mulf %969, %1074 : vector<16x16xf32>
    %1076 = arith.addf %1072, %1075 : vector<16x16xf32>
    %c246 = arith.constant 246 : index
    %1077 = memref.load %arg2[%c246] : memref<288xf32, #tpu.memory_space<smem>>
    %1078 = vector.broadcast %1077 : f32 to vector<16x16xf32>
    %1079 = arith.mulf %971, %1078 : vector<16x16xf32>
    %1080 = arith.addf %1076, %1079 : vector<16x16xf32>
    %c254 = arith.constant 254 : index
    %1081 = memref.load %arg2[%c254] : memref<288xf32, #tpu.memory_space<smem>>
    %1082 = vector.broadcast %1081 : f32 to vector<16x16xf32>
    %1083 = arith.mulf %973, %1082 : vector<16x16xf32>
    %1084 = arith.addf %1080, %1083 : vector<16x16xf32>
    %1085 = arith.addf %949, %1084 : vector<16x16xf32>
    %c231 = arith.constant 231 : index
    %1086 = memref.load %arg2[%c231] : memref<288xf32, #tpu.memory_space<smem>>
    %1087 = vector.broadcast %1086 : f32 to vector<16x16xf32>
    %1088 = arith.mulf %967, %1087 : vector<16x16xf32>
    %c239 = arith.constant 239 : index
    %1089 = memref.load %arg2[%c239] : memref<288xf32, #tpu.memory_space<smem>>
    %1090 = vector.broadcast %1089 : f32 to vector<16x16xf32>
    %1091 = arith.mulf %969, %1090 : vector<16x16xf32>
    %1092 = arith.addf %1088, %1091 : vector<16x16xf32>
    %c247 = arith.constant 247 : index
    %1093 = memref.load %arg2[%c247] : memref<288xf32, #tpu.memory_space<smem>>
    %1094 = vector.broadcast %1093 : f32 to vector<16x16xf32>
    %1095 = arith.mulf %971, %1094 : vector<16x16xf32>
    %1096 = arith.addf %1092, %1095 : vector<16x16xf32>
    %c255 = arith.constant 255 : index
    %1097 = memref.load %arg2[%c255] : memref<288xf32, #tpu.memory_space<smem>>
    %1098 = vector.broadcast %1097 : f32 to vector<16x16xf32>
    %1099 = arith.mulf %973, %1098 : vector<16x16xf32>
    %1100 = arith.addf %1096, %1099 : vector<16x16xf32>
    %1101 = arith.addf %965, %1100 : vector<16x16xf32>
    %c0_127 = arith.constant 0 : index
    %c2_128 = arith.constant 2 : index
    %c2_129 = arith.constant 2 : index
    %1102 = vector.load %arg5[%c0_127, %c2_128, %c2_129] : memref<4x18x18xf32, #tpu.memory_space<vmem>>, vector<1x16x16xf32>
    %1103 = vector.shape_cast %1102 : vector<1x16x16xf32> to vector<16x16xf32>
    %c1_130 = arith.constant 1 : index
    %c2_131 = arith.constant 2 : index
    %c2_132 = arith.constant 2 : index
    %1104 = vector.load %arg5[%c1_130, %c2_131, %c2_132] : memref<4x18x18xf32, #tpu.memory_space<vmem>>, vector<1x16x16xf32>
    %1105 = vector.shape_cast %1104 : vector<1x16x16xf32> to vector<16x16xf32>
    %c2_133 = arith.constant 2 : index
    %c2_134 = arith.constant 2 : index
    %c2_135 = arith.constant 2 : index
    %1106 = vector.load %arg5[%c2_133, %c2_134, %c2_135] : memref<4x18x18xf32, #tpu.memory_space<vmem>>, vector<1x16x16xf32>
    %1107 = vector.shape_cast %1106 : vector<1x16x16xf32> to vector<16x16xf32>
    %c3_136 = arith.constant 3 : index
    %c2_137 = arith.constant 2 : index
    %c2_138 = arith.constant 2 : index
    %1108 = vector.load %arg5[%c3_136, %c2_137, %c2_138] : memref<4x18x18xf32, #tpu.memory_space<vmem>>, vector<1x16x16xf32>
    %1109 = vector.shape_cast %1108 : vector<1x16x16xf32> to vector<16x16xf32>
    %c256 = arith.constant 256 : index
    %1110 = memref.load %arg2[%c256] : memref<288xf32, #tpu.memory_space<smem>>
    %1111 = vector.broadcast %1110 : f32 to vector<16x16xf32>
    %1112 = arith.mulf %1103, %1111 : vector<16x16xf32>
    %c264 = arith.constant 264 : index
    %1113 = memref.load %arg2[%c264] : memref<288xf32, #tpu.memory_space<smem>>
    %1114 = vector.broadcast %1113 : f32 to vector<16x16xf32>
    %1115 = arith.mulf %1105, %1114 : vector<16x16xf32>
    %1116 = arith.addf %1112, %1115 : vector<16x16xf32>
    %c272 = arith.constant 272 : index
    %1117 = memref.load %arg2[%c272] : memref<288xf32, #tpu.memory_space<smem>>
    %1118 = vector.broadcast %1117 : f32 to vector<16x16xf32>
    %1119 = arith.mulf %1107, %1118 : vector<16x16xf32>
    %1120 = arith.addf %1116, %1119 : vector<16x16xf32>
    %c280 = arith.constant 280 : index
    %1121 = memref.load %arg2[%c280] : memref<288xf32, #tpu.memory_space<smem>>
    %1122 = vector.broadcast %1121 : f32 to vector<16x16xf32>
    %1123 = arith.mulf %1109, %1122 : vector<16x16xf32>
    %1124 = arith.addf %1120, %1123 : vector<16x16xf32>
    %1125 = arith.addf %989, %1124 : vector<16x16xf32>
    %c257 = arith.constant 257 : index
    %1126 = memref.load %arg2[%c257] : memref<288xf32, #tpu.memory_space<smem>>
    %1127 = vector.broadcast %1126 : f32 to vector<16x16xf32>
    %1128 = arith.mulf %1103, %1127 : vector<16x16xf32>
    %c265 = arith.constant 265 : index
    %1129 = memref.load %arg2[%c265] : memref<288xf32, #tpu.memory_space<smem>>
    %1130 = vector.broadcast %1129 : f32 to vector<16x16xf32>
    %1131 = arith.mulf %1105, %1130 : vector<16x16xf32>
    %1132 = arith.addf %1128, %1131 : vector<16x16xf32>
    %c273 = arith.constant 273 : index
    %1133 = memref.load %arg2[%c273] : memref<288xf32, #tpu.memory_space<smem>>
    %1134 = vector.broadcast %1133 : f32 to vector<16x16xf32>
    %1135 = arith.mulf %1107, %1134 : vector<16x16xf32>
    %1136 = arith.addf %1132, %1135 : vector<16x16xf32>
    %c281 = arith.constant 281 : index
    %1137 = memref.load %arg2[%c281] : memref<288xf32, #tpu.memory_space<smem>>
    %1138 = vector.broadcast %1137 : f32 to vector<16x16xf32>
    %1139 = arith.mulf %1109, %1138 : vector<16x16xf32>
    %1140 = arith.addf %1136, %1139 : vector<16x16xf32>
    %1141 = arith.addf %1005, %1140 : vector<16x16xf32>
    %c258 = arith.constant 258 : index
    %1142 = memref.load %arg2[%c258] : memref<288xf32, #tpu.memory_space<smem>>
    %1143 = vector.broadcast %1142 : f32 to vector<16x16xf32>
    %1144 = arith.mulf %1103, %1143 : vector<16x16xf32>
    %c266 = arith.constant 266 : index
    %1145 = memref.load %arg2[%c266] : memref<288xf32, #tpu.memory_space<smem>>
    %1146 = vector.broadcast %1145 : f32 to vector<16x16xf32>
    %1147 = arith.mulf %1105, %1146 : vector<16x16xf32>
    %1148 = arith.addf %1144, %1147 : vector<16x16xf32>
    %c274 = arith.constant 274 : index
    %1149 = memref.load %arg2[%c274] : memref<288xf32, #tpu.memory_space<smem>>
    %1150 = vector.broadcast %1149 : f32 to vector<16x16xf32>
    %1151 = arith.mulf %1107, %1150 : vector<16x16xf32>
    %1152 = arith.addf %1148, %1151 : vector<16x16xf32>
    %c282 = arith.constant 282 : index
    %1153 = memref.load %arg2[%c282] : memref<288xf32, #tpu.memory_space<smem>>
    %1154 = vector.broadcast %1153 : f32 to vector<16x16xf32>
    %1155 = arith.mulf %1109, %1154 : vector<16x16xf32>
    %1156 = arith.addf %1152, %1155 : vector<16x16xf32>
    %1157 = arith.addf %1021, %1156 : vector<16x16xf32>
    %c259 = arith.constant 259 : index
    %1158 = memref.load %arg2[%c259] : memref<288xf32, #tpu.memory_space<smem>>
    %1159 = vector.broadcast %1158 : f32 to vector<16x16xf32>
    %1160 = arith.mulf %1103, %1159 : vector<16x16xf32>
    %c267 = arith.constant 267 : index
    %1161 = memref.load %arg2[%c267] : memref<288xf32, #tpu.memory_space<smem>>
    %1162 = vector.broadcast %1161 : f32 to vector<16x16xf32>
    %1163 = arith.mulf %1105, %1162 : vector<16x16xf32>
    %1164 = arith.addf %1160, %1163 : vector<16x16xf32>
    %c275 = arith.constant 275 : index
    %1165 = memref.load %arg2[%c275] : memref<288xf32, #tpu.memory_space<smem>>
    %1166 = vector.broadcast %1165 : f32 to vector<16x16xf32>
    %1167 = arith.mulf %1107, %1166 : vector<16x16xf32>
    %1168 = arith.addf %1164, %1167 : vector<16x16xf32>
    %c283 = arith.constant 283 : index
    %1169 = memref.load %arg2[%c283] : memref<288xf32, #tpu.memory_space<smem>>
    %1170 = vector.broadcast %1169 : f32 to vector<16x16xf32>
    %1171 = arith.mulf %1109, %1170 : vector<16x16xf32>
    %1172 = arith.addf %1168, %1171 : vector<16x16xf32>
    %1173 = arith.addf %1037, %1172 : vector<16x16xf32>
    %c260 = arith.constant 260 : index
    %1174 = memref.load %arg2[%c260] : memref<288xf32, #tpu.memory_space<smem>>
    %1175 = vector.broadcast %1174 : f32 to vector<16x16xf32>
    %1176 = arith.mulf %1103, %1175 : vector<16x16xf32>
    %c268 = arith.constant 268 : index
    %1177 = memref.load %arg2[%c268] : memref<288xf32, #tpu.memory_space<smem>>
    %1178 = vector.broadcast %1177 : f32 to vector<16x16xf32>
    %1179 = arith.mulf %1105, %1178 : vector<16x16xf32>
    %1180 = arith.addf %1176, %1179 : vector<16x16xf32>
    %c276 = arith.constant 276 : index
    %1181 = memref.load %arg2[%c276] : memref<288xf32, #tpu.memory_space<smem>>
    %1182 = vector.broadcast %1181 : f32 to vector<16x16xf32>
    %1183 = arith.mulf %1107, %1182 : vector<16x16xf32>
    %1184 = arith.addf %1180, %1183 : vector<16x16xf32>
    %c284 = arith.constant 284 : index
    %1185 = memref.load %arg2[%c284] : memref<288xf32, #tpu.memory_space<smem>>
    %1186 = vector.broadcast %1185 : f32 to vector<16x16xf32>
    %1187 = arith.mulf %1109, %1186 : vector<16x16xf32>
    %1188 = arith.addf %1184, %1187 : vector<16x16xf32>
    %1189 = arith.addf %1053, %1188 : vector<16x16xf32>
    %c261 = arith.constant 261 : index
    %1190 = memref.load %arg2[%c261] : memref<288xf32, #tpu.memory_space<smem>>
    %1191 = vector.broadcast %1190 : f32 to vector<16x16xf32>
    %1192 = arith.mulf %1103, %1191 : vector<16x16xf32>
    %c269 = arith.constant 269 : index
    %1193 = memref.load %arg2[%c269] : memref<288xf32, #tpu.memory_space<smem>>
    %1194 = vector.broadcast %1193 : f32 to vector<16x16xf32>
    %1195 = arith.mulf %1105, %1194 : vector<16x16xf32>
    %1196 = arith.addf %1192, %1195 : vector<16x16xf32>
    %c277 = arith.constant 277 : index
    %1197 = memref.load %arg2[%c277] : memref<288xf32, #tpu.memory_space<smem>>
    %1198 = vector.broadcast %1197 : f32 to vector<16x16xf32>
    %1199 = arith.mulf %1107, %1198 : vector<16x16xf32>
    %1200 = arith.addf %1196, %1199 : vector<16x16xf32>
    %c285 = arith.constant 285 : index
    %1201 = memref.load %arg2[%c285] : memref<288xf32, #tpu.memory_space<smem>>
    %1202 = vector.broadcast %1201 : f32 to vector<16x16xf32>
    %1203 = arith.mulf %1109, %1202 : vector<16x16xf32>
    %1204 = arith.addf %1200, %1203 : vector<16x16xf32>
    %1205 = arith.addf %1069, %1204 : vector<16x16xf32>
    %c262 = arith.constant 262 : index
    %1206 = memref.load %arg2[%c262] : memref<288xf32, #tpu.memory_space<smem>>
    %1207 = vector.broadcast %1206 : f32 to vector<16x16xf32>
    %1208 = arith.mulf %1103, %1207 : vector<16x16xf32>
    %c270 = arith.constant 270 : index
    %1209 = memref.load %arg2[%c270] : memref<288xf32, #tpu.memory_space<smem>>
    %1210 = vector.broadcast %1209 : f32 to vector<16x16xf32>
    %1211 = arith.mulf %1105, %1210 : vector<16x16xf32>
    %1212 = arith.addf %1208, %1211 : vector<16x16xf32>
    %c278 = arith.constant 278 : index
    %1213 = memref.load %arg2[%c278] : memref<288xf32, #tpu.memory_space<smem>>
    %1214 = vector.broadcast %1213 : f32 to vector<16x16xf32>
    %1215 = arith.mulf %1107, %1214 : vector<16x16xf32>
    %1216 = arith.addf %1212, %1215 : vector<16x16xf32>
    %c286 = arith.constant 286 : index
    %1217 = memref.load %arg2[%c286] : memref<288xf32, #tpu.memory_space<smem>>
    %1218 = vector.broadcast %1217 : f32 to vector<16x16xf32>
    %1219 = arith.mulf %1109, %1218 : vector<16x16xf32>
    %1220 = arith.addf %1216, %1219 : vector<16x16xf32>
    %1221 = arith.addf %1085, %1220 : vector<16x16xf32>
    %c263 = arith.constant 263 : index
    %1222 = memref.load %arg2[%c263] : memref<288xf32, #tpu.memory_space<smem>>
    %1223 = vector.broadcast %1222 : f32 to vector<16x16xf32>
    %1224 = arith.mulf %1103, %1223 : vector<16x16xf32>
    %c271 = arith.constant 271 : index
    %1225 = memref.load %arg2[%c271] : memref<288xf32, #tpu.memory_space<smem>>
    %1226 = vector.broadcast %1225 : f32 to vector<16x16xf32>
    %1227 = arith.mulf %1105, %1226 : vector<16x16xf32>
    %1228 = arith.addf %1224, %1227 : vector<16x16xf32>
    %c279 = arith.constant 279 : index
    %1229 = memref.load %arg2[%c279] : memref<288xf32, #tpu.memory_space<smem>>
    %1230 = vector.broadcast %1229 : f32 to vector<16x16xf32>
    %1231 = arith.mulf %1107, %1230 : vector<16x16xf32>
    %1232 = arith.addf %1228, %1231 : vector<16x16xf32>
    %c287 = arith.constant 287 : index
    %1233 = memref.load %arg2[%c287] : memref<288xf32, #tpu.memory_space<smem>>
    %1234 = vector.broadcast %1233 : f32 to vector<16x16xf32>
    %1235 = arith.mulf %1109, %1234 : vector<16x16xf32>
    %1236 = arith.addf %1232, %1235 : vector<16x16xf32>
    %1237 = arith.addf %1101, %1236 : vector<16x16xf32>
    %c0_139 = arith.constant 0 : index
    %1238 = memref.load %arg3[%c0_139] : memref<8xf32, #tpu.memory_space<smem>>
    %1239 = vector.broadcast %1238 : f32 to vector<16x16xf32>
    %1240 = arith.addf %1125, %1239 : vector<16x16xf32>
    %c0_140 = arith.constant 0 : index
    %c0_141 = arith.constant 0 : index
    %c0_142 = arith.constant 0 : index
    %c0_143 = arith.constant 0 : index
    %1241 = vector.load %arg4[%c0_140, %c0_141, %c0_142, %c0_143] : memref<1x8x16x16xf32, #tpu.memory_space<vmem>>, vector<1x1x16x16xf32>
    %1242 = vector.shape_cast %1241 : vector<1x1x16x16xf32> to vector<16x16xf32>
    %1243 = vector.shape_cast %1240 : vector<16x16xf32> to vector<1x1x16x16xf32>
    tpu.vector_store %arg4[%c0_140, %c0_141, %c0_142, %c0_143], %1243 {strides = array<i32>} : memref<1x8x16x16xf32, #tpu.memory_space<vmem>>, vector<1x1x16x16xf32>,
    %c1_144 = arith.constant 1 : index
    %1244 = memref.load %arg3[%c1_144] : memref<8xf32, #tpu.memory_space<smem>>
    %1245 = vector.broadcast %1244 : f32 to vector<16x16xf32>
    %1246 = arith.addf %1141, %1245 : vector<16x16xf32>
    %c0_145 = arith.constant 0 : index
    %c1_146 = arith.constant 1 : index
    %c0_147 = arith.constant 0 : index
    %c0_148 = arith.constant 0 : index
    %1247 = vector.load %arg4[%c0_145, %c1_146, %c0_147, %c0_148] : memref<1x8x16x16xf32, #tpu.memory_space<vmem>>, vector<1x1x16x16xf32>
    %1248 = vector.shape_cast %1247 : vector<1x1x16x16xf32> to vector<16x16xf32>
    %1249 = vector.shape_cast %1246 : vector<16x16xf32> to vector<1x1x16x16xf32>
    tpu.vector_store %arg4[%c0_145, %c1_146, %c0_147, %c0_148], %1249 {strides = array<i32>} : memref<1x8x16x16xf32, #tpu.memory_space<vmem>>, vector<1x1x16x16xf32>,
    %c2_149 = arith.constant 2 : index
    %1250 = memref.load %arg3[%c2_149] : memref<8xf32, #tpu.memory_space<smem>>
    %1251 = vector.broadcast %1250 : f32 to vector<16x16xf32>
    %1252 = arith.addf %1157, %1251 : vector<16x16xf32>
    %c0_150 = arith.constant 0 : index
    %c2_151 = arith.constant 2 : index
    %c0_152 = arith.constant 0 : index
    %c0_153 = arith.constant 0 : index
    %1253 = vector.load %arg4[%c0_150, %c2_151, %c0_152, %c0_153] : memref<1x8x16x16xf32, #tpu.memory_space<vmem>>, vector<1x1x16x16xf32>
    %1254 = vector.shape_cast %1253 : vector<1x1x16x16xf32> to vector<16x16xf32>
    %1255 = vector.shape_cast %1252 : vector<16x16xf32> to vector<1x1x16x16xf32>
    tpu.vector_store %arg4[%c0_150, %c2_151, %c0_152, %c0_153], %1255 {strides = array<i32>} : memref<1x8x16x16xf32, #tpu.memory_space<vmem>>, vector<1x1x16x16xf32>,
    %c3_154 = arith.constant 3 : index
    %1256 = memref.load %arg3[%c3_154] : memref<8xf32, #tpu.memory_space<smem>>
    %1257 = vector.broadcast %1256 : f32 to vector<16x16xf32>
    %1258 = arith.addf %1173, %1257 : vector<16x16xf32>
    %c0_155 = arith.constant 0 : index
    %c3_156 = arith.constant 3 : index
    %c0_157 = arith.constant 0 : index
    %c0_158 = arith.constant 0 : index
    %1259 = vector.load %arg4[%c0_155, %c3_156, %c0_157, %c0_158] : memref<1x8x16x16xf32, #tpu.memory_space<vmem>>, vector<1x1x16x16xf32>
    %1260 = vector.shape_cast %1259 : vector<1x1x16x16xf32> to vector<16x16xf32>
    %1261 = vector.shape_cast %1258 : vector<16x16xf32> to vector<1x1x16x16xf32>
    tpu.vector_store %arg4[%c0_155, %c3_156, %c0_157, %c0_158], %1261 {strides = array<i32>} : memref<1x8x16x16xf32, #tpu.memory_space<vmem>>, vector<1x1x16x16xf32>,
    %c4_159 = arith.constant 4 : index
    %1262 = memref.load %arg3[%c4_159] : memref<8xf32, #tpu.memory_space<smem>>
    %1263 = vector.broadcast %1262 : f32 to vector<16x16xf32>
    %1264 = arith.addf %1189, %1263 : vector<16x16xf32>
    %c0_160 = arith.constant 0 : index
    %c4_161 = arith.constant 4 : index
    %c0_162 = arith.constant 0 : index
    %c0_163 = arith.constant 0 : index
    %1265 = vector.load %arg4[%c0_160, %c4_161, %c0_162, %c0_163] : memref<1x8x16x16xf32, #tpu.memory_space<vmem>>, vector<1x1x16x16xf32>
    %1266 = vector.shape_cast %1265 : vector<1x1x16x16xf32> to vector<16x16xf32>
    %1267 = vector.shape_cast %1264 : vector<16x16xf32> to vector<1x1x16x16xf32>
    tpu.vector_store %arg4[%c0_160, %c4_161, %c0_162, %c0_163], %1267 {strides = array<i32>} : memref<1x8x16x16xf32, #tpu.memory_space<vmem>>, vector<1x1x16x16xf32>,
    %c5_164 = arith.constant 5 : index
    %1268 = memref.load %arg3[%c5_164] : memref<8xf32, #tpu.memory_space<smem>>
    %1269 = vector.broadcast %1268 : f32 to vector<16x16xf32>
    %1270 = arith.addf %1205, %1269 : vector<16x16xf32>
    %c0_165 = arith.constant 0 : index
    %c5_166 = arith.constant 5 : index
    %c0_167 = arith.constant 0 : index
    %c0_168 = arith.constant 0 : index
    %1271 = vector.load %arg4[%c0_165, %c5_166, %c0_167, %c0_168] : memref<1x8x16x16xf32, #tpu.memory_space<vmem>>, vector<1x1x16x16xf32>
    %1272 = vector.shape_cast %1271 : vector<1x1x16x16xf32> to vector<16x16xf32>
    %1273 = vector.shape_cast %1270 : vector<16x16xf32> to vector<1x1x16x16xf32>
    tpu.vector_store %arg4[%c0_165, %c5_166, %c0_167, %c0_168], %1273 {strides = array<i32>} : memref<1x8x16x16xf32, #tpu.memory_space<vmem>>, vector<1x1x16x16xf32>,
    %c6_169 = arith.constant 6 : index
    %1274 = memref.load %arg3[%c6_169] : memref<8xf32, #tpu.memory_space<smem>>
    %1275 = vector.broadcast %1274 : f32 to vector<16x16xf32>
    %1276 = arith.addf %1221, %1275 : vector<16x16xf32>
    %c0_170 = arith.constant 0 : index
    %c6_171 = arith.constant 6 : index
    %c0_172 = arith.constant 0 : index
    %c0_173 = arith.constant 0 : index
    %1277 = vector.load %arg4[%c0_170, %c6_171, %c0_172, %c0_173] : memref<1x8x16x16xf32, #tpu.memory_space<vmem>>, vector<1x1x16x16xf32>
    %1278 = vector.shape_cast %1277 : vector<1x1x16x16xf32> to vector<16x16xf32>
    %1279 = vector.shape_cast %1276 : vector<16x16xf32> to vector<1x1x16x16xf32>
    tpu.vector_store %arg4[%c0_170, %c6_171, %c0_172, %c0_173], %1279 {strides = array<i32>} : memref<1x8x16x16xf32, #tpu.memory_space<vmem>>, vector<1x1x16x16xf32>,
    %c7_174 = arith.constant 7 : index
    %1280 = memref.load %arg3[%c7_174] : memref<8xf32, #tpu.memory_space<smem>>
    %1281 = vector.broadcast %1280 : f32 to vector<16x16xf32>
    %1282 = arith.addf %1237, %1281 : vector<16x16xf32>
    %c0_175 = arith.constant 0 : index
    %c7_176 = arith.constant 7 : index
    %c0_177 = arith.constant 0 : index
    %c0_178 = arith.constant 0 : index
    %1283 = vector.load %arg4[%c0_175, %c7_176, %c0_177, %c0_178] : memref<1x8x16x16xf32, #tpu.memory_space<vmem>>, vector<1x1x16x16xf32>
    %1284 = vector.shape_cast %1283 : vector<1x1x16x16xf32> to vector<16x16xf32>
    %1285 = vector.shape_cast %1282 : vector<16x16xf32> to vector<1x1x16x16xf32>
    tpu.vector_store %arg4[%c0_175, %c7_176, %c0_177, %c0_178], %1285 {strides = array<i32>} : memref<1x8x16x16xf32, #tpu.memory_space<vmem>>, vector<1x1x16x16xf32>,
    return
  }
  func.func @transform_0(%arg0: i32) -> (i32, i32, i32, i32) {
    %c0_i32 = arith.constant 0 : i32
    %c0_i32_0 = arith.constant 0 : i32
    %c0_i32_1 = arith.constant 0 : i32
    %c0_i32_2 = arith.constant 0 : i32
    return %arg0, %c0_i32, %c0_i32_0, %c0_i32_1 : i32, i32, i32, i32
  }
  func.func @transform_1(%arg0: i32) -> i32 {
    %c0_i32 = arith.constant 0 : i32
    %c0_i32_0 = arith.constant 0 : i32
    return %c0_i32 : i32
  }
  func.func @transform_2(%arg0: i32) -> i32 {
    %c0_i32 = arith.constant 0 : i32
    %c0_i32_0 = arith.constant 0 : i32
    return %c0_i32 : i32
  }
  func.func @transform_3(%arg0: i32) -> (i32, i32, i32, i32) {
    %c0_i32 = arith.constant 0 : i32
    %c0_i32_0 = arith.constant 0 : i32
    %c0_i32_1 = arith.constant 0 : i32
    %c0_i32_2 = arith.constant 0 : i32
    return %arg0, %c0_i32, %c0_i32_0, %c0_i32_1 : i32, i32, i32, i32
  }
}

</mosaic_0001>

<llo_original>
// kernel: tpu_custom_call.1
$region0: #{tpu_custom_call.1}
  #allocation0 [shape = 'u32[]', space=smem, size = 0x4, offset = 0x4, fixed_abs, tag = 'smem constant byte address 0x4 - core index']
  #allocation1 [shape = 'u32[144,128]{1,0:T(1,128)}', space=vmem, size = 0x12000, scoped, tag = 'internal scratch']
  #allocation2 [shape = 'f32[4,18,18]{2,1,0:T(8,128)}', space=vmem, size = 0xc000, scoped, tag = 'scratch operand']
  %s0 = inlined_call_operand.hbm [shape: f32[2,4,16,16], index: 0, kind: input, shape index: {}]
  %s1 = inlined_call_operand.hbm [shape: f32[288], index: 1, kind: input, shape index: {}]
  %s2 = inlined_call_operand.vmem [shape: f32[8], index: 2, kind: input, shape index: {}]
  %s3 = inlined_call_operand.hbm [shape: f32[2,8,16,16], index: 3, kind: output, shape index: {}]
  %s4 = sld [smem:[#allocation0]]
  $region57: #{tpu_custom_call.1} parent=0
    _
  %s6 = ssub.s32 1, %s4
  %s7 = scalar_select 0, %s6, %s4
  $region1: #{tpu_custom_call.1} parent=0
    #allocation3 [shape = 'u8[65536]{0}', space=vmem, size = 0x10000, scoped, tag = 'input window, operand 0']
    #allocation4 [shape = 's32[2]{0}', space=sflag, size = 0x8, scoped, tag = 'scoped memory for tpu_custom_call.1']
    #allocation5 [shape = 's32[2]{0}', space=sflag, size = 0x8, scoped, tag = 'scoped memory for tpu_custom_call.1']
    #allocation6 [shape = 's32[2]{0}', space=sflag, size = 0x8, scoped, tag = 'scoped memory for tpu_custom_call.1']
    #allocation7 [shape = 's32[2]{0}', space=sflag, size = 0x8, scoped, tag = 'scoped memory for tpu_custom_call.1']
    #allocation8 [shape = 'u8[1536]{0}', space=smem, size = 0x600, scoped, tag = 'input window, operand 1, single buffered']
    #allocation9 [shape = 'u8[512]{0}', space=smem, size = 0x200, scoped, tag = 'input window, operand 2, single buffered']
    #allocation10 [shape = 'u8[131072]{0}', space=vmem, size = 0x20000, scoped, tag = 'output window, operand 0']
    %8 = vsyncpa [#allocation4], 0
    %s9 = scalar_lea.sflag [#allocation4], 1
    %10 = vsyncpa %s9, 0
    %11 = vsyncpa [#allocation6], 0
    %12 = vsyncpa [#allocation7], 0
    %13 = vsyncpa [#allocation5], 0
    %s14 = scalar_lea.sflag [#allocation5], 1
    %15 = vsyncpa %s14, 0
    loop: start=0, step=1, limit=4
    $region2: #{tpu_custom_call.1} parent=1 // loop_pre_header
      _
    $region3: #{tpu_custom_call.1} parent=1 // loop_header
      %s17 = sphi 0, %s21
      %p18 = scmp.ge.s32.totalorder %s17, 4
      %s27 = sphi 0, %s29
      %s30 = sphi 0, %s27
      %s31 = sphi 0, %s30
      %s47 = sphi 0, %s31
      %s51 = sphi 0, %s51
      %s53 = sphi 0, %s51
      %s54 = sphi 0, %s53
      %s68 = sphi 0, %s54
      %s72 = sphi 0, %s72
      %s74 = sphi 0, %s72
      %s75 = sphi 0, %s74
      %s89 = sphi 0, %s75
      %s95 = sphi 0, %s97
      %s98 = sphi 0, %s95
      %s99 = sphi 0, %s98
      %s115 = sphi 0, %s99
    $region4: #{tpu_custom_call.1} parent=1 // loop_header_branch
      %20 = sbr.rel (%p18) target = $region8
    $region5: #{tpu_custom_call.1} parent=1 // loop_body
      %s22 = ssub.s32 %s17, 1
      %s23 = ssub.s32 %s17, 2
      %s24 = sadd.s32 %s17, 1
      %s25 = ssub.s32 %s17, %s24
      %p26 = scmp.eq.s32.totalorder %s25, 0
      %s28 = sadd.s32 %s27, 1
      %s29 = scalar_select %p26, %s27, %s28
      %p32 = pneg %p26
      %p33 = scmp.eq.s32.totalorder %s17, 1
      %p34 = por %p32, %p33
      %p35 = scmp.ne.s32.totalorder %s27, %s30
      %p36 = scmp.eq.s32.totalorder %s17, 0
      %p37 = por %p35, %p36
      %p38 = scmp.ne.s32.totalorder %s27, %s30
      %p39 = scmp.eq.s32.totalorder %s22, 1
      %p40 = por %p38, %p39
      %p41 = scmp.ne.s32.totalorder %s30, %s31
      %p42 = scmp.eq.s32.totalorder %s22, 0
      %p43 = por %p41, %p42
      %p44 = scmp.ne.s32.totalorder %s30, %s31
      %p45 = scmp.eq.s32.totalorder %s23, 1
      %p46 = por %p44, %p45
      %p48 = scmp.ne.s32.totalorder %s31, %s47
      %p49 = scmp.eq.s32.totalorder %s23, 0
      %p50 = por %p48, %p49
      %s52 = sadd.s32 %s51, 1
      %p55 = scmp.eq.s32.totalorder %s17, 1
      %p56 = scmp.ne.s32.totalorder %s51, %s53
      %p57 = scmp.eq.s32.totalorder %s17, 0
      %p58 = por %p56, %p57
      %p59 = scmp.ne.s32.totalorder %s51, %s53
      %p60 = scmp.eq.s32.totalorder %s22, 1
      %p61 = por %p59, %p60
      %p62 = scmp.ne.s32.totalorder %s53, %s54
      %p63 = scmp.eq.s32.totalorder %s22, 0
      %p64 = por %p62, %p63
      %p65 = scmp.ne.s32.totalorder %s53, %s54
      %p66 = scmp.eq.s32.totalorder %s23, 1
      %p67 = por %p65, %p66
      %p69 = scmp.ne.s32.totalorder %s54, %s68
      %p70 = scmp.eq.s32.totalorder %s23, 0
      %p71 = por %p69, %p70
      %s73 = sadd.s32 %s72, 1
      %p76 = scmp.eq.s32.totalorder %s17, 1
      %p77 = scmp.ne.s32.totalorder %s72, %s74
      %p78 = scmp.eq.s32.totalorder %s17, 0
      %p79 = por %p77, %p78
      %p80 = scmp.ne.s32.totalorder %s72, %s74
      %p81 = scmp.eq.s32.totalorder %s22, 1
      %p82 = por %p80, %p81
      %p83 = scmp.ne.s32.totalorder %s74, %s75
      %p84 = scmp.eq.s32.totalorder %s22, 0
      %p85 = por %p83, %p84
      %p86 = scmp.ne.s32.totalorder %s74, %s75
      %p87 = scmp.eq.s32.totalorder %s23, 1
      %p88 = por %p86, %p87
      %p90 = scmp.ne.s32.totalorder %s75, %s89
      %p91 = scmp.eq.s32.totalorder %s23, 0
      %p92 = por %p90, %p91
      %s93 = ssub.s32 %s17, %s24
      %p94 = scmp.eq.s32.totalorder %s93, 0
      %s96 = sadd.s32 %s95, 1
      %s97 = scalar_select %p94, %s95, %s96
      %p100 = pneg %p94
      %p101 = scmp.eq.s32.totalorder %s17, 1
      %p102 = por %p100, %p101
      %p103 = scmp.ne.s32.totalorder %s95, %s98
      %p104 = scmp.eq.s32.totalorder %s17, 0
      %p105 = por %p103, %p104
      %p106 = scmp.ne.s32.totalorder %s95, %s98
      %p107 = scmp.eq.s32.totalorder %s22, 1
      %p108 = por %p106, %p107
      %p109 = scmp.ne.s32.totalorder %s98, %s99
      %p110 = scmp.eq.s32.totalorder %s22, 0
      %p111 = por %p109, %p110
      %p112 = scmp.ne.s32.totalorder %s98, %s99
      %p113 = scmp.eq.s32.totalorder %s23, 1
      %p114 = por %p112, %p113
      %p116 = scmp.ne.s32.totalorder %s99, %s115
      %p117 = scmp.eq.s32.totalorder %s23, 0
      %p118 = por %p116, %p117
      %p119 = scmp.le.s32.totalorder 1, %s17
      %p120 = scmp.lt.s32.totalorder %s17, 3
      %p121 = pnand %p119, %p120
      %p122 = pneg %p121
      // Predicated region
      $region9: #{tpu_custom_call.1} parent=5 // pred_check
        _
      $region10: #{tpu_custom_call.1} parent=5 // pred_check_branch
        %124 = sbr.rel (%p121) target = $region12
      $region11: #{tpu_custom_call.1} parent=5 // pred_region
        %s125 = ssub.s32 %s17, 1
        // Predicated region
        $region13: #{tpu_custom_call.1} parent=11 // pred_check
          %p126 = pneg %p64
        $region14: #{tpu_custom_call.1} parent=11 // pred_check_branch
          %128 = sbr.rel (%p126) target = $region16
        $region15: #{tpu_custom_call.1} parent=11 // pred_region
          %s130 = ssub.s32 48, 48
          %131 = vsyncadd [#allocation6], %s130
          %134 = dma.hbm_to_smem %s1, 48, [#allocation8], [#allocation6]
        $region16: #{tpu_custom_call.1} parent=11 // pred_fallthru
          _
        // Predicated region
        $region17: #{tpu_custom_call.1} parent=11 // pred_check
          %p135 = pneg %p85
        $region18: #{tpu_custom_call.1} parent=11 // pred_check_branch
          %137 = sbr.rel (%p135) target = $region20
        $region19: #{tpu_custom_call.1} parent=11 // pred_region
          %s139 = ssub.s32 16, 16
          %140 = vsyncadd [#allocation7], %s139
          %s142 = sshll.u32 %s2, 4
          %s143 = int_to_ptr.vmem [resolvable:$true] %s142
          %145 = dma.vmem_to_smem %s143, 16, [#allocation9], [#allocation7]
        $region20: #{tpu_custom_call.1} parent=11 // pred_fallthru
          _
      $region12: #{tpu_custom_call.1} parent=5 // pred_fallthru
        _
      %p146 = scmp.lt.s32.totalorder %s17, 2
      // Predicated region
      $region21: #{tpu_custom_call.1} parent=5 // pred_check
        %p147 = pneg %p146
      $region22: #{tpu_custom_call.1} parent=5 // pred_check_branch
        %149 = sbr.rel (%p147) target = $region24
      $region23: #{tpu_custom_call.1} parent=5 // pred_region
        // Predicated region
        $region25: #{tpu_custom_call.1} parent=23 // pred_check
          %p150 = pneg %p37
        $region26: #{tpu_custom_call.1} parent=23 // pred_check_branch
          %152 = sbr.rel (%p150) target = $region28
        $region27: #{tpu_custom_call.1} parent=23 // pred_region
          %s153 = sand.u32 %s27, 1
          %s154 = scalar_lea.sflag [#allocation4], %s153
          %s155 = sand.u32 %s27, 1
          %s156 = smul.addr %s155, 64
          %s157 = scalar_lea.vmem [#allocation3], %s156
          %s159 = ssub.s32 1024, 1024
          %160 = vsyncadd %s154, %s159
          %s161 = smul.addr %s17, 8
          %s162 = smul.addr %s161, 128
          %s163 = scalar_lea.hbm %s0, %s162
          %s164 = sshll.u32 %s157, 4
          %s165 = int_to_ptr.vmem [resolvable:$true] %s164
          %170 = dma.hbm_to_vmem [thread:$0]  %s163, 1024, %s165, %s154, 128, 128, 8
        $region28: #{tpu_custom_call.1} parent=23 // pred_fallthru
          _
      $region24: #{tpu_custom_call.1} parent=5 // pred_fallthru
        _
      %p171 = scmp.le.s32.totalorder 1, %s17
      %p172 = scmp.lt.s32.totalorder %s17, 3
      %p173 = pnand %p171, %p172
      %p174 = pneg %p173
      // Predicated region
      $region29: #{tpu_custom_call.1} parent=5 // pred_check
        _
      $region30: #{tpu_custom_call.1} parent=5 // pred_check_branch
        %176 = sbr.rel (%p173) target = $region32
      $region31: #{tpu_custom_call.1} parent=5 // pred_region
        %s177 = ssub.s32 %s17, 1
        %s178 = sand.u32 %s30, 1
        %s179 = scalar_lea.sflag [#allocation4], %s178
        %s180 = sand.u32 %s30, 1
        %s181 = smul.addr %s180, 64
        %s182 = scalar_lea.vmem [#allocation3], %s181
        // Predicated region
        $region33: #{tpu_custom_call.1} parent=31 // pred_check
          %p183 = pneg %p43
        $region34: #{tpu_custom_call.1} parent=31 // pred_check_branch
          %185 = sbr.rel (%p183) target = $region36
        $region35: #{tpu_custom_call.1} parent=31 // pred_region
          %186 = dma.done %s179, 1024
        $region36: #{tpu_custom_call.1} parent=31 // pred_fallthru
          _
        // Predicated region
        $region37: #{tpu_custom_call.1} parent=31 // pred_check
          %p187 = pneg %p64
        $region38: #{tpu_custom_call.1} parent=31 // pred_check_branch
          %189 = sbr.rel (%p187) target = $region40
        $region39: #{tpu_custom_call.1} parent=31 // pred_region
          %190 = dma.done [#allocation6], 48
        $region40: #{tpu_custom_call.1} parent=31 // pred_fallthru
          _
        // Predicated region
        $region41: #{tpu_custom_call.1} parent=31 // pred_check
          %p191 = pneg %p85
        $region42: #{tpu_custom_call.1} parent=31 // pred_check_branch
          %193 = sbr.rel (%p191) target = $region44
        $region43: #{tpu_custom_call.1} parent=31 // pred_region
          %194 = dma.done [#allocation7], 16
        $region44: #{tpu_custom_call.1} parent=31 // pred_fallthru
          _
        %195 = sfence
        %s196 = sand.u32 %s30, 1
        %s197 = scalar_lea.sflag [#allocation4], %s196
        %s198 = sand.u32 %s30, 1
        %s199 = smul.addr %s198, 64
        %s200 = scalar_lea.vmem [#allocation3], %s199
        %p201 = pneg %p43
        %p202 = pneg %p40
        %p203 = pneg %p64
        %p204 = pneg %p61
        %p205 = pneg %p85
        %p206 = pneg %p82
        %p207 = pneg %p111
        %p208 = pneg %p108
        %s209 = sand.u32 %s98, 1
        %s210 = scalar_lea.sflag [#allocation5], %s209
        %s211 = sand.u32 %s98, 1
        %s212 = smul.addr %s211, 128
        %s213 = scalar_lea.vmem [#allocation10], %s212
        %vm214 = vcmask 146432
        %215 = vst.msk [vmem:[#allocation2] sm:$0xff] %vm214, 0.0
        %216 = vst.msk [vmem:[#allocation2 + $0x8] sm:$0xff] %vm214, 0.0
        %vm217 = vcmask 140288
        %218 = vst.msk [vmem:[#allocation2 + $0x10] sm:$0x3] %vm217, 0.0
        %219 = vst.msk [vmem:[#allocation2 + $0x18] sm:$0xff] %vm214, 0.0
        %220 = vst.msk [vmem:[#allocation2 + $0x20] sm:$0xff] %vm214, 0.0
        %221 = vst.msk [vmem:[#allocation2 + $0x28] sm:$0x3] %vm217, 0.0
        %222 = vst.msk [vmem:[#allocation2 + $0x30] sm:$0xff] %vm214, 0.0
        %223 = vst.msk [vmem:[#allocation2 + $0x38] sm:$0xff] %vm214, 0.0
        %224 = vst.msk [vmem:[#allocation2 + $0x40] sm:$0x3] %vm217, 0.0
        %225 = vst.msk [vmem:[#allocation2 + $0x48] sm:$0xff] %vm214, 0.0
        %226 = vst.msk [vmem:[#allocation2 + $0x50] sm:$0xff] %vm214, 0.0
        %227 = vst.msk [vmem:[#allocation2 + $0x58] sm:$0x3] %vm217, 0.0
        %v228 = vld [vmem:[%s182] sm:$0xff]
        %v229 = vld [vmem:[%s182 + $0x8] sm:$0xff]
        %232 = vrot.lane.b32.xlu0 %v228, 1
        %v233 = vpop.permute.xlu0 %232
        %234 = vrot.lane.b32.xlu0 %v229, 1
        %v235 = vpop.permute.xlu0 %234
        %vm238 = vcmask 138248
        %239 = vst.msk [vmem:[#allocation2 + $0x1] sm:$0xff] %vm238, %v233
        %240 = vst.msk [vmem:[#allocation2 + $0x9] sm:$0xff] %vm238, %v235
        %s241 = scalar_lea.vmem %s182, 16 [#allocation3]
        %v242 = vld [vmem:[%s241] sm:$0xff]
        %v243 = vld [vmem:[%s241 + $0x8] sm:$0xff]
        %246 = vrot.lane.b32.xlu0 %v242, 1
        %v247 = vpop.permute.xlu0 %246
        %248 = vrot.lane.b32.xlu0 %v243, 1
        %v249 = vpop.permute.xlu0 %248
        %s252 = scalar_lea.vmem [#allocation2], 24
        %253 = vst.msk [vmem:[%s252 + $0x1] sm:$0xff] %vm238, %v247
        %254 = vst.msk [vmem:[%s252 + $0x9] sm:$0xff] %vm238, %v249
        %s255 = scalar_lea.vmem %s182, 32 [#allocation3]
        %v256 = vld [vmem:[%s255] sm:$0xff]
        %v257 = vld [vmem:[%s255 + $0x8] sm:$0xff]
        %260 = vrot.lane.b32.xlu0 %v256, 1
        %v261 = vpop.permute.xlu0 %260
        %262 = vrot.lane.b32.xlu0 %v257, 1
        %v263 = vpop.permute.xlu0 %262
        %s266 = scalar_lea.vmem [#allocation2], 48
        %267 = vst.msk [vmem:[%s266 + $0x1] sm:$0xff] %vm238, %v261
        %268 = vst.msk [vmem:[%s266 + $0x9] sm:$0xff] %vm238, %v263
        %s269 = scalar_lea.vmem %s182, 48 [#allocation3]
        %v270 = vld [vmem:[%s269] sm:$0xff]
        %v271 = vld [vmem:[%s269 + $0x8] sm:$0xff]
        %274 = vrot.lane.b32.xlu0 %v270, 1
        %v275 = vpop.permute.xlu0 %274
        %276 = vrot.lane.b32.xlu0 %v271, 1
        %v277 = vpop.permute.xlu0 %276
        %s280 = scalar_lea.vmem [#allocation2], 72
        %281 = vst.msk [vmem:[%s280 + $0x1] sm:$0xff] %vm238, %v275
        %282 = vst.msk [vmem:[%s280 + $0x9] sm:$0xff] %vm238, %v277
        %v283 = vld [vmem:[#allocation2] sm:$0xff]
        %v284 = vld [vmem:[#allocation2 + $0x8] sm:$0xff]
        %v285 = vld [vmem:[%s252] sm:$0xff]
        %v286 = vld [vmem:[%s252 + $0x8] sm:$0xff]
        %v287 = vld [vmem:[%s266] sm:$0xff]
        %v288 = vld [vmem:[%s266 + $0x8] sm:$0xff]
        %v289 = vld [vmem:[%s280] sm:$0xff]
        %v290 = vld [vmem:[%s280 + $0x8] sm:$0xff]
        %s291 = sld [smem:[#allocation8]]
        %v292 = vstv %s291
        %v293 = vmul.f32 %v283, %v292
        %v294 = vmul.f32 %v284, %v292
        %s295 = sld [smem:[#allocation8 + $0x8]]
        %v296 = vstv %s295
        %v297 = vmul.f32 %v285, %v296
        %v298 = vmul.f32 %v286, %v296
        %v299 = vadd.f32 %v293, %v297
        %v300 = vadd.f32 %v294, %v298
        %s301 = sld [smem:[#allocation8 + $0x10]]
        %v302 = vstv %s301
        %v303 = vmul.f32 %v287, %v302
        %v304 = vmul.f32 %v288, %v302
        %v305 = vadd.f32 %v299, %v303
        %v306 = vadd.f32 %v300, %v304
        %s307 = sld [smem:[#allocation8 + $0x18]]
        %v308 = vstv %s307
        %v309 = vmul.f32 %v289, %v308
        %v310 = vmul.f32 %v290, %v308
        %v311 = vadd.f32 %v305, %v309
        %v312 = vadd.f32 %v306, %v310
        %s313 = sld [smem:[#allocation8 + $0x1]]
        %v314 = vstv %s313
        %v315 = vmul.f32 %v283, %v314
        %v316 = vmul.f32 %v284, %v314
        %s317 = sld [smem:[#allocation8 + $0x9]]
        %v318 = vstv %s317
        %v319 = vmul.f32 %v285, %v318
        %v320 = vmul.f32 %v286, %v318
        %v321 = vadd.f32 %v315, %v319
        %v322 = vadd.f32 %v316, %v320
        %s323 = sld [smem:[#allocation8 + $0x11]]
        %v324 = vstv %s323
        %v325 = vmul.f32 %v287, %v324
        %v326 = vmul.f32 %v288, %v324
        %v327 = vadd.f32 %v321, %v325
        %v328 = vadd.f32 %v322, %v326
        %s329 = sld [smem:[#allocation8 + $0x19]]
        %v330 = vstv %s329
        %v331 = vmul.f32 %v289, %v330
        %v332 = vmul.f32 %v290, %v330
        %v333 = vadd.f32 %v327, %v331
        %v334 = vadd.f32 %v328, %v332
        %s335 = sld [smem:[#allocation8 + $0x2]]
        %v336 = vstv %s335
        %v337 = vmul.f32 %v283, %v336
        %v338 = vmul.f32 %v284, %v336
        %s339 = sld [smem:[#allocation8 + $0xa]]
        %v340 = vstv %s339
        %v341 = vmul.f32 %v285, %v340
        %v342 = vmul.f32 %v286, %v340
        %v343 = vadd.f32 %v337, %v341
        %v344 = vadd.f32 %v338, %v342
        %s345 = sld [smem:[#allocation8 + $0x12]]
        %v346 = vstv %s345
        %v347 = vmul.f32 %v287, %v346
        %v348 = vmul.f32 %v288, %v346
        %v349 = vadd.f32 %v343, %v347
        %v350 = vadd.f32 %v344, %v348
        %s351 = sld [smem:[#allocation8 + $0x1a]]
        %v352 = vstv %s351
        %v353 = vmul.f32 %v289, %v352
        %v354 = vmul.f32 %v290, %v352
        %v355 = vadd.f32 %v349, %v353
        %v356 = vadd.f32 %v350, %v354
        %s357 = sld [smem:[#allocation8 + $0x3]]
        %v358 = vstv %s357
        %v359 = vmul.f32 %v283, %v358
        %v360 = vmul.f32 %v284, %v358
        %s361 = sld [smem:[#allocation8 + $0xb]]
        %v362 = vstv %s361
        %v363 = vmul.f32 %v285, %v362
        %v364 = vmul.f32 %v286, %v362
        %v365 = vadd.f32 %v359, %v363
        %v366 = vadd.f32 %v360, %v364
        %s367 = sld [smem:[#allocation8 + $0x13]]
        %v368 = vstv %s367
        %v369 = vmul.f32 %v287, %v368
        %v370 = vmul.f32 %v288, %v368
        %v371 = vadd.f32 %v365, %v369
        %v372 = vadd.f32 %v366, %v370
        %s373 = sld [smem:[#allocation8 + $0x1b]]
        %v374 = vstv %s373
        %v375 = vmul.f32 %v289, %v374
        %v376 = vmul.f32 %v290, %v374
        %v377 = vadd.f32 %v371, %v375
        %v378 = vadd.f32 %v372, %v376
        %s379 = sld [smem:[#allocation8 + $0x4]]
        %v380 = vstv %s379
        %v381 = vmul.f32 %v283, %v380
        %v382 = vmul.f32 %v284, %v380
        %s383 = sld [smem:[#allocation8 + $0xc]]
        %v384 = vstv %s383
        %v385 = vmul.f32 %v285, %v384
        %v386 = vmul.f32 %v286, %v384
        %v387 = vadd.f32 %v381, %v385
        %v388 = vadd.f32 %v382, %v386
        %s389 = sld [smem:[#allocation8 + $0x14]]
        %v390 = vstv %s389
        %v391 = vmul.f32 %v287, %v390
        %v392 = vmul.f32 %v288, %v390
        %v393 = vadd.f32 %v387, %v391
        %v394 = vadd.f32 %v388, %v392
        %s395 = sld [smem:[#allocation8 + $0x1c]]
        %v396 = vstv %s395
        %v397 = vmul.f32 %v289, %v396
        %v398 = vmul.f32 %v290, %v396
        %v399 = vadd.f32 %v393, %v397
        %v400 = vadd.f32 %v394, %v398
        %s401 = sld [smem:[#allocation8 + $0x5]]
        %v402 = vstv %s401
        %v403 = vmul.f32 %v283, %v402
        %v404 = vmul.f32 %v284, %v402
        %s405 = sld [smem:[#allocation8 + $0xd]]
        %v406 = vstv %s405
        %v407 = vmul.f32 %v285, %v406
        %v408 = vmul.f32 %v286, %v406
        %v409 = vadd.f32 %v403, %v407
        %v410 = vadd.f32 %v404, %v408
        %s411 = sld [smem:[#allocation8 + $0x15]]
        %v412 = vstv %s411
        %v413 = vmul.f32 %v287, %v412
        %v414 = vmul.f32 %v288, %v412
        %v415 = vadd.f32 %v409, %v413
        %v416 = vadd.f32 %v410, %v414
        %s417 = sld [smem:[#allocation8 + $0x1d]]
        %v418 = vstv %s417
        %v419 = vmul.f32 %v289, %v418
        %v420 = vmul.f32 %v290, %v418
        %v421 = vadd.f32 %v415, %v419
        %v422 = vadd.f32 %v416, %v420
        %s423 = sld [smem:[#allocation8 + $0x6]]
        %v424 = vstv %s423
        %v425 = vmul.f32 %v283, %v424
        %v426 = vmul.f32 %v284, %v424
        %s427 = sld [smem:[#allocation8 + $0xe]]
        %v428 = vstv %s427
        %v429 = vmul.f32 %v285, %v428
        %v430 = vmul.f32 %v286, %v428
        %v431 = vadd.f32 %v425, %v429
        %v432 = vadd.f32 %v426, %v430
        %s433 = sld [smem:[#allocation8 + $0x16]]
        %v434 = vstv %s433
        %v435 = vmul.f32 %v287, %v434
        %v436 = vmul.f32 %v288, %v434
        %v437 = vadd.f32 %v431, %v435
        %v438 = vadd.f32 %v432, %v436
        %s439 = sld [smem:[#allocation8 + $0x1e]]
        %v440 = vstv %s439
        %v441 = vmul.f32 %v289, %v440
        %v442 = vmul.f32 %v290, %v440
        %v443 = vadd.f32 %v437, %v441
        %v444 = vadd.f32 %v438, %v442
        %s445 = sld [smem:[#allocation8 + $0x7]]
        %v446 = vstv %s445
        %v447 = vmul.f32 %v283, %v446
        %v448 = vmul.f32 %v284, %v446
        %s449 = sld [smem:[#allocation8 + $0xf]]
        %v450 = vstv %s449
        %v451 = vmul.f32 %v285, %v450
        %v452 = vmul.f32 %v286, %v450
        %v453 = vadd.f32 %v447, %v451
        %v454 = vadd.f32 %v448, %v452
        %s455 = sld [smem:[#allocation8 + $0x17]]
        %v456 = vstv %s455
        %v457 = vmul.f32 %v287, %v456
        %v458 = vmul.f32 %v288, %v456
        %v459 = vadd.f32 %v453, %v457
        %v460 = vadd.f32 %v454, %v458
        %s461 = sld [smem:[#allocation8 + $0x1f]]
        %v462 = vstv %s461
        %v463 = vmul.f32 %v289, %v462
        %v464 = vmul.f32 %v290, %v462
        %v465 = vadd.f32 %v459, %v463
        %v466 = vadd.f32 %v460, %v464
        %s467 = sld [smem:[#allocation8 + $0x20]]
        %v468 = vstv %s467
        %v469 = vmul.f32 %v283, %v468
        %v470 = vmul.f32 %v284, %v468
        %s471 = sld [smem:[#allocation8 + $0x28]]
        %v472 = vstv %s471
        %v473 = vmul.f32 %v285, %v472
        %v474 = vmul.f32 %v286, %v472
        %v475 = vadd.f32 %v469, %v473
        %v476 = vadd.f32 %v470, %v474
        %s477 = sld [smem:[#allocation8 + $0x30]]
        %v478 = vstv %s477
        %v479 = vmul.f32 %v287, %v478
        %v480 = vmul.f32 %v288, %v478
        %v481 = vadd.f32 %v475, %v479
        %v482 = vadd.f32 %v476, %v480
        %s483 = sld [smem:[#allocation8 + $0x38]]
        %v484 = vstv %s483
        %v485 = vmul.f32 %v289, %v484
        %v486 = vmul.f32 %v290, %v484
        %v487 = vadd.f32 %v481, %v485
        %v488 = vadd.f32 %v482, %v486
        %491 = vrot.lane.b32.xlu0 %v487, 127
        %v492 = vpop.permute.xlu0 %491
        %493 = vrot.lane.b32.xlu0 %v488, 127
        %v494 = vpop.permute.xlu0 %493
        %v497 = vadd.f32 %v311, %v492
        %v498 = vadd.f32 %v312, %v494
        %s499 = sld [smem:[#allocation8 + $0x21]]
        %v500 = vstv %s499
        %v501 = vmul.f32 %v283, %v500
        %v502 = vmul.f32 %v284, %v500
        %s503 = sld [smem:[#allocation8 + $0x29]]
        %v504 = vstv %s503
        %v505 = vmul.f32 %v285, %v504
        %v506 = vmul.f32 %v286, %v504
        %v507 = vadd.f32 %v501, %v505
        %v508 = vadd.f32 %v502, %v506
        %s509 = sld [smem:[#allocation8 + $0x31]]
        %v510 = vstv %s509
        %v511 = vmul.f32 %v287, %v510
        %v512 = vmul.f32 %v288, %v510
        %v513 = vadd.f32 %v507, %v511
        %v514 = vadd.f32 %v508, %v512
        %s515 = sld [smem:[#allocation8 + $0x39]]
        %v516 = vstv %s515
        %v517 = vmul.f32 %v289, %v516
        %v518 = vmul.f32 %v290, %v516
        %v519 = vadd.f32 %v513, %v517
        %v520 = vadd.f32 %v514, %v518
        %523 = vrot.lane.b32.xlu0 %v519, 127
        %v524 = vpop.permute.xlu0 %523
        %525 = vrot.lane.b32.xlu0 %v520, 127
        %v526 = vpop.permute.xlu0 %525
        %v529 = vadd.f32 %v333, %v524
        %v530 = vadd.f32 %v334, %v526
        %s531 = sld [smem:[#allocation8 + $0x22]]
        %v532 = vstv %s531
        %v533 = vmul.f32 %v283, %v532
        %v534 = vmul.f32 %v284, %v532
        %s535 = sld [smem:[#allocation8 + $0x2a]]
        %v536 = vstv %s535
        %v537 = vmul.f32 %v285, %v536
        %v538 = vmul.f32 %v286, %v536
        %v539 = vadd.f32 %v533, %v537
        %v540 = vadd.f32 %v534, %v538
        %s541 = sld [smem:[#allocation8 + $0x32]]
        %v542 = vstv %s541
        %v543 = vmul.f32 %v287, %v542
        %v544 = vmul.f32 %v288, %v542
        %v545 = vadd.f32 %v539, %v543
        %v546 = vadd.f32 %v540, %v544
        %s547 = sld [smem:[#allocation8 + $0x3a]]
        %v548 = vstv %s547
        %v549 = vmul.f32 %v289, %v548
        %v550 = vmul.f32 %v290, %v548
        %v551 = vadd.f32 %v545, %v549
        %v552 = vadd.f32 %v546, %v550
        %555 = vrot.lane.b32.xlu0 %v551, 127
        %v556 = vpop.permute.xlu0 %555
        %557 = vrot.lane.b32.xlu0 %v552, 127
        %v558 = vpop.permute.xlu0 %557
        %v561 = vadd.f32 %v355, %v556
        %v562 = vadd.f32 %v356, %v558
        %s563 = sld [smem:[#allocation8 + $0x23]]
        %v564 = vstv %s563
        %v565 = vmul.f32 %v283, %v564
        %v566 = vmul.f32 %v284, %v564
        %s567 = sld [smem:[#allocation8 + $0x2b]]
        %v568 = vstv %s567
        %v569 = vmul.f32 %v285, %v568
        %v570 = vmul.f32 %v286, %v568
        %v571 = vadd.f32 %v565, %v569
        %v572 = vadd.f32 %v566, %v570
        %s573 = sld [smem:[#allocation8 + $0x33]]
        %v574 = vstv %s573
        %v575 = vmul.f32 %v287, %v574
        %v576 = vmul.f32 %v288, %v574
        %v577 = vadd.f32 %v571, %v575
        %v578 = vadd.f32 %v572, %v576
        %s579 = sld [smem:[#allocation8 + $0x3b]]
        %v580 = vstv %s579
        %v581 = vmul.f32 %v289, %v580
        %v582 = vmul.f32 %v290, %v580
        %v583 = vadd.f32 %v577, %v581
        %v584 = vadd.f32 %v578, %v582
        %587 = vrot.lane.b32.xlu0 %v583, 127
        %v588 = vpop.permute.xlu0 %587
        %589 = vrot.lane.b32.xlu0 %v584, 127
        %v590 = vpop.permute.xlu0 %589
        %v593 = vadd.f32 %v377, %v588
        %v594 = vadd.f32 %v378, %v590
        %s595 = sld [smem:[#allocation8 + $0x24]]
        %v596 = vstv %s595
        %v597 = vmul.f32 %v283, %v596
        %v598 = vmul.f32 %v284, %v596
        %s599 = sld [smem:[#allocation8 + $0x2c]]
        %v600 = vstv %s599
        %v601 = vmul.f32 %v285, %v600
        %v602 = vmul.f32 %v286, %v600
        %v603 = vadd.f32 %v597, %v601
        %v604 = vadd.f32 %v598, %v602
        %s605 = sld [smem:[#allocation8 + $0x34]]
        %v606 = vstv %s605
        %v607 = vmul.f32 %v287, %v606
        %v608 = vmul.f32 %v288, %v606
        %v609 = vadd.f32 %v603, %v607
        %v610 = vadd.f32 %v604, %v608
        %s611 = sld [smem:[#allocation8 + $0x3c]]
        %v612 = vstv %s611
        %v613 = vmul.f32 %v289, %v612
        %v614 = vmul.f32 %v290, %v612
        %v615 = vadd.f32 %v609, %v613
        %v616 = vadd.f32 %v610, %v614
        %619 = vrot.lane.b32.xlu0 %v615, 127
        %v620 = vpop.permute.xlu0 %619
        %621 = vrot.lane.b32.xlu0 %v616, 127
        %v622 = vpop.permute.xlu0 %621
        %v625 = vadd.f32 %v399, %v620
        %v626 = vadd.f32 %v400, %v622
        %s627 = sld [smem:[#allocation8 + $0x25]]
        %v628 = vstv %s627
        %v629 = vmul.f32 %v283, %v628
        %v630 = vmul.f32 %v284, %v628
        %s631 = sld [smem:[#allocation8 + $0x2d]]
        %v632 = vstv %s631
        %v633 = vmul.f32 %v285, %v632
        %v634 = vmul.f32 %v286, %v632
        %v635 = vadd.f32 %v629, %v633
        %v636 = vadd.f32 %v630, %v634
        %s637 = sld [smem:[#allocation8 + $0x35]]
        %v638 = vstv %s637
        %v639 = vmul.f32 %v287, %v638
        %v640 = vmul.f32 %v288, %v638
        %v641 = vadd.f32 %v635, %v639
        %v642 = vadd.f32 %v636, %v640
        %s643 = sld [smem:[#allocation8 + $0x3d]]
        %v644 = vstv %s643
        %v645 = vmul.f32 %v289, %v644
        %v646 = vmul.f32 %v290, %v644
        %v647 = vadd.f32 %v641, %v645
        %v648 = vadd.f32 %v642, %v646
        %651 = vrot.lane.b32.xlu0 %v647, 127
        %v652 = vpop.permute.xlu0 %651
        %653 = vrot.lane.b32.xlu0 %v648, 127
        %v654 = vpop.permute.xlu0 %653
        %v657 = vadd.f32 %v421, %v652
        %v658 = vadd.f32 %v422, %v654
        %s659 = sld [smem:[#allocation8 + $0x26]]
        %v660 = vstv %s659
        %v661 = vmul.f32 %v283, %v660
        %v662 = vmul.f32 %v284, %v660
        %s663 = sld [smem:[#allocation8 + $0x2e]]
        %v664 = vstv %s663
        %v665 = vmul.f32 %v285, %v664
        %v666 = vmul.f32 %v286, %v664
        %v667 = vadd.f32 %v661, %v665
        %v668 = vadd.f32 %v662, %v666
        %s669 = sld [smem:[#allocation8 + $0x36]]
        %v670 = vstv %s669
        %v671 = vmul.f32 %v287, %v670
        %v672 = vmul.f32 %v288, %v670
        %v673 = vadd.f32 %v667, %v671
        %v674 = vadd.f32 %v668, %v672
        %s675 = sld [smem:[#allocation8 + $0x3e]]
        %v676 = vstv %s675
        %v677 = vmul.f32 %v289, %v676
        %v678 = vmul.f32 %v290, %v676
        %v679 = vadd.f32 %v673, %v677
        %v680 = vadd.f32 %v674, %v678
        %683 = vrot.lane.b32.xlu0 %v679, 127
        %v684 = vpop.permute.xlu0 %683
        %685 = vrot.lane.b32.xlu0 %v680, 127
        %v686 = vpop.permute.xlu0 %685
        %v689 = vadd.f32 %v443, %v684
        %v690 = vadd.f32 %v444, %v686
        %s691 = sld [smem:[#allocation8 + $0x27]]
        %v692 = vstv %s691
        %v693 = vmul.f32 %v283, %v692
        %v694 = vmul.f32 %v284, %v692
        %s695 = sld [smem:[#allocation8 + $0x2f]]
        %v696 = vstv %s695
        %v697 = vmul.f32 %v285, %v696
        %v698 = vmul.f32 %v286, %v696
        %v699 = vadd.f32 %v693, %v697
        %v700 = vadd.f32 %v694, %v698
        %s701 = sld [smem:[#allocation8 + $0x37]]
        %v702 = vstv %s701
        %v703 = vmul.f32 %v287, %v702
        %v704 = vmul.f32 %v288, %v702
        %v705 = vadd.f32 %v699, %v703
        %v706 = vadd.f32 %v700, %v704
        %s707 = sld [smem:[#allocation8 + $0x3f]]
        %v708 = vstv %s707
        %v709 = vmul.f32 %v289, %v708
        %v710 = vmul.f32 %v290, %v708
        %v711 = vadd.f32 %v705, %v709
        %v712 = vadd.f32 %v706, %v710
        %715 = vrot.lane.b32.xlu0 %v711, 127
        %v716 = vpop.permute.xlu0 %715
        %717 = vrot.lane.b32.xlu0 %v712, 127
        %v718 = vpop.permute.xlu0 %717
        %v721 = vadd.f32 %v465, %v716
        %v722 = vadd.f32 %v466, %v718
        %s723 = sld [smem:[#allocation8 + $0x40]]
        %v724 = vstv %s723
        %v725 = vmul.f32 %v283, %v724
        %v726 = vmul.f32 %v284, %v724
        %s727 = sld [smem:[#allocation8 + $0x48]]
        %v728 = vstv %s727
        %v729 = vmul.f32 %v285, %v728
        %v730 = vmul.f32 %v286, %v728
        %v731 = vadd.f32 %v725, %v729
        %v732 = vadd.f32 %v726, %v730
        %s733 = sld [smem:[#allocation8 + $0x50]]
        %v734 = vstv %s733
        %v735 = vmul.f32 %v287, %v734
        %v736 = vmul.f32 %v288, %v734
        %v737 = vadd.f32 %v731, %v735
        %v738 = vadd.f32 %v732, %v736
        %s739 = sld [smem:[#allocation8 + $0x58]]
        %v740 = vstv %s739
        %v741 = vmul.f32 %v289, %v740
        %v742 = vmul.f32 %v290, %v740
        %v743 = vadd.f32 %v737, %v741
        %v744 = vadd.f32 %v738, %v742
        %747 = vrot.lane.b32.xlu0 %v743, 126
        %v748 = vpop.permute.xlu0 %747
        %749 = vrot.lane.b32.xlu0 %v744, 126
        %v750 = vpop.permute.xlu0 %749
        %v753 = vadd.f32 %v497, %v748
        %v754 = vadd.f32 %v498, %v750
        %s755 = sld [smem:[#allocation8 + $0x41]]
        %v756 = vstv %s755
        %v757 = vmul.f32 %v283, %v756
        %v758 = vmul.f32 %v284, %v756
        %s759 = sld [smem:[#allocation8 + $0x49]]
        %v760 = vstv %s759
        %v761 = vmul.f32 %v285, %v760
        %v762 = vmul.f32 %v286, %v760
        %v763 = vadd.f32 %v757, %v761
        %v764 = vadd.f32 %v758, %v762
        %s765 = sld [smem:[#allocation8 + $0x51]]
        %v766 = vstv %s765
        %v767 = vmul.f32 %v287, %v766
        %v768 = vmul.f32 %v288, %v766
        %v769 = vadd.f32 %v763, %v767
        %v770 = vadd.f32 %v764, %v768
        %s771 = sld [smem:[#allocation8 + $0x59]]
        %v772 = vstv %s771
        %v773 = vmul.f32 %v289, %v772
        %v774 = vmul.f32 %v290, %v772
        %v775 = vadd.f32 %v769, %v773
        %v776 = vadd.f32 %v770, %v774
        %779 = vrot.lane.b32.xlu0 %v775, 126
        %v780 = vpop.permute.xlu0 %779
        %781 = vrot.lane.b32.xlu0 %v776, 126
        %v782 = vpop.permute.xlu0 %781
        %v785 = vadd.f32 %v529, %v780
        %v786 = vadd.f32 %v530, %v782
        %s787 = sld [smem:[#allocation8 + $0x42]]
        %v788 = vstv %s787
        %v789 = vmul.f32 %v283, %v788
        %v790 = vmul.f32 %v284, %v788
        %s791 = sld [smem:[#allocation8 + $0x4a]]
        %v792 = vstv %s791
        %v793 = vmul.f32 %v285, %v792
        %v794 = vmul.f32 %v286, %v792
        %v795 = vadd.f32 %v789, %v793
        %v796 = vadd.f32 %v790, %v794
        %s797 = sld [smem:[#allocation8 + $0x52]]
        %v798 = vstv %s797
        %v799 = vmul.f32 %v287, %v798
        %v800 = vmul.f32 %v288, %v798
        %v801 = vadd.f32 %v795, %v799
        %v802 = vadd.f32 %v796, %v800
        %s803 = sld [smem:[#allocation8 + $0x5a]]
        %v804 = vstv %s803
        %v805 = vmul.f32 %v289, %v804
        %v806 = vmul.f32 %v290, %v804
        %v807 = vadd.f32 %v801, %v805
        %v808 = vadd.f32 %v802, %v806
        %811 = vrot.lane.b32.xlu0 %v807, 126
        %v812 = vpop.permute.xlu0 %811
        %813 = vrot.lane.b32.xlu0 %v808, 126
        %v814 = vpop.permute.xlu0 %813
        %v817 = vadd.f32 %v561, %v812
        %v818 = vadd.f32 %v562, %v814
        %s819 = sld [smem:[#allocation8 + $0x43]]
        %v820 = vstv %s819
        %v821 = vmul.f32 %v283, %v820
        %v822 = vmul.f32 %v284, %v820
        %s823 = sld [smem:[#allocation8 + $0x4b]]
        %v824 = vstv %s823
        %v825 = vmul.f32 %v285, %v824
        %v826 = vmul.f32 %v286, %v824
        %v827 = vadd.f32 %v821, %v825
        %v828 = vadd.f32 %v822, %v826
        %s829 = sld [smem:[#allocation8 + $0x53]]
        %v830 = vstv %s829
        %v831 = vmul.f32 %v287, %v830
        %v832 = vmul.f32 %v288, %v830
        %v833 = vadd.f32 %v827, %v831
        %v834 = vadd.f32 %v828, %v832
        %s835 = sld [smem:[#allocation8 + $0x5b]]
        %v836 = vstv %s835
        %v837 = vmul.f32 %v289, %v836
        %v838 = vmul.f32 %v290, %v836
        %v839 = vadd.f32 %v833, %v837
        %v840 = vadd.f32 %v834, %v838
        %843 = vrot.lane.b32.xlu0 %v839, 126
        %v844 = vpop.permute.xlu0 %843
        %845 = vrot.lane.b32.xlu0 %v840, 126
        %v846 = vpop.permute.xlu0 %845
        %v849 = vadd.f32 %v593, %v844
        %v850 = vadd.f32 %v594, %v846
        %s851 = sld [smem:[#allocation8 + $0x44]]
        %v852 = vstv %s851
        %v853 = vmul.f32 %v283, %v852
        %v854 = vmul.f32 %v284, %v852
        %s855 = sld [smem:[#allocation8 + $0x4c]]
        %v856 = vstv %s855
        %v857 = vmul.f32 %v285, %v856
        %v858 = vmul.f32 %v286, %v856
        %v859 = vadd.f32 %v853, %v857
        %v860 = vadd.f32 %v854, %v858
        %s861 = sld [smem:[#allocation8 + $0x54]]
        %v862 = vstv %s861
        %v863 = vmul.f32 %v287, %v862
        %v864 = vmul.f32 %v288, %v862
        %v865 = vadd.f32 %v859, %v863
        %v866 = vadd.f32 %v860, %v864
        %s867 = sld [smem:[#allocation8 + $0x5c]]
        %v868 = vstv %s867
        %v869 = vmul.f32 %v289, %v868
        %v870 = vmul.f32 %v290, %v868
        %v871 = vadd.f32 %v865, %v869
        %v872 = vadd.f32 %v866, %v870
        %875 = vrot.lane.b32.xlu0 %v871, 126
        %v876 = vpop.permute.xlu0 %875
        %877 = vrot.lane.b32.xlu0 %v872, 126
        %v878 = vpop.permute.xlu0 %877
        %v881 = vadd.f32 %v625, %v876
        %v882 = vadd.f32 %v626, %v878
        %s883 = sld [smem:[#allocation8 + $0x45]]
        %v884 = vstv %s883
        %v885 = vmul.f32 %v283, %v884
        %v886 = vmul.f32 %v284, %v884
        %s887 = sld [smem:[#allocation8 + $0x4d]]
        %v888 = vstv %s887
        %v889 = vmul.f32 %v285, %v888
        %v890 = vmul.f32 %v286, %v888
        %v891 = vadd.f32 %v885, %v889
        %v892 = vadd.f32 %v886, %v890
        %s893 = sld [smem:[#allocation8 + $0x55]]
        %v894 = vstv %s893
        %v895 = vmul.f32 %v287, %v894
        %v896 = vmul.f32 %v288, %v894
        %v897 = vadd.f32 %v891, %v895
        %v898 = vadd.f32 %v892, %v896
        %s899 = sld [smem:[#allocation8 + $0x5d]]
        %v900 = vstv %s899
        %v901 = vmul.f32 %v289, %v900
        %v902 = vmul.f32 %v290, %v900
        %v903 = vadd.f32 %v897, %v901
        %v904 = vadd.f32 %v898, %v902
        %907 = vrot.lane.b32.xlu0 %v903, 126
        %v908 = vpop.permute.xlu0 %907
        %909 = vrot.lane.b32.xlu0 %v904, 126
        %v910 = vpop.permute.xlu0 %909
        %v913 = vadd.f32 %v657, %v908
        %v914 = vadd.f32 %v658, %v910
        %s915 = sld [smem:[#allocation8 + $0x46]]
        %v916 = vstv %s915
        %v917 = vmul.f32 %v283, %v916
        %v918 = vmul.f32 %v284, %v916
        %s919 = sld [smem:[#allocation8 + $0x4e]]
        %v920 = vstv %s919
        %v921 = vmul.f32 %v285, %v920
        %v922 = vmul.f32 %v286, %v920
        %v923 = vadd.f32 %v917, %v921
        %v924 = vadd.f32 %v918, %v922
        %s925 = sld [smem:[#allocation8 + $0x56]]
        %v926 = vstv %s925
        %v927 = vmul.f32 %v287, %v926
        %v928 = vmul.f32 %v288, %v926
        %v929 = vadd.f32 %v923, %v927
        %v930 = vadd.f32 %v924, %v928
        %s931 = sld [smem:[#allocation8 + $0x5e]]
        %v932 = vstv %s931
        %v933 = vmul.f32 %v289, %v932
        %v934 = vmul.f32 %v290, %v932
        %v935 = vadd.f32 %v929, %v933
        %v936 = vadd.f32 %v930, %v934
        %939 = vrot.lane.b32.xlu0 %v935, 126
        %v940 = vpop.permute.xlu0 %939
        %941 = vrot.lane.b32.xlu0 %v936, 126
        %v942 = vpop.permute.xlu0 %941
        %v945 = vadd.f32 %v689, %v940
        %v946 = vadd.f32 %v690, %v942
        %s947 = sld [smem:[#allocation8 + $0x47]]
        %v948 = vstv %s947
        %v949 = vmul.f32 %v283, %v948
        %v950 = vmul.f32 %v284, %v948
        %s951 = sld [smem:[#allocation8 + $0x4f]]
        %v952 = vstv %s951
        %v953 = vmul.f32 %v285, %v952
        %v954 = vmul.f32 %v286, %v952
        %v955 = vadd.f32 %v949, %v953
        %v956 = vadd.f32 %v950, %v954
        %s957 = sld [smem:[#allocation8 + $0x57]]
        %v958 = vstv %s957
        %v959 = vmul.f32 %v287, %v958
        %v960 = vmul.f32 %v288, %v958
        %v961 = vadd.f32 %v955, %v959
        %v962 = vadd.f32 %v956, %v960
        %s963 = sld [smem:[#allocation8 + $0x5f]]
        %v964 = vstv %s963
        %v965 = vmul.f32 %v289, %v964
        %v966 = vmul.f32 %v290, %v964
        %v967 = vadd.f32 %v961, %v965
        %v968 = vadd.f32 %v962, %v966
        %971 = vrot.lane.b32.xlu0 %v967, 126
        %v972 = vpop.permute.xlu0 %971
        %973 = vrot.lane.b32.xlu0 %v968, 126
        %v974 = vpop.permute.xlu0 %973
        %v977 = vadd.f32 %v721, %v972
        %v978 = vadd.f32 %v722, %v974
        %v979 = vld [vmem:[#allocation2 + $0x1] sm:$0xff]
        %v980 = vld [vmem:[#allocation2 + $0x9] sm:$0xff]
        %v981 = vld [vmem:[%s252 + $0x1] sm:$0xff]
        %v982 = vld [vmem:[%s252 + $0x9] sm:$0xff]
        %v983 = vld [vmem:[%s266 + $0x1] sm:$0xff]
        %v984 = vld [vmem:[%s266 + $0x9] sm:$0xff]
        %v985 = vld [vmem:[%s280 + $0x1] sm:$0xff]
        %v986 = vld [vmem:[%s280 + $0x9] sm:$0xff]
        %s987 = sld [smem:[#allocation8 + $0x60]]
        %v988 = vstv %s987
        %v989 = vmul.f32 %v979, %v988
        %v990 = vmul.f32 %v980, %v988
        %s991 = sld [smem:[#allocation8 + $0x68]]
        %v992 = vstv %s991
        %v993 = vmul.f32 %v981, %v992
        %v994 = vmul.f32 %v982, %v992
        %v995 = vadd.f32 %v989, %v993
        %v996 = vadd.f32 %v990, %v994
        %s997 = sld [smem:[#allocation8 + $0x70]]
        %v998 = vstv %s997
        %v999 = vmul.f32 %v983, %v998
        %v1000 = vmul.f32 %v984, %v998
        %v1001 = vadd.f32 %v995, %v999
        %v1002 = vadd.f32 %v996, %v1000
        %s1003 = sld [smem:[#allocation8 + $0x78]]
        %v1004 = vstv %s1003
        %v1005 = vmul.f32 %v985, %v1004
        %v1006 = vmul.f32 %v986, %v1004
        %v1007 = vadd.f32 %v1001, %v1005
        %v1008 = vadd.f32 %v1002, %v1006
        %v1009 = vadd.f32 %v753, %v1007
        %v1010 = vadd.f32 %v754, %v1008
        %s1011 = sld [smem:[#allocation8 + $0x61]]
        %v1012 = vstv %s1011
        %v1013 = vmul.f32 %v979, %v1012
        %v1014 = vmul.f32 %v980, %v1012
        %s1015 = sld [smem:[#allocation8 + $0x69]]
        %v1016 = vstv %s1015
        %v1017 = vmul.f32 %v981, %v1016
        %v1018 = vmul.f32 %v982, %v1016
        %v1019 = vadd.f32 %v1013, %v1017
        %v1020 = vadd.f32 %v1014, %v1018
        %s1021 = sld [smem:[#allocation8 + $0x71]]
        %v1022 = vstv %s1021
        %v1023 = vmul.f32 %v983, %v1022
        %v1024 = vmul.f32 %v984, %v1022
        %v1025 = vadd.f32 %v1019, %v1023
        %v1026 = vadd.f32 %v1020, %v1024
        %s1027 = sld [smem:[#allocation8 + $0x79]]
        %v1028 = vstv %s1027
        %v1029 = vmul.f32 %v985, %v1028
        %v1030 = vmul.f32 %v986, %v1028
        %v1031 = vadd.f32 %v1025, %v1029
        %v1032 = vadd.f32 %v1026, %v1030
        %v1033 = vadd.f32 %v785, %v1031
        %v1034 = vadd.f32 %v786, %v1032
        %s1035 = sld [smem:[#allocation8 + $0x62]]
        %v1036 = vstv %s1035
        %v1037 = vmul.f32 %v979, %v1036
        %v1038 = vmul.f32 %v980, %v1036
        %s1039 = sld [smem:[#allocation8 + $0x6a]]
        %v1040 = vstv %s1039
        %v1041 = vmul.f32 %v981, %v1040
        %v1042 = vmul.f32 %v982, %v1040
        %v1043 = vadd.f32 %v1037, %v1041
        %v1044 = vadd.f32 %v1038, %v1042
        %s1045 = sld [smem:[#allocation8 + $0x72]]
        %v1046 = vstv %s1045
        %v1047 = vmul.f32 %v983, %v1046
        %v1048 = vmul.f32 %v984, %v1046
        %v1049 = vadd.f32 %v1043, %v1047
        %v1050 = vadd.f32 %v1044, %v1048
        %s1051 = sld [smem:[#allocation8 + $0x7a]]
        %v1052 = vstv %s1051
        %v1053 = vmul.f32 %v985, %v1052
        %v1054 = vmul.f32 %v986, %v1052
        %v1055 = vadd.f32 %v1049, %v1053
        %v1056 = vadd.f32 %v1050, %v1054
        %v1057 = vadd.f32 %v817, %v1055
        %v1058 = vadd.f32 %v818, %v1056
        %s1059 = sld [smem:[#allocation8 + $0x63]]
        %v1060 = vstv %s1059
        %v1061 = vmul.f32 %v979, %v1060
        %v1062 = vmul.f32 %v980, %v1060
        %s1063 = sld [smem:[#allocation8 + $0x6b]]
        %v1064 = vstv %s1063
        %v1065 = vmul.f32 %v981, %v1064
        %v1066 = vmul.f32 %v982, %v1064
        %v1067 = vadd.f32 %v1061, %v1065
        %v1068 = vadd.f32 %v1062, %v1066
        %s1069 = sld [smem:[#allocation8 + $0x73]]
        %v1070 = vstv %s1069
        %v1071 = vmul.f32 %v983, %v1070
        %v1072 = vmul.f32 %v984, %v1070
        %v1073 = vadd.f32 %v1067, %v1071
        %v1074 = vadd.f32 %v1068, %v1072
        %s1075 = sld [smem:[#allocation8 + $0x7b]]
        %v1076 = vstv %s1075
        %v1077 = vmul.f32 %v985, %v1076
        %v1078 = vmul.f32 %v986, %v1076
        %v1079 = vadd.f32 %v1073, %v1077
        %v1080 = vadd.f32 %v1074, %v1078
        %v1081 = vadd.f32 %v849, %v1079
        %v1082 = vadd.f32 %v850, %v1080
        %s1083 = sld [smem:[#allocation8 + $0x64]]
        %v1084 = vstv %s1083
        %v1085 = vmul.f32 %v979, %v1084
        %v1086 = vmul.f32 %v980, %v1084
        %s1087 = sld [smem:[#allocation8 + $0x6c]]
        %v1088 = vstv %s1087
        %v1089 = vmul.f32 %v981, %v1088
        %v1090 = vmul.f32 %v982, %v1088
        %v1091 = vadd.f32 %v1085, %v1089
        %v1092 = vadd.f32 %v1086, %v1090
        %s1093 = sld [smem:[#allocation8 + $0x74]]
        %v1094 = vstv %s1093
        %v1095 = vmul.f32 %v983, %v1094
        %v1096 = vmul.f32 %v984, %v1094
        %v1097 = vadd.f32 %v1091, %v1095
        %v1098 = vadd.f32 %v1092, %v1096
        %s1099 = sld [smem:[#allocation8 + $0x7c]]
        %v1100 = vstv %s1099
        %v1101 = vmul.f32 %v985, %v1100
        %v1102 = vmul.f32 %v986, %v1100
        %v1103 = vadd.f32 %v1097, %v1101
        %v1104 = vadd.f32 %v1098, %v1102
        %v1105 = vadd.f32 %v881, %v1103
        %v1106 = vadd.f32 %v882, %v1104
        %s1107 = sld [smem:[#allocation8 + $0x65]]
        %v1108 = vstv %s1107
        %v1109 = vmul.f32 %v979, %v1108
        %v1110 = vmul.f32 %v980, %v1108
        %s1111 = sld [smem:[#allocation8 + $0x6d]]
        %v1112 = vstv %s1111
        %v1113 = vmul.f32 %v981, %v1112
        %v1114 = vmul.f32 %v982, %v1112
        %v1115 = vadd.f32 %v1109, %v1113
        %v1116 = vadd.f32 %v1110, %v1114
        %s1117 = sld [smem:[#allocation8 + $0x75]]
        %v1118 = vstv %s1117
        %v1119 = vmul.f32 %v983, %v1118
        %v1120 = vmul.f32 %v984, %v1118
        %v1121 = vadd.f32 %v1115, %v1119
        %v1122 = vadd.f32 %v1116, %v1120
        %s1123 = sld [smem:[#allocation8 + $0x7d]]
        %v1124 = vstv %s1123
        %v1125 = vmul.f32 %v985, %v1124
        %v1126 = vmul.f32 %v986, %v1124
        %v1127 = vadd.f32 %v1121, %v1125
        %v1128 = vadd.f32 %v1122, %v1126
        %v1129 = vadd.f32 %v913, %v1127
        %v1130 = vadd.f32 %v914, %v1128
        %s1131 = sld [smem:[#allocation8 + $0x66]]
        %v1132 = vstv %s1131
        %v1133 = vmul.f32 %v979, %v1132
        %v1134 = vmul.f32 %v980, %v1132
        %s1135 = sld [smem:[#allocation8 + $0x6e]]
        %v1136 = vstv %s1135
        %v1137 = vmul.f32 %v981, %v1136
        %v1138 = vmul.f32 %v982, %v1136
        %v1139 = vadd.f32 %v1133, %v1137
        %v1140 = vadd.f32 %v1134, %v1138
        %s1141 = sld [smem:[#allocation8 + $0x76]]
        %v1142 = vstv %s1141
        %v1143 = vmul.f32 %v983, %v1142
        %v1144 = vmul.f32 %v984, %v1142
        %v1145 = vadd.f32 %v1139, %v1143
        %v1146 = vadd.f32 %v1140, %v1144
        %s1147 = sld [smem:[#allocation8 + $0x7e]]
        %v1148 = vstv %s1147
        %v1149 = vmul.f32 %v985, %v1148
        %v1150 = vmul.f32 %v986, %v1148
        %v1151 = vadd.f32 %v1145, %v1149
        %v1152 = vadd.f32 %v1146, %v1150
        %v1153 = vadd.f32 %v945, %v1151
        %v1154 = vadd.f32 %v946, %v1152
        %s1155 = sld [smem:[#allocation8 + $0x67]]
        %v1156 = vstv %s1155
        %v1157 = vmul.f32 %v979, %v1156
        %v1158 = vmul.f32 %v980, %v1156
        %s1159 = sld [smem:[#allocation8 + $0x6f]]
        %v1160 = vstv %s1159
        %v1161 = vmul.f32 %v981, %v1160
        %v1162 = vmul.f32 %v982, %v1160
        %v1163 = vadd.f32 %v1157, %v1161
        %v1164 = vadd.f32 %v1158, %v1162
        %s1165 = sld [smem:[#allocation8 + $0x77]]
        %v1166 = vstv %s1165
        %v1167 = vmul.f32 %v983, %v1166
        %v1168 = vmul.f32 %v984, %v1166
        %v1169 = vadd.f32 %v1163, %v1167
        %v1170 = vadd.f32 %v1164, %v1168
        %s1171 = sld [smem:[#allocation8 + $0x7f]]
        %v1172 = vstv %s1171
        %v1173 = vmul.f32 %v985, %v1172
        %v1174 = vmul.f32 %v986, %v1172
        %v1175 = vadd.f32 %v1169, %v1173
        %v1176 = vadd.f32 %v1170, %v1174
        %v1177 = vadd.f32 %v977, %v1175
        %v1178 = vadd.f32 %v978, %v1176
        %s1179 = sld [smem:[#allocation8 + $0x80]]
        %v1180 = vstv %s1179
        %v1181 = vmul.f32 %v979, %v1180
        %v1182 = vmul.f32 %v980, %v1180
        %s1183 = sld [smem:[#allocation8 + $0x88]]
        %v1184 = vstv %s1183
        %v1185 = vmul.f32 %v981, %v1184
        %v1186 = vmul.f32 %v982, %v1184
        %v1187 = vadd.f32 %v1181, %v1185
        %v1188 = vadd.f32 %v1182, %v1186
        %s1189 = sld [smem:[#allocation8 + $0x90]]
        %v1190 = vstv %s1189
        %v1191 = vmul.f32 %v983, %v1190
        %v1192 = vmul.f32 %v984, %v1190
        %v1193 = vadd.f32 %v1187, %v1191
        %v1194 = vadd.f32 %v1188, %v1192
        %s1195 = sld [smem:[#allocation8 + $0x98]]
        %v1196 = vstv %s1195
        %v1197 = vmul.f32 %v985, %v1196
        %v1198 = vmul.f32 %v986, %v1196
        %v1199 = vadd.f32 %v1193, %v1197
        %v1200 = vadd.f32 %v1194, %v1198
        %1203 = vrot.lane.b32.xlu0 %v1199, 127
        %v1204 = vpop.permute.xlu0 %1203
        %1205 = vrot.lane.b32.xlu0 %v1200, 127
        %v1206 = vpop.permute.xlu0 %1205
        %v1209 = vadd.f32 %v1009, %v1204
        %v1210 = vadd.f32 %v1010, %v1206
        %s1211 = sld [smem:[#allocation8 + $0x81]]
        %v1212 = vstv %s1211
        %v1213 = vmul.f32 %v979, %v1212
        %v1214 = vmul.f32 %v980, %v1212
        %s1215 = sld [smem:[#allocation8 + $0x89]]
        %v1216 = vstv %s1215
        %v1217 = vmul.f32 %v981, %v1216
        %v1218 = vmul.f32 %v982, %v1216
        %v1219 = vadd.f32 %v1213, %v1217
        %v1220 = vadd.f32 %v1214, %v1218
        %s1221 = sld [smem:[#allocation8 + $0x91]]
        %v1222 = vstv %s1221
        %v1223 = vmul.f32 %v983, %v1222
        %v1224 = vmul.f32 %v984, %v1222
        %v1225 = vadd.f32 %v1219, %v1223
        %v1226 = vadd.f32 %v1220, %v1224
        %s1227 = sld [smem:[#allocation8 + $0x99]]
        %v1228 = vstv %s1227
        %v1229 = vmul.f32 %v985, %v1228
        %v1230 = vmul.f32 %v986, %v1228
        %v1231 = vadd.f32 %v1225, %v1229
        %v1232 = vadd.f32 %v1226, %v1230
        %1235 = vrot.lane.b32.xlu0 %v1231, 127
        %v1236 = vpop.permute.xlu0 %1235
        %1237 = vrot.lane.b32.xlu0 %v1232, 127
        %v1238 = vpop.permute.xlu0 %1237
        %v1241 = vadd.f32 %v1033, %v1236
        %v1242 = vadd.f32 %v1034, %v1238
        %s1243 = sld [smem:[#allocation8 + $0x82]]
        %v1244 = vstv %s1243
        %v1245 = vmul.f32 %v979, %v1244
        %v1246 = vmul.f32 %v980, %v1244
        %s1247 = sld [smem:[#allocation8 + $0x8a]]
        %v1248 = vstv %s1247
        %v1249 = vmul.f32 %v981, %v1248
        %v1250 = vmul.f32 %v982, %v1248
        %v1251 = vadd.f32 %v1245, %v1249
        %v1252 = vadd.f32 %v1246, %v1250
        %s1253 = sld [smem:[#allocation8 + $0x92]]
        %v1254 = vstv %s1253
        %v1255 = vmul.f32 %v983, %v1254
        %v1256 = vmul.f32 %v984, %v1254
        %v1257 = vadd.f32 %v1251, %v1255
        %v1258 = vadd.f32 %v1252, %v1256
        %s1259 = sld [smem:[#allocation8 + $0x9a]]
        %v1260 = vstv %s1259
        %v1261 = vmul.f32 %v985, %v1260
        %v1262 = vmul.f32 %v986, %v1260
        %v1263 = vadd.f32 %v1257, %v1261
        %v1264 = vadd.f32 %v1258, %v1262
        %1267 = vrot.lane.b32.xlu0 %v1263, 127
        %v1268 = vpop.permute.xlu0 %1267
        %1269 = vrot.lane.b32.xlu0 %v1264, 127
        %v1270 = vpop.permute.xlu0 %1269
        %v1273 = vadd.f32 %v1057, %v1268
        %v1274 = vadd.f32 %v1058, %v1270
        %s1275 = sld [smem:[#allocation8 + $0x83]]
        %v1276 = vstv %s1275
        %v1277 = vmul.f32 %v979, %v1276
        %v1278 = vmul.f32 %v980, %v1276
        %s1279 = sld [smem:[#allocation8 + $0x8b]]
        %v1280 = vstv %s1279
        %v1281 = vmul.f32 %v981, %v1280
        %v1282 = vmul.f32 %v982, %v1280
        %v1283 = vadd.f32 %v1277, %v1281
        %v1284 = vadd.f32 %v1278, %v1282
        %s1285 = sld [smem:[#allocation8 + $0x93]]
        %v1286 = vstv %s1285
        %v1287 = vmul.f32 %v983, %v1286
        %v1288 = vmul.f32 %v984, %v1286
        %v1289 = vadd.f32 %v1283, %v1287
        %v1290 = vadd.f32 %v1284, %v1288
        %s1291 = sld [smem:[#allocation8 + $0x9b]]
        %v1292 = vstv %s1291
        %v1293 = vmul.f32 %v985, %v1292
        %v1294 = vmul.f32 %v986, %v1292
        %v1295 = vadd.f32 %v1289, %v1293
        %v1296 = vadd.f32 %v1290, %v1294
        %1299 = vrot.lane.b32.xlu0 %v1295, 127
        %v1300 = vpop.permute.xlu0 %1299
        %1301 = vrot.lane.b32.xlu0 %v1296, 127
        %v1302 = vpop.permute.xlu0 %1301
        %v1305 = vadd.f32 %v1081, %v1300
        %v1306 = vadd.f32 %v1082, %v1302
        %s1307 = sld [smem:[#allocation8 + $0x84]]
        %v1308 = vstv %s1307
        %v1309 = vmul.f32 %v979, %v1308
        %v1310 = vmul.f32 %v980, %v1308
        %s1311 = sld [smem:[#allocation8 + $0x8c]]
        %v1312 = vstv %s1311
        %v1313 = vmul.f32 %v981, %v1312
        %v1314 = vmul.f32 %v982, %v1312
        %v1315 = vadd.f32 %v1309, %v1313
        %v1316 = vadd.f32 %v1310, %v1314
        %s1317 = sld [smem:[#allocation8 + $0x94]]
        %v1318 = vstv %s1317
        %v1319 = vmul.f32 %v983, %v1318
        %v1320 = vmul.f32 %v984, %v1318
        %v1321 = vadd.f32 %v1315, %v1319
        %v1322 = vadd.f32 %v1316, %v1320
        %s1323 = sld [smem:[#allocation8 + $0x9c]]
        %v1324 = vstv %s1323
        %v1325 = vmul.f32 %v985, %v1324
        %v1326 = vmul.f32 %v986, %v1324
        %v1327 = vadd.f32 %v1321, %v1325
        %v1328 = vadd.f32 %v1322, %v1326
        %1331 = vrot.lane.b32.xlu0 %v1327, 127
        %v1332 = vpop.permute.xlu0 %1331
        %1333 = vrot.lane.b32.xlu0 %v1328, 127
        %v1334 = vpop.permute.xlu0 %1333
        %v1337 = vadd.f32 %v1105, %v1332
        %v1338 = vadd.f32 %v1106, %v1334
        %s1339 = sld [smem:[#allocation8 + $0x85]]
        %v1340 = vstv %s1339
        %v1341 = vmul.f32 %v979, %v1340
        %v1342 = vmul.f32 %v980, %v1340
        %s1343 = sld [smem:[#allocation8 + $0x8d]]
        %v1344 = vstv %s1343
        %v1345 = vmul.f32 %v981, %v1344
        %v1346 = vmul.f32 %v982, %v1344
        %v1347 = vadd.f32 %v1341, %v1345
        %v1348 = vadd.f32 %v1342, %v1346
        %s1349 = sld [smem:[#allocation8 + $0x95]]
        %v1350 = vstv %s1349
        %v1351 = vmul.f32 %v983, %v1350
        %v1352 = vmul.f32 %v984, %v1350
        %v1353 = vadd.f32 %v1347, %v1351
        %v1354 = vadd.f32 %v1348, %v1352
        %s1355 = sld [smem:[#allocation8 + $0x9d]]
        %v1356 = vstv %s1355
        %v1357 = vmul.f32 %v985, %v1356
        %v1358 = vmul.f32 %v986, %v1356
        %v1359 = vadd.f32 %v1353, %v1357
        %v1360 = vadd.f32 %v1354, %v1358
        %1363 = vrot.lane.b32.xlu0 %v1359, 127
        %v1364 = vpop.permute.xlu0 %1363
        %1365 = vrot.lane.b32.xlu0 %v1360, 127
        %v1366 = vpop.permute.xlu0 %1365
        %v1369 = vadd.f32 %v1129, %v1364
        %v1370 = vadd.f32 %v1130, %v1366
        %s1371 = sld [smem:[#allocation8 + $0x86]]
        %v1372 = vstv %s1371
        %v1373 = vmul.f32 %v979, %v1372
        %v1374 = vmul.f32 %v980, %v1372
        %s1375 = sld [smem:[#allocation8 + $0x8e]]
        %v1376 = vstv %s1375
        %v1377 = vmul.f32 %v981, %v1376
        %v1378 = vmul.f32 %v982, %v1376
        %v1379 = vadd.f32 %v1373, %v1377
        %v1380 = vadd.f32 %v1374, %v1378
        %s1381 = sld [smem:[#allocation8 + $0x96]]
        %v1382 = vstv %s1381
        %v1383 = vmul.f32 %v983, %v1382
        %v1384 = vmul.f32 %v984, %v1382
        %v1385 = vadd.f32 %v1379, %v1383
        %v1386 = vadd.f32 %v1380, %v1384
        %s1387 = sld [smem:[#allocation8 + $0x9e]]
        %v1388 = vstv %s1387
        %v1389 = vmul.f32 %v985, %v1388
        %v1390 = vmul.f32 %v986, %v1388
        %v1391 = vadd.f32 %v1385, %v1389
        %v1392 = vadd.f32 %v1386, %v1390
        %1395 = vrot.lane.b32.xlu0 %v1391, 127
        %v1396 = vpop.permute.xlu0 %1395
        %1397 = vrot.lane.b32.xlu0 %v1392, 127
        %v1398 = vpop.permute.xlu0 %1397
        %v1401 = vadd.f32 %v1153, %v1396
        %v1402 = vadd.f32 %v1154, %v1398
        %s1403 = sld [smem:[#allocation8 + $0x87]]
        %v1404 = vstv %s1403
        %v1405 = vmul.f32 %v979, %v1404
        %v1406 = vmul.f32 %v980, %v1404
        %s1407 = sld [smem:[#allocation8 + $0x8f]]
        %v1408 = vstv %s1407
        %v1409 = vmul.f32 %v981, %v1408
        %v1410 = vmul.f32 %v982, %v1408
        %v1411 = vadd.f32 %v1405, %v1409
        %v1412 = vadd.f32 %v1406, %v1410
        %s1413 = sld [smem:[#allocation8 + $0x97]]
        %v1414 = vstv %s1413
        %v1415 = vmul.f32 %v983, %v1414
        %v1416 = vmul.f32 %v984, %v1414
        %v1417 = vadd.f32 %v1411, %v1415
        %v1418 = vadd.f32 %v1412, %v1416
        %s1419 = sld [smem:[#allocation8 + $0x9f]]
        %v1420 = vstv %s1419
        %v1421 = vmul.f32 %v985, %v1420
        %v1422 = vmul.f32 %v986, %v1420
        %v1423 = vadd.f32 %v1417, %v1421
        %v1424 = vadd.f32 %v1418, %v1422
        %1427 = vrot.lane.b32.xlu0 %v1423, 127
        %v1428 = vpop.permute.xlu0 %1427
        %1429 = vrot.lane.b32.xlu0 %v1424, 127
        %v1430 = vpop.permute.xlu0 %1429
        %v1433 = vadd.f32 %v1177, %v1428
        %v1434 = vadd.f32 %v1178, %v1430
        %s1435 = sld [smem:[#allocation8 + $0xa0]]
        %v1436 = vstv %s1435
        %v1437 = vmul.f32 %v979, %v1436
        %v1438 = vmul.f32 %v980, %v1436
        %s1439 = sld [smem:[#allocation8 + $0xa8]]
        %v1440 = vstv %s1439
        %v1441 = vmul.f32 %v981, %v1440
        %v1442 = vmul.f32 %v982, %v1440
        %v1443 = vadd.f32 %v1437, %v1441
        %v1444 = vadd.f32 %v1438, %v1442
        %s1445 = sld [smem:[#allocation8 + $0xb0]]
        %v1446 = vstv %s1445
        %v1447 = vmul.f32 %v983, %v1446
        %v1448 = vmul.f32 %v984, %v1446
        %v1449 = vadd.f32 %v1443, %v1447
        %v1450 = vadd.f32 %v1444, %v1448
        %s1451 = sld [smem:[#allocation8 + $0xb8]]
        %v1452 = vstv %s1451
        %v1453 = vmul.f32 %v985, %v1452
        %v1454 = vmul.f32 %v986, %v1452
        %v1455 = vadd.f32 %v1449, %v1453
        %v1456 = vadd.f32 %v1450, %v1454
        %1459 = vrot.lane.b32.xlu0 %v1455, 126
        %v1460 = vpop.permute.xlu0 %1459
        %1461 = vrot.lane.b32.xlu0 %v1456, 126
        %v1462 = vpop.permute.xlu0 %1461
        %v1465 = vadd.f32 %v1209, %v1460
        %v1466 = vadd.f32 %v1210, %v1462
        %s1467 = sld [smem:[#allocation8 + $0xa1]]
        %v1468 = vstv %s1467
        %v1469 = vmul.f32 %v979, %v1468
        %v1470 = vmul.f32 %v980, %v1468
        %s1471 = sld [smem:[#allocation8 + $0xa9]]
        %v1472 = vstv %s1471
        %v1473 = vmul.f32 %v981, %v1472
        %v1474 = vmul.f32 %v982, %v1472
        %v1475 = vadd.f32 %v1469, %v1473
        %v1476 = vadd.f32 %v1470, %v1474
        %s1477 = sld [smem:[#allocation8 + $0xb1]]
        %v1478 = vstv %s1477
        %v1479 = vmul.f32 %v983, %v1478
        %v1480 = vmul.f32 %v984, %v1478
        %v1481 = vadd.f32 %v1475, %v1479
        %v1482 = vadd.f32 %v1476, %v1480
        %s1483 = sld [smem:[#allocation8 + $0xb9]]
        %v1484 = vstv %s1483
        %v1485 = vmul.f32 %v985, %v1484
        %v1486 = vmul.f32 %v986, %v1484
        %v1487 = vadd.f32 %v1481, %v1485
        %v1488 = vadd.f32 %v1482, %v1486
        %1491 = vrot.lane.b32.xlu0 %v1487, 126
        %v1492 = vpop.permute.xlu0 %1491
        %1493 = vrot.lane.b32.xlu0 %v1488, 126
        %v1494 = vpop.permute.xlu0 %1493
        %v1497 = vadd.f32 %v1241, %v1492
        %v1498 = vadd.f32 %v1242, %v1494
        %s1499 = sld [smem:[#allocation8 + $0xa2]]
        %v1500 = vstv %s1499
        %v1501 = vmul.f32 %v979, %v1500
        %v1502 = vmul.f32 %v980, %v1500
        %s1503 = sld [smem:[#allocation8 + $0xaa]]
        %v1504 = vstv %s1503
        %v1505 = vmul.f32 %v981, %v1504
        %v1506 = vmul.f32 %v982, %v1504
        %v1507 = vadd.f32 %v1501, %v1505
        %v1508 = vadd.f32 %v1502, %v1506
        %s1509 = sld [smem:[#allocation8 + $0xb2]]
        %v1510 = vstv %s1509
        %v1511 = vmul.f32 %v983, %v1510
        %v1512 = vmul.f32 %v984, %v1510
        %v1513 = vadd.f32 %v1507, %v1511
        %v1514 = vadd.f32 %v1508, %v1512
        %s1515 = sld [smem:[#allocation8 + $0xba]]
        %v1516 = vstv %s1515
        %v1517 = vmul.f32 %v985, %v1516
        %v1518 = vmul.f32 %v986, %v1516
        %v1519 = vadd.f32 %v1513, %v1517
        %v1520 = vadd.f32 %v1514, %v1518
        %1523 = vrot.lane.b32.xlu0 %v1519, 126
        %v1524 = vpop.permute.xlu0 %1523
        %1525 = vrot.lane.b32.xlu0 %v1520, 126
        %v1526 = vpop.permute.xlu0 %1525
        %v1529 = vadd.f32 %v1273, %v1524
        %v1530 = vadd.f32 %v1274, %v1526
        %s1531 = sld [smem:[#allocation8 + $0xa3]]
        %v1532 = vstv %s1531
        %v1533 = vmul.f32 %v979, %v1532
        %v1534 = vmul.f32 %v980, %v1532
        %s1535 = sld [smem:[#allocation8 + $0xab]]
        %v1536 = vstv %s1535
        %v1537 = vmul.f32 %v981, %v1536
        %v1538 = vmul.f32 %v982, %v1536
        %v1539 = vadd.f32 %v1533, %v1537
        %v1540 = vadd.f32 %v1534, %v1538
        %s1541 = sld [smem:[#allocation8 + $0xb3]]
        %v1542 = vstv %s1541
        %v1543 = vmul.f32 %v983, %v1542
        %v1544 = vmul.f32 %v984, %v1542
        %v1545 = vadd.f32 %v1539, %v1543
        %v1546 = vadd.f32 %v1540, %v1544
        %s1547 = sld [smem:[#allocation8 + $0xbb]]
        %v1548 = vstv %s1547
        %v1549 = vmul.f32 %v985, %v1548
        %v1550 = vmul.f32 %v986, %v1548
        %v1551 = vadd.f32 %v1545, %v1549
        %v1552 = vadd.f32 %v1546, %v1550
        %1555 = vrot.lane.b32.xlu0 %v1551, 126
        %v1556 = vpop.permute.xlu0 %1555
        %1557 = vrot.lane.b32.xlu0 %v1552, 126
        %v1558 = vpop.permute.xlu0 %1557
        %v1561 = vadd.f32 %v1305, %v1556
        %v1562 = vadd.f32 %v1306, %v1558
        %s1563 = sld [smem:[#allocation8 + $0xa4]]
        %v1564 = vstv %s1563
        %v1565 = vmul.f32 %v979, %v1564
        %v1566 = vmul.f32 %v980, %v1564
        %s1567 = sld [smem:[#allocation8 + $0xac]]
        %v1568 = vstv %s1567
        %v1569 = vmul.f32 %v981, %v1568
        %v1570 = vmul.f32 %v982, %v1568
        %v1571 = vadd.f32 %v1565, %v1569
        %v1572 = vadd.f32 %v1566, %v1570
        %s1573 = sld [smem:[#allocation8 + $0xb4]]
        %v1574 = vstv %s1573
        %v1575 = vmul.f32 %v983, %v1574
        %v1576 = vmul.f32 %v984, %v1574
        %v1577 = vadd.f32 %v1571, %v1575
        %v1578 = vadd.f32 %v1572, %v1576
        %s1579 = sld [smem:[#allocation8 + $0xbc]]
        %v1580 = vstv %s1579
        %v1581 = vmul.f32 %v985, %v1580
        %v1582 = vmul.f32 %v986, %v1580
        %v1583 = vadd.f32 %v1577, %v1581
        %v1584 = vadd.f32 %v1578, %v1582
        %1587 = vrot.lane.b32.xlu0 %v1583, 126
        %v1588 = vpop.permute.xlu0 %1587
        %1589 = vrot.lane.b32.xlu0 %v1584, 126
        %v1590 = vpop.permute.xlu0 %1589
        %v1593 = vadd.f32 %v1337, %v1588
        %v1594 = vadd.f32 %v1338, %v1590
        %s1595 = sld [smem:[#allocation8 + $0xa5]]
        %v1596 = vstv %s1595
        %v1597 = vmul.f32 %v979, %v1596
        %v1598 = vmul.f32 %v980, %v1596
        %s1599 = sld [smem:[#allocation8 + $0xad]]
        %v1600 = vstv %s1599
        %v1601 = vmul.f32 %v981, %v1600
        %v1602 = vmul.f32 %v982, %v1600
        %v1603 = vadd.f32 %v1597, %v1601
        %v1604 = vadd.f32 %v1598, %v1602
        %s1605 = sld [smem:[#allocation8 + $0xb5]]
        %v1606 = vstv %s1605
        %v1607 = vmul.f32 %v983, %v1606
        %v1608 = vmul.f32 %v984, %v1606
        %v1609 = vadd.f32 %v1603, %v1607
        %v1610 = vadd.f32 %v1604, %v1608
        %s1611 = sld [smem:[#allocation8 + $0xbd]]
        %v1612 = vstv %s1611
        %v1613 = vmul.f32 %v985, %v1612
        %v1614 = vmul.f32 %v986, %v1612
        %v1615 = vadd.f32 %v1609, %v1613
        %v1616 = vadd.f32 %v1610, %v1614
        %1619 = vrot.lane.b32.xlu0 %v1615, 126
        %v1620 = vpop.permute.xlu0 %1619
        %1621 = vrot.lane.b32.xlu0 %v1616, 126
        %v1622 = vpop.permute.xlu0 %1621
        %v1625 = vadd.f32 %v1369, %v1620
        %v1626 = vadd.f32 %v1370, %v1622
        %s1627 = sld [smem:[#allocation8 + $0xa6]]
        %v1628 = vstv %s1627
        %v1629 = vmul.f32 %v979, %v1628
        %v1630 = vmul.f32 %v980, %v1628
        %s1631 = sld [smem:[#allocation8 + $0xae]]
        %v1632 = vstv %s1631
        %v1633 = vmul.f32 %v981, %v1632
        %v1634 = vmul.f32 %v982, %v1632
        %v1635 = vadd.f32 %v1629, %v1633
        %v1636 = vadd.f32 %v1630, %v1634
        %s1637 = sld [smem:[#allocation8 + $0xb6]]
        %v1638 = vstv %s1637
        %v1639 = vmul.f32 %v983, %v1638
        %v1640 = vmul.f32 %v984, %v1638
        %v1641 = vadd.f32 %v1635, %v1639
        %v1642 = vadd.f32 %v1636, %v1640
        %s1643 = sld [smem:[#allocation8 + $0xbe]]
        %v1644 = vstv %s1643
        %v1645 = vmul.f32 %v985, %v1644
        %v1646 = vmul.f32 %v986, %v1644
        %v1647 = vadd.f32 %v1641, %v1645
        %v1648 = vadd.f32 %v1642, %v1646
        %1651 = vrot.lane.b32.xlu0 %v1647, 126
        %v1652 = vpop.permute.xlu0 %1651
        %1653 = vrot.lane.b32.xlu0 %v1648, 126
        %v1654 = vpop.permute.xlu0 %1653
        %v1657 = vadd.f32 %v1401, %v1652
        %v1658 = vadd.f32 %v1402, %v1654
        %s1659 = sld [smem:[#allocation8 + $0xa7]]
        %v1660 = vstv %s1659
        %v1661 = vmul.f32 %v979, %v1660
        %v1662 = vmul.f32 %v980, %v1660
        %s1663 = sld [smem:[#allocation8 + $0xaf]]
        %v1664 = vstv %s1663
        %v1665 = vmul.f32 %v981, %v1664
        %v1666 = vmul.f32 %v982, %v1664
        %v1667 = vadd.f32 %v1661, %v1665
        %v1668 = vadd.f32 %v1662, %v1666
        %s1669 = sld [smem:[#allocation8 + $0xb7]]
        %v1670 = vstv %s1669
        %v1671 = vmul.f32 %v983, %v1670
        %v1672 = vmul.f32 %v984, %v1670
        %v1673 = vadd.f32 %v1667, %v1671
        %v1674 = vadd.f32 %v1668, %v1672
        %s1675 = sld [smem:[#allocation8 + $0xbf]]
        %v1676 = vstv %s1675
        %v1677 = vmul.f32 %v985, %v1676
        %v1678 = vmul.f32 %v986, %v1676
        %v1679 = vadd.f32 %v1673, %v1677
        %v1680 = vadd.f32 %v1674, %v1678
        %1683 = vrot.lane.b32.xlu0 %v1679, 126
        %v1684 = vpop.permute.xlu0 %1683
        %1685 = vrot.lane.b32.xlu0 %v1680, 126
        %v1686 = vpop.permute.xlu0 %1685
        %v1689 = vadd.f32 %v1433, %v1684
        %v1690 = vadd.f32 %v1434, %v1686
        %v1691 = vld [vmem:[#allocation2 + $0x2] sm:$0xff]
        %v1692 = vld [vmem:[#allocation2 + $0xa] sm:$0xff]
        %v1693 = vld [vmem:[%s252 + $0x2] sm:$0xff]
        %v1694 = vld [vmem:[%s252 + $0xa] sm:$0xff]
        %v1695 = vld [vmem:[%s266 + $0x2] sm:$0xff]
        %v1696 = vld [vmem:[%s266 + $0xa] sm:$0xff]
        %v1697 = vld [vmem:[%s280 + $0x2] sm:$0xff]
        %v1698 = vld [vmem:[%s280 + $0xa] sm:$0xff]
        %s1699 = sld [smem:[#allocation8 + $0xc0]]
        %v1700 = vstv %s1699
        %v1701 = vmul.f32 %v1691, %v1700
        %v1702 = vmul.f32 %v1692, %v1700
        %s1703 = sld [smem:[#allocation8 + $0xc8]]
        %v1704 = vstv %s1703
        %v1705 = vmul.f32 %v1693, %v1704
        %v1706 = vmul.f32 %v1694, %v1704
        %v1707 = vadd.f32 %v1701, %v1705
        %v1708 = vadd.f32 %v1702, %v1706
        %s1709 = sld [smem:[#allocation8 + $0xd0]]
        %v1710 = vstv %s1709
        %v1711 = vmul.f32 %v1695, %v1710
        %v1712 = vmul.f32 %v1696, %v1710
        %v1713 = vadd.f32 %v1707, %v1711
        %v1714 = vadd.f32 %v1708, %v1712
        %s1715 = sld [smem:[#allocation8 + $0xd8]]
        %v1716 = vstv %s1715
        %v1717 = vmul.f32 %v1697, %v1716
        %v1718 = vmul.f32 %v1698, %v1716
        %v1719 = vadd.f32 %v1713, %v1717
        %v1720 = vadd.f32 %v1714, %v1718
        %v1721 = vadd.f32 %v1465, %v1719
        %v1722 = vadd.f32 %v1466, %v1720
        %s1723 = sld [smem:[#allocation8 + $0xc1]]
        %v1724 = vstv %s1723
        %v1725 = vmul.f32 %v1691, %v1724
        %v1726 = vmul.f32 %v1692, %v1724
        %s1727 = sld [smem:[#allocation8 + $0xc9]]
        %v1728 = vstv %s1727
        %v1729 = vmul.f32 %v1693, %v1728
        %v1730 = vmul.f32 %v1694, %v1728
        %v1731 = vadd.f32 %v1725, %v1729
        %v1732 = vadd.f32 %v1726, %v1730
        %s1733 = sld [smem:[#allocation8 + $0xd1]]
        %v1734 = vstv %s1733
        %v1735 = vmul.f32 %v1695, %v1734
        %v1736 = vmul.f32 %v1696, %v1734
        %v1737 = vadd.f32 %v1731, %v1735
        %v1738 = vadd.f32 %v1732, %v1736
        %s1739 = sld [smem:[#allocation8 + $0xd9]]
        %v1740 = vstv %s1739
        %v1741 = vmul.f32 %v1697, %v1740
        %v1742 = vmul.f32 %v1698, %v1740
        %v1743 = vadd.f32 %v1737, %v1741
        %v1744 = vadd.f32 %v1738, %v1742
        %v1745 = vadd.f32 %v1497, %v1743
        %v1746 = vadd.f32 %v1498, %v1744
        %s1747 = sld [smem:[#allocation8 + $0xc2]]
        %v1748 = vstv %s1747
        %v1749 = vmul.f32 %v1691, %v1748
        %v1750 = vmul.f32 %v1692, %v1748
        %s1751 = sld [smem:[#allocation8 + $0xca]]
        %v1752 = vstv %s1751
        %v1753 = vmul.f32 %v1693, %v1752
        %v1754 = vmul.f32 %v1694, %v1752
        %v1755 = vadd.f32 %v1749, %v1753
        %v1756 = vadd.f32 %v1750, %v1754
        %s1757 = sld [smem:[#allocation8 + $0xd2]]
        %v1758 = vstv %s1757
        %v1759 = vmul.f32 %v1695, %v1758
        %v1760 = vmul.f32 %v1696, %v1758
        %v1761 = vadd.f32 %v1755, %v1759
        %v1762 = vadd.f32 %v1756, %v1760
        %s1763 = sld [smem:[#allocation8 + $0xda]]
        %v1764 = vstv %s1763
        %v1765 = vmul.f32 %v1697, %v1764
        %v1766 = vmul.f32 %v1698, %v1764
        %v1767 = vadd.f32 %v1761, %v1765
        %v1768 = vadd.f32 %v1762, %v1766
        %v1769 = vadd.f32 %v1529, %v1767
        %v1770 = vadd.f32 %v1530, %v1768
        %s1771 = sld [smem:[#allocation8 + $0xc3]]
        %v1772 = vstv %s1771
        %v1773 = vmul.f32 %v1691, %v1772
        %v1774 = vmul.f32 %v1692, %v1772
        %s1775 = sld [smem:[#allocation8 + $0xcb]]
        %v1776 = vstv %s1775
        %v1777 = vmul.f32 %v1693, %v1776
        %v1778 = vmul.f32 %v1694, %v1776
        %v1779 = vadd.f32 %v1773, %v1777
        %v1780 = vadd.f32 %v1774, %v1778
        %s1781 = sld [smem:[#allocation8 + $0xd3]]
        %v1782 = vstv %s1781
        %v1783 = vmul.f32 %v1695, %v1782
        %v1784 = vmul.f32 %v1696, %v1782
        %v1785 = vadd.f32 %v1779, %v1783
        %v1786 = vadd.f32 %v1780, %v1784
        %s1787 = sld [smem:[#allocation8 + $0xdb]]
        %v1788 = vstv %s1787
        %v1789 = vmul.f32 %v1697, %v1788
        %v1790 = vmul.f32 %v1698, %v1788
        %v1791 = vadd.f32 %v1785, %v1789
        %v1792 = vadd.f32 %v1786, %v1790
        %v1793 = vadd.f32 %v1561, %v1791
        %v1794 = vadd.f32 %v1562, %v1792
        %s1795 = sld [smem:[#allocation8 + $0xc4]]
        %v1796 = vstv %s1795
        %v1797 = vmul.f32 %v1691, %v1796
        %v1798 = vmul.f32 %v1692, %v1796
        %s1799 = sld [smem:[#allocation8 + $0xcc]]
        %v1800 = vstv %s1799
        %v1801 = vmul.f32 %v1693, %v1800
        %v1802 = vmul.f32 %v1694, %v1800
        %v1803 = vadd.f32 %v1797, %v1801
        %v1804 = vadd.f32 %v1798, %v1802
        %s1805 = sld [smem:[#allocation8 + $0xd4]]
        %v1806 = vstv %s1805
        %v1807 = vmul.f32 %v1695, %v1806
        %v1808 = vmul.f32 %v1696, %v1806
        %v1809 = vadd.f32 %v1803, %v1807
        %v1810 = vadd.f32 %v1804, %v1808
        %s1811 = sld [smem:[#allocation8 + $0xdc]]
        %v1812 = vstv %s1811
        %v1813 = vmul.f32 %v1697, %v1812
        %v1814 = vmul.f32 %v1698, %v1812
        %v1815 = vadd.f32 %v1809, %v1813
        %v1816 = vadd.f32 %v1810, %v1814
        %v1817 = vadd.f32 %v1593, %v1815
        %v1818 = vadd.f32 %v1594, %v1816
        %s1819 = sld [smem:[#allocation8 + $0xc5]]
        %v1820 = vstv %s1819
        %v1821 = vmul.f32 %v1691, %v1820
        %v1822 = vmul.f32 %v1692, %v1820
        %s1823 = sld [smem:[#allocation8 + $0xcd]]
        %v1824 = vstv %s1823
        %v1825 = vmul.f32 %v1693, %v1824
        %v1826 = vmul.f32 %v1694, %v1824
        %v1827 = vadd.f32 %v1821, %v1825
        %v1828 = vadd.f32 %v1822, %v1826
        %s1829 = sld [smem:[#allocation8 + $0xd5]]
        %v1830 = vstv %s1829
        %v1831 = vmul.f32 %v1695, %v1830
        %v1832 = vmul.f32 %v1696, %v1830
        %v1833 = vadd.f32 %v1827, %v1831
        %v1834 = vadd.f32 %v1828, %v1832
        %s1835 = sld [smem:[#allocation8 + $0xdd]]
        %v1836 = vstv %s1835
        %v1837 = vmul.f32 %v1697, %v1836
        %v1838 = vmul.f32 %v1698, %v1836
        %v1839 = vadd.f32 %v1833, %v1837
        %v1840 = vadd.f32 %v1834, %v1838
        %v1841 = vadd.f32 %v1625, %v1839
        %v1842 = vadd.f32 %v1626, %v1840
        %s1843 = sld [smem:[#allocation8 + $0xc6]]
        %v1844 = vstv %s1843
        %v1845 = vmul.f32 %v1691, %v1844
        %v1846 = vmul.f32 %v1692, %v1844
        %s1847 = sld [smem:[#allocation8 + $0xce]]
        %v1848 = vstv %s1847
        %v1849 = vmul.f32 %v1693, %v1848
        %v1850 = vmul.f32 %v1694, %v1848
        %v1851 = vadd.f32 %v1845, %v1849
        %v1852 = vadd.f32 %v1846, %v1850
        %s1853 = sld [smem:[#allocation8 + $0xd6]]
        %v1854 = vstv %s1853
        %v1855 = vmul.f32 %v1695, %v1854
        %v1856 = vmul.f32 %v1696, %v1854
        %v1857 = vadd.f32 %v1851, %v1855
        %v1858 = vadd.f32 %v1852, %v1856
        %s1859 = sld [smem:[#allocation8 + $0xde]]
        %v1860 = vstv %s1859
        %v1861 = vmul.f32 %v1697, %v1860
        %v1862 = vmul.f32 %v1698, %v1860
        %v1863 = vadd.f32 %v1857, %v1861
        %v1864 = vadd.f32 %v1858, %v1862
        %v1865 = vadd.f32 %v1657, %v1863
        %v1866 = vadd.f32 %v1658, %v1864
        %s1867 = sld [smem:[#allocation8 + $0xc7]]
        %v1868 = vstv %s1867
        %v1869 = vmul.f32 %v1691, %v1868
        %v1870 = vmul.f32 %v1692, %v1868
        %s1871 = sld [smem:[#allocation8 + $0xcf]]
        %v1872 = vstv %s1871
        %v1873 = vmul.f32 %v1693, %v1872
        %v1874 = vmul.f32 %v1694, %v1872
        %v1875 = vadd.f32 %v1869, %v1873
        %v1876 = vadd.f32 %v1870, %v1874
        %s1877 = sld [smem:[#allocation8 + $0xd7]]
        %v1878 = vstv %s1877
        %v1879 = vmul.f32 %v1695, %v1878
        %v1880 = vmul.f32 %v1696, %v1878
        %v1881 = vadd.f32 %v1875, %v1879
        %v1882 = vadd.f32 %v1876, %v1880
        %s1883 = sld [smem:[#allocation8 + $0xdf]]
        %v1884 = vstv %s1883
        %v1885 = vmul.f32 %v1697, %v1884
        %v1886 = vmul.f32 %v1698, %v1884
        %v1887 = vadd.f32 %v1881, %v1885
        %v1888 = vadd.f32 %v1882, %v1886
        %v1889 = vadd.f32 %v1689, %v1887
        %v1890 = vadd.f32 %v1690, %v1888
        %s1891 = sld [smem:[#allocation8 + $0xe0]]
        %v1892 = vstv %s1891
        %v1893 = vmul.f32 %v1691, %v1892
        %v1894 = vmul.f32 %v1692, %v1892
        %s1895 = sld [smem:[#allocation8 + $0xe8]]
        %v1896 = vstv %s1895
        %v1897 = vmul.f32 %v1693, %v1896
        %v1898 = vmul.f32 %v1694, %v1896
        %v1899 = vadd.f32 %v1893, %v1897
        %v1900 = vadd.f32 %v1894, %v1898
        %s1901 = sld [smem:[#allocation8 + $0xf0]]
        %v1902 = vstv %s1901
        %v1903 = vmul.f32 %v1695, %v1902
        %v1904 = vmul.f32 %v1696, %v1902
        %v1905 = vadd.f32 %v1899, %v1903
        %v1906 = vadd.f32 %v1900, %v1904
        %s1907 = sld [smem:[#allocation8 + $0xf8]]
        %v1908 = vstv %s1907
        %v1909 = vmul.f32 %v1697, %v1908
        %v1910 = vmul.f32 %v1698, %v1908
        %v1911 = vadd.f32 %v1905, %v1909
        %v1912 = vadd.f32 %v1906, %v1910
        %1915 = vrot.lane.b32.xlu0 %v1911, 127
        %v1916 = vpop.permute.xlu0 %1915
        %1917 = vrot.lane.b32.xlu0 %v1912, 127
        %v1918 = vpop.permute.xlu0 %1917
        %v1921 = vadd.f32 %v1721, %v1916
        %v1922 = vadd.f32 %v1722, %v1918
        %s1923 = sld [smem:[#allocation8 + $0xe1]]
        %v1924 = vstv %s1923
        %v1925 = vmul.f32 %v1691, %v1924
        %v1926 = vmul.f32 %v1692, %v1924
        %s1927 = sld [smem:[#allocation8 + $0xe9]]
        %v1928 = vstv %s1927
        %v1929 = vmul.f32 %v1693, %v1928
        %v1930 = vmul.f32 %v1694, %v1928
        %v1931 = vadd.f32 %v1925, %v1929
        %v1932 = vadd.f32 %v1926, %v1930
        %s1933 = sld [smem:[#allocation8 + $0xf1]]
        %v1934 = vstv %s1933
        %v1935 = vmul.f32 %v1695, %v1934
        %v1936 = vmul.f32 %v1696, %v1934
        %v1937 = vadd.f32 %v1931, %v1935
        %v1938 = vadd.f32 %v1932, %v1936
        %s1939 = sld [smem:[#allocation8 + $0xf9]]
        %v1940 = vstv %s1939
        %v1941 = vmul.f32 %v1697, %v1940
        %v1942 = vmul.f32 %v1698, %v1940
        %v1943 = vadd.f32 %v1937, %v1941
        %v1944 = vadd.f32 %v1938, %v1942
        %1947 = vrot.lane.b32.xlu0 %v1943, 127
        %v1948 = vpop.permute.xlu0 %1947
        %1949 = vrot.lane.b32.xlu0 %v1944, 127
        %v1950 = vpop.permute.xlu0 %1949
        %v1953 = vadd.f32 %v1745, %v1948
        %v1954 = vadd.f32 %v1746, %v1950
        %s1955 = sld [smem:[#allocation8 + $0xe2]]
        %v1956 = vstv %s1955
        %v1957 = vmul.f32 %v1691, %v1956
        %v1958 = vmul.f32 %v1692, %v1956
        %s1959 = sld [smem:[#allocation8 + $0xea]]
        %v1960 = vstv %s1959
        %v1961 = vmul.f32 %v1693, %v1960
        %v1962 = vmul.f32 %v1694, %v1960
        %v1963 = vadd.f32 %v1957, %v1961
        %v1964 = vadd.f32 %v1958, %v1962
        %s1965 = sld [smem:[#allocation8 + $0xf2]]
        %v1966 = vstv %s1965
        %v1967 = vmul.f32 %v1695, %v1966
        %v1968 = vmul.f32 %v1696, %v1966
        %v1969 = vadd.f32 %v1963, %v1967
        %v1970 = vadd.f32 %v1964, %v1968
        %s1971 = sld [smem:[#allocation8 + $0xfa]]
        %v1972 = vstv %s1971
        %v1973 = vmul.f32 %v1697, %v1972
        %v1974 = vmul.f32 %v1698, %v1972
        %v1975 = vadd.f32 %v1969, %v1973
        %v1976 = vadd.f32 %v1970, %v1974
        %1979 = vrot.lane.b32.xlu0 %v1975, 127
        %v1980 = vpop.permute.xlu0 %1979
        %1981 = vrot.lane.b32.xlu0 %v1976, 127
        %v1982 = vpop.permute.xlu0 %1981
        %v1985 = vadd.f32 %v1769, %v1980
        %v1986 = vadd.f32 %v1770, %v1982
        %s1987 = sld [smem:[#allocation8 + $0xe3]]
        %v1988 = vstv %s1987
        %v1989 = vmul.f32 %v1691, %v1988
        %v1990 = vmul.f32 %v1692, %v1988
        %s1991 = sld [smem:[#allocation8 + $0xeb]]
        %v1992 = vstv %s1991
        %v1993 = vmul.f32 %v1693, %v1992
        %v1994 = vmul.f32 %v1694, %v1992
        %v1995 = vadd.f32 %v1989, %v1993
        %v1996 = vadd.f32 %v1990, %v1994
        %s1997 = sld [smem:[#allocation8 + $0xf3]]
        %v1998 = vstv %s1997
        %v1999 = vmul.f32 %v1695, %v1998
        %v2000 = vmul.f32 %v1696, %v1998
        %v2001 = vadd.f32 %v1995, %v1999
        %v2002 = vadd.f32 %v1996, %v2000
        %s2003 = sld [smem:[#allocation8 + $0xfb]]
        %v2004 = vstv %s2003
        %v2005 = vmul.f32 %v1697, %v2004
        %v2006 = vmul.f32 %v1698, %v2004
        %v2007 = vadd.f32 %v2001, %v2005
        %v2008 = vadd.f32 %v2002, %v2006
        %2011 = vrot.lane.b32.xlu0 %v2007, 127
        %v2012 = vpop.permute.xlu0 %2011
        %2013 = vrot.lane.b32.xlu0 %v2008, 127
        %v2014 = vpop.permute.xlu0 %2013
        %v2017 = vadd.f32 %v1793, %v2012
        %v2018 = vadd.f32 %v1794, %v2014
        %s2019 = sld [smem:[#allocation8 + $0xe4]]
        %v2020 = vstv %s2019
        %v2021 = vmul.f32 %v1691, %v2020
        %v2022 = vmul.f32 %v1692, %v2020
        %s2023 = sld [smem:[#allocation8 + $0xec]]
        %v2024 = vstv %s2023
        %v2025 = vmul.f32 %v1693, %v2024
        %v2026 = vmul.f32 %v1694, %v2024
        %v2027 = vadd.f32 %v2021, %v2025
        %v2028 = vadd.f32 %v2022, %v2026
        %s2029 = sld [smem:[#allocation8 + $0xf4]]
        %v2030 = vstv %s2029
        %v2031 = vmul.f32 %v1695, %v2030
        %v2032 = vmul.f32 %v1696, %v2030
        %v2033 = vadd.f32 %v2027, %v2031
        %v2034 = vadd.f32 %v2028, %v2032
        %s2035 = sld [smem:[#allocation8 + $0xfc]]
        %v2036 = vstv %s2035
        %v2037 = vmul.f32 %v1697, %v2036
        %v2038 = vmul.f32 %v1698, %v2036
        %v2039 = vadd.f32 %v2033, %v2037
        %v2040 = vadd.f32 %v2034, %v2038
        %2043 = vrot.lane.b32.xlu0 %v2039, 127
        %v2044 = vpop.permute.xlu0 %2043
        %2045 = vrot.lane.b32.xlu0 %v2040, 127
        %v2046 = vpop.permute.xlu0 %2045
        %v2049 = vadd.f32 %v1817, %v2044
        %v2050 = vadd.f32 %v1818, %v2046
        %s2051 = sld [smem:[#allocation8 + $0xe5]]
        %v2052 = vstv %s2051
        %v2053 = vmul.f32 %v1691, %v2052
        %v2054 = vmul.f32 %v1692, %v2052
        %s2055 = sld [smem:[#allocation8 + $0xed]]
        %v2056 = vstv %s2055
        %v2057 = vmul.f32 %v1693, %v2056
        %v2058 = vmul.f32 %v1694, %v2056
        %v2059 = vadd.f32 %v2053, %v2057
        %v2060 = vadd.f32 %v2054, %v2058
        %s2061 = sld [smem:[#allocation8 + $0xf5]]
        %v2062 = vstv %s2061
        %v2063 = vmul.f32 %v1695, %v2062
        %v2064 = vmul.f32 %v1696, %v2062
        %v2065 = vadd.f32 %v2059, %v2063
        %v2066 = vadd.f32 %v2060, %v2064
        %s2067 = sld [smem:[#allocation8 + $0xfd]]
        %v2068 = vstv %s2067
        %v2069 = vmul.f32 %v1697, %v2068
        %v2070 = vmul.f32 %v1698, %v2068
        %v2071 = vadd.f32 %v2065, %v2069
        %v2072 = vadd.f32 %v2066, %v2070
        %2075 = vrot.lane.b32.xlu0 %v2071, 127
        %v2076 = vpop.permute.xlu0 %2075
        %2077 = vrot.lane.b32.xlu0 %v2072, 127
        %v2078 = vpop.permute.xlu0 %2077
        %v2081 = vadd.f32 %v1841, %v2076
        %v2082 = vadd.f32 %v1842, %v2078
        %s2083 = sld [smem:[#allocation8 + $0xe6]]
        %v2084 = vstv %s2083
        %v2085 = vmul.f32 %v1691, %v2084
        %v2086 = vmul.f32 %v1692, %v2084
        %s2087 = sld [smem:[#allocation8 + $0xee]]
        %v2088 = vstv %s2087
        %v2089 = vmul.f32 %v1693, %v2088
        %v2090 = vmul.f32 %v1694, %v2088
        %v2091 = vadd.f32 %v2085, %v2089
        %v2092 = vadd.f32 %v2086, %v2090
        %s2093 = sld [smem:[#allocation8 + $0xf6]]
        %v2094 = vstv %s2093
        %v2095 = vmul.f32 %v1695, %v2094
        %v2096 = vmul.f32 %v1696, %v2094
        %v2097 = vadd.f32 %v2091, %v2095
        %v2098 = vadd.f32 %v2092, %v2096
        %s2099 = sld [smem:[#allocation8 + $0xfe]]
        %v2100 = vstv %s2099
        %v2101 = vmul.f32 %v1697, %v2100
        %v2102 = vmul.f32 %v1698, %v2100
        %v2103 = vadd.f32 %v2097, %v2101
        %v2104 = vadd.f32 %v2098, %v2102
        %2107 = vrot.lane.b32.xlu0 %v2103, 127
        %v2108 = vpop.permute.xlu0 %2107
        %2109 = vrot.lane.b32.xlu0 %v2104, 127
        %v2110 = vpop.permute.xlu0 %2109
        %v2113 = vadd.f32 %v1865, %v2108
        %v2114 = vadd.f32 %v1866, %v2110
        %s2115 = sld [smem:[#allocation8 + $0xe7]]
        %v2116 = vstv %s2115
        %v2117 = vmul.f32 %v1691, %v2116
        %v2118 = vmul.f32 %v1692, %v2116
        %s2119 = sld [smem:[#allocation8 + $0xef]]
        %v2120 = vstv %s2119
        %v2121 = vmul.f32 %v1693, %v2120
        %v2122 = vmul.f32 %v1694, %v2120
        %v2123 = vadd.f32 %v2117, %v2121
        %v2124 = vadd.f32 %v2118, %v2122
        %s2125 = sld [smem:[#allocation8 + $0xf7]]
        %v2126 = vstv %s2125
        %v2127 = vmul.f32 %v1695, %v2126
        %v2128 = vmul.f32 %v1696, %v2126
        %v2129 = vadd.f32 %v2123, %v2127
        %v2130 = vadd.f32 %v2124, %v2128
        %s2131 = sld [smem:[#allocation8 + $0xff]]
        %v2132 = vstv %s2131
        %v2133 = vmul.f32 %v1697, %v2132
        %v2134 = vmul.f32 %v1698, %v2132
        %v2135 = vadd.f32 %v2129, %v2133
        %v2136 = vadd.f32 %v2130, %v2134
        %2139 = vrot.lane.b32.xlu0 %v2135, 127
        %v2140 = vpop.permute.xlu0 %2139
        %2141 = vrot.lane.b32.xlu0 %v2136, 127
        %v2142 = vpop.permute.xlu0 %2141
        %v2145 = vadd.f32 %v1889, %v2140
        %v2146 = vadd.f32 %v1890, %v2142
        %s2147 = sld [smem:[#allocation8 + $0x100]]
        %v2148 = vstv %s2147
        %v2149 = vmul.f32 %v1691, %v2148
        %v2150 = vmul.f32 %v1692, %v2148
        %s2151 = sld [smem:[#allocation8 + $0x108]]
        %v2152 = vstv %s2151
        %v2153 = vmul.f32 %v1693, %v2152
        %v2154 = vmul.f32 %v1694, %v2152
        %v2155 = vadd.f32 %v2149, %v2153
        %v2156 = vadd.f32 %v2150, %v2154
        %s2157 = sld [smem:[#allocation8 + $0x110]]
        %v2158 = vstv %s2157
        %v2159 = vmul.f32 %v1695, %v2158
        %v2160 = vmul.f32 %v1696, %v2158
        %v2161 = vadd.f32 %v2155, %v2159
        %v2162 = vadd.f32 %v2156, %v2160
        %s2163 = sld [smem:[#allocation8 + $0x118]]
        %v2164 = vstv %s2163
        %v2165 = vmul.f32 %v1697, %v2164
        %v2166 = vmul.f32 %v1698, %v2164
        %v2167 = vadd.f32 %v2161, %v2165
        %v2168 = vadd.f32 %v2162, %v2166
        %2171 = vrot.lane.b32.xlu0 %v2167, 126
        %v2172 = vpop.permute.xlu0 %2171
        %2173 = vrot.lane.b32.xlu0 %v2168, 126
        %v2174 = vpop.permute.xlu0 %2173
        %v2177 = vadd.f32 %v1921, %v2172
        %v2178 = vadd.f32 %v1922, %v2174
        %s2179 = sld [smem:[#allocation8 + $0x101]]
        %v2180 = vstv %s2179
        %v2181 = vmul.f32 %v1691, %v2180
        %v2182 = vmul.f32 %v1692, %v2180
        %s2183 = sld [smem:[#allocation8 + $0x109]]
        %v2184 = vstv %s2183
        %v2185 = vmul.f32 %v1693, %v2184
        %v2186 = vmul.f32 %v1694, %v2184
        %v2187 = vadd.f32 %v2181, %v2185
        %v2188 = vadd.f32 %v2182, %v2186
        %s2189 = sld [smem:[#allocation8 + $0x111]]
        %v2190 = vstv %s2189
        %v2191 = vmul.f32 %v1695, %v2190
        %v2192 = vmul.f32 %v1696, %v2190
        %v2193 = vadd.f32 %v2187, %v2191
        %v2194 = vadd.f32 %v2188, %v2192
        %s2195 = sld [smem:[#allocation8 + $0x119]]
        %v2196 = vstv %s2195
        %v2197 = vmul.f32 %v1697, %v2196
        %v2198 = vmul.f32 %v1698, %v2196
        %v2199 = vadd.f32 %v2193, %v2197
        %v2200 = vadd.f32 %v2194, %v2198
        %2203 = vrot.lane.b32.xlu0 %v2199, 126
        %v2204 = vpop.permute.xlu0 %2203
        %2205 = vrot.lane.b32.xlu0 %v2200, 126
        %v2206 = vpop.permute.xlu0 %2205
        %v2209 = vadd.f32 %v1953, %v2204
        %v2210 = vadd.f32 %v1954, %v2206
        %s2211 = sld [smem:[#allocation8 + $0x102]]
        %v2212 = vstv %s2211
        %v2213 = vmul.f32 %v1691, %v2212
        %v2214 = vmul.f32 %v1692, %v2212
        %s2215 = sld [smem:[#allocation8 + $0x10a]]
        %v2216 = vstv %s2215
        %v2217 = vmul.f32 %v1693, %v2216
        %v2218 = vmul.f32 %v1694, %v2216
        %v2219 = vadd.f32 %v2213, %v2217
        %v2220 = vadd.f32 %v2214, %v2218
        %s2221 = sld [smem:[#allocation8 + $0x112]]
        %v2222 = vstv %s2221
        %v2223 = vmul.f32 %v1695, %v2222
        %v2224 = vmul.f32 %v1696, %v2222
        %v2225 = vadd.f32 %v2219, %v2223
        %v2226 = vadd.f32 %v2220, %v2224
        %s2227 = sld [smem:[#allocation8 + $0x11a]]
        %v2228 = vstv %s2227
        %v2229 = vmul.f32 %v1697, %v2228
        %v2230 = vmul.f32 %v1698, %v2228
        %v2231 = vadd.f32 %v2225, %v2229
        %v2232 = vadd.f32 %v2226, %v2230
        %2235 = vrot.lane.b32.xlu0 %v2231, 126
        %v2236 = vpop.permute.xlu0 %2235
        %2237 = vrot.lane.b32.xlu0 %v2232, 126
        %v2238 = vpop.permute.xlu0 %2237
        %v2241 = vadd.f32 %v1985, %v2236
        %v2242 = vadd.f32 %v1986, %v2238
        %s2243 = sld [smem:[#allocation8 + $0x103]]
        %v2244 = vstv %s2243
        %v2245 = vmul.f32 %v1691, %v2244
        %v2246 = vmul.f32 %v1692, %v2244
        %s2247 = sld [smem:[#allocation8 + $0x10b]]
        %v2248 = vstv %s2247
        %v2249 = vmul.f32 %v1693, %v2248
        %v2250 = vmul.f32 %v1694, %v2248
        %v2251 = vadd.f32 %v2245, %v2249
        %v2252 = vadd.f32 %v2246, %v2250
        %s2253 = sld [smem:[#allocation8 + $0x113]]
        %v2254 = vstv %s2253
        %v2255 = vmul.f32 %v1695, %v2254
        %v2256 = vmul.f32 %v1696, %v2254
        %v2257 = vadd.f32 %v2251, %v2255
        %v2258 = vadd.f32 %v2252, %v2256
        %s2259 = sld [smem:[#allocation8 + $0x11b]]
        %v2260 = vstv %s2259
        %v2261 = vmul.f32 %v1697, %v2260
        %v2262 = vmul.f32 %v1698, %v2260
        %v2263 = vadd.f32 %v2257, %v2261
        %v2264 = vadd.f32 %v2258, %v2262
        %2267 = vrot.lane.b32.xlu0 %v2263, 126
        %v2268 = vpop.permute.xlu0 %2267
        %2269 = vrot.lane.b32.xlu0 %v2264, 126
        %v2270 = vpop.permute.xlu0 %2269
        %v2273 = vadd.f32 %v2017, %v2268
        %v2274 = vadd.f32 %v2018, %v2270
        %s2275 = sld [smem:[#allocation8 + $0x104]]
        %v2276 = vstv %s2275
        %v2277 = vmul.f32 %v1691, %v2276
        %v2278 = vmul.f32 %v1692, %v2276
        %s2279 = sld [smem:[#allocation8 + $0x10c]]
        %v2280 = vstv %s2279
        %v2281 = vmul.f32 %v1693, %v2280
        %v2282 = vmul.f32 %v1694, %v2280
        %v2283 = vadd.f32 %v2277, %v2281
        %v2284 = vadd.f32 %v2278, %v2282
        %s2285 = sld [smem:[#allocation8 + $0x114]]
        %v2286 = vstv %s2285
        %v2287 = vmul.f32 %v1695, %v2286
        %v2288 = vmul.f32 %v1696, %v2286
        %v2289 = vadd.f32 %v2283, %v2287
        %v2290 = vadd.f32 %v2284, %v2288
        %s2291 = sld [smem:[#allocation8 + $0x11c]]
        %v2292 = vstv %s2291
        %v2293 = vmul.f32 %v1697, %v2292
        %v2294 = vmul.f32 %v1698, %v2292
        %v2295 = vadd.f32 %v2289, %v2293
        %v2296 = vadd.f32 %v2290, %v2294
        %2299 = vrot.lane.b32.xlu0 %v2295, 126
        %v2300 = vpop.permute.xlu0 %2299
        %2301 = vrot.lane.b32.xlu0 %v2296, 126
        %v2302 = vpop.permute.xlu0 %2301
        %v2305 = vadd.f32 %v2049, %v2300
        %v2306 = vadd.f32 %v2050, %v2302
        %s2307 = sld [smem:[#allocation8 + $0x105]]
        %v2308 = vstv %s2307
        %v2309 = vmul.f32 %v1691, %v2308
        %v2310 = vmul.f32 %v1692, %v2308
        %s2311 = sld [smem:[#allocation8 + $0x10d]]
        %v2312 = vstv %s2311
        %v2313 = vmul.f32 %v1693, %v2312
        %v2314 = vmul.f32 %v1694, %v2312
        %v2315 = vadd.f32 %v2309, %v2313
        %v2316 = vadd.f32 %v2310, %v2314
        %s2317 = sld [smem:[#allocation8 + $0x115]]
        %v2318 = vstv %s2317
        %v2319 = vmul.f32 %v1695, %v2318
        %v2320 = vmul.f32 %v1696, %v2318
        %v2321 = vadd.f32 %v2315, %v2319
        %v2322 = vadd.f32 %v2316, %v2320
        %s2323 = sld [smem:[#allocation8 + $0x11d]]
        %v2324 = vstv %s2323
        %v2325 = vmul.f32 %v1697, %v2324
        %v2326 = vmul.f32 %v1698, %v2324
        %v2327 = vadd.f32 %v2321, %v2325
        %v2328 = vadd.f32 %v2322, %v2326
        %2331 = vrot.lane.b32.xlu0 %v2327, 126
        %v2332 = vpop.permute.xlu0 %2331
        %2333 = vrot.lane.b32.xlu0 %v2328, 126
        %v2334 = vpop.permute.xlu0 %2333
        %v2337 = vadd.f32 %v2081, %v2332
        %v2338 = vadd.f32 %v2082, %v2334
        %s2339 = sld [smem:[#allocation8 + $0x106]]
        %v2340 = vstv %s2339
        %v2341 = vmul.f32 %v1691, %v2340
        %v2342 = vmul.f32 %v1692, %v2340
        %s2343 = sld [smem:[#allocation8 + $0x10e]]
        %v2344 = vstv %s2343
        %v2345 = vmul.f32 %v1693, %v2344
        %v2346 = vmul.f32 %v1694, %v2344
        %v2347 = vadd.f32 %v2341, %v2345
        %v2348 = vadd.f32 %v2342, %v2346
        %s2349 = sld [smem:[#allocation8 + $0x116]]
        %v2350 = vstv %s2349
        %v2351 = vmul.f32 %v1695, %v2350
        %v2352 = vmul.f32 %v1696, %v2350
        %v2353 = vadd.f32 %v2347, %v2351
        %v2354 = vadd.f32 %v2348, %v2352
        %s2355 = sld [smem:[#allocation8 + $0x11e]]
        %v2356 = vstv %s2355
        %v2357 = vmul.f32 %v1697, %v2356
        %v2358 = vmul.f32 %v1698, %v2356
        %v2359 = vadd.f32 %v2353, %v2357
        %v2360 = vadd.f32 %v2354, %v2358
        %2363 = vrot.lane.b32.xlu0 %v2359, 126
        %v2364 = vpop.permute.xlu0 %2363
        %2365 = vrot.lane.b32.xlu0 %v2360, 126
        %v2366 = vpop.permute.xlu0 %2365
        %v2369 = vadd.f32 %v2113, %v2364
        %v2370 = vadd.f32 %v2114, %v2366
        %s2371 = sld [smem:[#allocation8 + $0x107]]
        %v2372 = vstv %s2371
        %v2373 = vmul.f32 %v1691, %v2372
        %v2374 = vmul.f32 %v1692, %v2372
        %s2375 = sld [smem:[#allocation8 + $0x10f]]
        %v2376 = vstv %s2375
        %v2377 = vmul.f32 %v1693, %v2376
        %v2378 = vmul.f32 %v1694, %v2376
        %v2379 = vadd.f32 %v2373, %v2377
        %v2380 = vadd.f32 %v2374, %v2378
        %s2381 = sld [smem:[#allocation8 + $0x117]]
        %v2382 = vstv %s2381
        %v2383 = vmul.f32 %v1695, %v2382
        %v2384 = vmul.f32 %v1696, %v2382
        %v2385 = vadd.f32 %v2379, %v2383
        %v2386 = vadd.f32 %v2380, %v2384
        %s2387 = sld [smem:[#allocation8 + $0x11f]]
        %v2388 = vstv %s2387
        %v2389 = vmul.f32 %v1697, %v2388
        %v2390 = vmul.f32 %v1698, %v2388
        %v2391 = vadd.f32 %v2385, %v2389
        %v2392 = vadd.f32 %v2386, %v2390
        %2395 = vrot.lane.b32.xlu0 %v2391, 126
        %v2396 = vpop.permute.xlu0 %2395
        %2397 = vrot.lane.b32.xlu0 %v2392, 126
        %v2398 = vpop.permute.xlu0 %2397
        %v2401 = vadd.f32 %v2145, %v2396
        %v2402 = vadd.f32 %v2146, %v2398
        %s2403 = sld [smem:[#allocation9]]
        %v2404 = vstv %s2403
        %v2405 = vadd.f32 %v2177, %v2404
        %v2406 = vadd.f32 %v2178, %v2404
        %vm2407 = vcmask 130048
        %2408 = vst.msk [vmem:[%s213] sm:$0xff] %vm2407, %v2405
        %2409 = vst.msk [vmem:[%s213 + $0x8] sm:$0xff] %vm2407, %v2406
        %s2410 = sld [smem:[#allocation9 + $0x1]]
        %v2411 = vstv %s2410
        %v2412 = vadd.f32 %v2209, %v2411
        %v2413 = vadd.f32 %v2210, %v2411
        %s2414 = scalar_lea.vmem %s213, 16 [#allocation10]
        %2415 = vst.msk [vmem:[%s2414] sm:$0xff] %vm2407, %v2412
        %2416 = vst.msk [vmem:[%s2414 + $0x8] sm:$0xff] %vm2407, %v2413
        %s2417 = sld [smem:[#allocation9 + $0x2]]
        %v2418 = vstv %s2417
        %v2419 = vadd.f32 %v2241, %v2418
        %v2420 = vadd.f32 %v2242, %v2418
        %s2421 = scalar_lea.vmem %s213, 32 [#allocation10]
        %2422 = vst.msk [vmem:[%s2421] sm:$0xff] %vm2407, %v2419
        %2423 = vst.msk [vmem:[%s2421 + $0x8] sm:$0xff] %vm2407, %v2420
        %s2424 = sld [smem:[#allocation9 + $0x3]]
        %v2425 = vstv %s2424
        %v2426 = vadd.f32 %v2273, %v2425
        %v2427 = vadd.f32 %v2274, %v2425
        %s2428 = scalar_lea.vmem %s213, 48 [#allocation10]
        %2429 = vst.msk [vmem:[%s2428] sm:$0xff] %vm2407, %v2426
        %2430 = vst.msk [vmem:[%s2428 + $0x8] sm:$0xff] %vm2407, %v2427
        %s2431 = sld [smem:[#allocation9 + $0x4]]
        %v2432 = vstv %s2431
        %v2433 = vadd.f32 %v2305, %v2432
        %v2434 = vadd.f32 %v2306, %v2432
        %s2435 = scalar_lea.vmem %s213, 64 [#allocation10]
        %2436 = vst.msk [vmem:[%s2435] sm:$0xff] %vm2407, %v2433
        %2437 = vst.msk [vmem:[%s2435 + $0x8] sm:$0xff] %vm2407, %v2434
        %s2438 = sld [smem:[#allocation9 + $0x5]]
        %v2439 = vstv %s2438
        %v2440 = vadd.f32 %v2337, %v2439
        %v2441 = vadd.f32 %v2338, %v2439
        %s2442 = scalar_lea.vmem %s213, 80 [#allocation10]
        %2443 = vst.msk [vmem:[%s2442] sm:$0xff] %vm2407, %v2440
        %2444 = vst.msk [vmem:[%s2442 + $0x8] sm:$0xff] %vm2407, %v2441
        %s2445 = sld [smem:[#allocation9 + $0x6]]
        %v2446 = vstv %s2445
        %v2447 = vadd.f32 %v2369, %v2446
        %v2448 = vadd.f32 %v2370, %v2446
        %s2449 = scalar_lea.vmem %s213, 96 [#allocation10]
        %2450 = vst.msk [vmem:[%s2449] sm:$0xff] %vm2407, %v2447
        %2451 = vst.msk [vmem:[%s2449 + $0x8] sm:$0xff] %vm2407, %v2448
        %s2452 = sld [smem:[#allocation9 + $0x7]]
        %v2453 = vstv %s2452
        %v2454 = vadd.f32 %v2401, %v2453
        %v2455 = vadd.f32 %v2402, %v2453
        %s2456 = scalar_lea.vmem %s213, 112 [#allocation10]
        %2457 = vst.msk [vmem:[%s2456] sm:$0xff] %vm2407, %v2454
        %2458 = vst.msk [vmem:[%s2456 + $0x8] sm:$0xff] %vm2407, %v2455
        %s2459 = sand.u32 %s98, 1
        %s2460 = scalar_lea.sflag [#allocation5], %s2459
        %s2461 = sand.u32 %s98, 1
        %s2462 = smul.addr %s2461, 128
        %s2463 = scalar_lea.vmem [#allocation10], %s2462
        // Predicated region
        $region45: #{tpu_custom_call.1} parent=31 // pred_check
          %p2464 = pneg %p108
        $region46: #{tpu_custom_call.1} parent=31 // pred_check_branch
          %2466 = sbr.rel (%p2464) target = $region48
        $region47: #{tpu_custom_call.1} parent=31 // pred_region
          %s2468 = ssub.s32 2048, 2048
          %2469 = vsyncadd %s2460, %s2468
          %s2470 = smul.addr %s22, 16
          %s2471 = smul.addr %s2470, 128
          %s2472 = scalar_lea.hbm %s3, %s2471
          %s2473 = sshll.u32 %s2463, 4
          %s2474 = int_to_ptr.vmem [resolvable:$true] %s2473
          %2479 = dma.vmem_to_hbm [thread:$0]  %s2474, 2048, %s2472, %s2460, 128, 128, 8
        $region48: #{tpu_custom_call.1} parent=31 // pred_fallthru
          _
      $region32: #{tpu_custom_call.1} parent=5 // pred_fallthru
        _
      %p2480 = scmp.le.s32.totalorder 2, %s17
      // Predicated region
      $region49: #{tpu_custom_call.1} parent=5 // pred_check
        %p2481 = pneg %p2480
      $region50: #{tpu_custom_call.1} parent=5 // pred_check_branch
        %2483 = sbr.rel (%p2481) target = $region52
      $region51: #{tpu_custom_call.1} parent=5 // pred_region
        %s2484 = ssub.s32 %s17, 2
        // Predicated region
        $region53: #{tpu_custom_call.1} parent=51 // pred_check
          %p2485 = pneg %p114
        $region54: #{tpu_custom_call.1} parent=51 // pred_check_branch
          %2487 = sbr.rel (%p2485) target = $region56
        $region55: #{tpu_custom_call.1} parent=51 // pred_region
          %s2488 = sand.u32 %s99, 1
          %s2489 = scalar_lea.sflag [#allocation5], %s2488
          %s2490 = sand.u32 %s99, 1
          %s2491 = smul.addr %s2490, 128
          %s2492 = scalar_lea.vmem [#allocation10], %s2491
          %2493 = dma.done %s2489, 2048
        $region56: #{tpu_custom_call.1} parent=51 // pred_fallthru
          _
      $region52: #{tpu_custom_call.1} parent=5 // pred_fallthru
        _
    $region6: #{tpu_custom_call.1} parent=1 // loop_footer
      %s21 = sadd.s32 1, %s17
    $region7: #{tpu_custom_call.1} parent=1 // loop_footer_branch
      %16 = sbr.rel target = $region3
    $region8: #{tpu_custom_call.1} parent=1 // loop_exit
      _
    %2494 = vsyncpa [#allocation4], 1
    %s2495 = scalar_lea.sflag [#allocation4], 1
    %2496 = vsyncpa %s2495, 1
    %2497 = vsyncpa [#allocation5], 1
    %s2498 = scalar_lea.sflag [#allocation5], 1
    %2499 = vsyncpa %s2498, 1
    %2500 = vsyncpa [#allocation6], 1
    %s2501 = scalar_lea.sflag [#allocation6], 1
    %2502 = vsyncpa %s2501, 1
    %2503 = vsyncpa [#allocation7], 1
    %s2504 = scalar_lea.sflag [#allocation7], 1
    %2505 = vsyncpa %s2504, 1

</llo_original>
